<compile_context>
chip_gen: v7x
topology: tpu7x:2x2x1
jax: 0.10.0
libtpu: 0.0.40
codegen_flags: <defaults>
</compile_context>

<pallas_src>
import functools

import jax
import jax.numpy as jnp
from jax import lax
from jax.experimental import pallas as pl
from jax.experimental.pallas import tpu as pltpu

H = 128            # LSTM hidden size (fixed by the module)
NUM_HEADS = 4
HEAD_DIM = H // NUM_HEADS
SUBLANE = 8        # TPU sublane granule; batch/feature padded to this


def _sigmoid(x):
    # Exact: sigmoid(x) == 0.5 * tanh(0.5 * x) + 0.5  (single EUP push).
    return 0.5 * jnp.tanh(0.5 * x) + 0.5


def _lstm_cell(gates, c_prev):
    """PyTorch gate order: i, f, g, o.  gates: (Bp, 4H) f32."""
    i_g = _sigmoid(gates[:, 0 * H:1 * H])
    f_g = _sigmoid(gates[:, 1 * H:2 * H])
    g_g = jnp.tanh(gates[:, 2 * H:3 * H])
    o_g = _sigmoid(gates[:, 3 * H:4 * H])
    c_new = f_g * c_prev + i_g * g_g
    h_new = o_g * jnp.tanh(c_new)
    return h_new, c_new


def _fused_forward_kernel(x_ref,
                          wih0_ref, whh0_ref, b0_ref,
                          wih1_ref, whh1_ref, b1_ref,
                          wqkv_ref, bqkv_ref, wo_ref, bo_ref,
                          wheads_ref, bheads_ref,
                          out_ref,
                          gx0_scr,
                          *, seq_len, batch, batch_padded):
    f32 = jnp.float32
    bf16 = jnp.bfloat16
    T, B, Bp = seq_len, batch, batch_padded

    # ---- Phase 1: hoisted layer-0 input projection for ALL time steps ------
    # (T*Bp, Fp) @ (Fp, 4H) -> (T*Bp, 4H); Fp is tiny so this stays f32.
    gx0_scr[...] = (jnp.dot(x_ref[...], wih0_ref[...],
                            preferred_element_type=f32) + b0_ref[...])

    zeros = jnp.zeros((Bp, H), f32)
    # Hoist the layer-1 bias broadcast out of the loop (JAX doesn't CSE it).
    b1b = jnp.broadcast_to(b1_ref[...], (Bp, 4 * H))

    # ---- Phase 2: interleaved layer-0 / layer-1 recurrence -----------------
    # Layer-1 step t depends only on h0(t) (and its own carry), so with
    # unroll=True the scheduler overlaps it with layer-0 step t+1.  Only the
    # tiny (8,128) h @ W_hh matmuls + gate nonlinearities sit on the serial
    # path; the layer-0 input projection is precomputed above.
    def step(t, carry):
        h0, c0, h1, c1 = carry
        row = pl.multiple_of(t * Bp, SUBLANE)
        g0 = gx0_scr[pl.ds(row, Bp), :] + jnp.dot(
            h0.astype(bf16), whh0_ref[...], preferred_element_type=f32)
        h0, c0 = _lstm_cell(g0, c0)
        g1 = (jnp.dot(h0.astype(bf16), wih1_ref[...],
                      preferred_element_type=f32)
              + jnp.dot(h1.astype(bf16), whh1_ref[...],
                        preferred_element_type=f32)
              + b1b)
        h1, c1 = _lstm_cell(g1, c1)
        return h0, c0, h1, c1

    _, _, h_last, _ = lax.fori_loop(0, T, step, (zeros, zeros, zeros, zeros),
                                    unroll=True)

    # ---- Phase 3: MHA over the batch axis of the last time step ------------
    # Fused QKV projection: one well-shaped (Bp,128) @ (128,384) bf16 matmul.
    hb = h_last.astype(bf16)
    qkv = jnp.dot(hb, wqkv_ref[...], preferred_element_type=f32) + bqkv_ref[...]

    scale = 1.0 / (HEAD_DIM ** 0.5)
    # Mask padded batch rows acting as attention keys.
    key_mask = lax.broadcasted_iota(jnp.int32, (Bp, Bp), 1) < B

    o = jnp.zeros((Bp, H), f32)
    for hd in range(NUM_HEADS):                 # 4 heads, tiny one-shot epilogue
        lo = hd * HEAD_DIM
        q_h = qkv[:, lo:lo + HEAD_DIM].astype(bf16)
        k_h = qkv[:, H + lo:H + lo + HEAD_DIM].astype(bf16)
        v_h = qkv[:, 2 * H + lo:2 * H + lo + HEAD_DIM].astype(bf16)

        # scores: (Bp, Bp), contracting the head dim of q and k (bf16 in, f32 acc)
        s = lax.dot_general(q_h, k_h, (((1,), (1,)), ((), ())),
                            preferred_element_type=f32) * scale
        s = jnp.where(key_mask, s, -1e30)
        s = s - jnp.max(s, axis=-1, keepdims=True)
        p = jnp.exp(s)
        p = p * pl.reciprocal(jnp.sum(p, axis=-1, keepdims=True), approx=True)

        a_h = jnp.dot(p.astype(bf16), v_h, preferred_element_type=f32)
        # concat-of-heads @ W_o  ==  sum over heads of per-head-row matmuls.
        o = o + jnp.dot(a_h.astype(bf16), wo_ref[hd],
                        preferred_element_type=f32)
    o = o + bo_ref[...]

    # Three Linear(128, 1) heads fused into one (H, 3) matmul + sigmoid.
    logits = (jnp.dot(o, wheads_ref[...], preferred_element_type=f32)
              + bheads_ref[...])
    out_ref[...] = _sigmoid(logits)


def enhanced_lstm_forward(x, params):
    if x.ndim == 2:                        # mirrors `x.unsqueeze(1)`
        x = x[:, None, :]
    x = x.astype(jnp.float32)
    B, T, F = x.shape
    Bp = ((B + SUBLANE - 1) // SUBLANE) * SUBLANE
    Fp = params["wih0"].shape[0]           # feature dim padded in init_params

    # Time-major, batch padded to the sublane granule, feature dim zero-padded,
    # flattened to (T*Bp, Fp) so the layer-0 input projection is one matmul.
    xt = jnp.transpose(x, (1, 0, 2))                       # (T, B, F)
    xt = jnp.pad(xt, ((0, 0), (0, Bp - B), (0, Fp - F)))
    x2d = xt.reshape(T * Bp, Fp)

    kernel = functools.partial(_fused_forward_kernel,
                               seq_len=T, batch=B, batch_padded=Bp)
    vm = pl.BlockSpec(memory_space=pltpu.MemorySpace.VMEM)

    probs = pl.pallas_call(
        kernel,
        out_shape=jax.ShapeDtypeStruct((Bp, 3), jnp.float32),
        in_specs=[vm] * 13,
        out_specs=vm,
        scratch_shapes=[
            pltpu.VMEM((T * Bp, 4 * H), jnp.float32),   # layer-0 hoisted gates
        ],
    )(x2d,
      params["wih0"], params["whh0"], params["b0"],
      params["wih1"], params["whh1"], params["b1"],
      params["wqkv"], params["bqkv"], params["wo"], params["bo"],
      params["wheads"], params["bheads"])

    probs = probs[:B]                       # drop padded batch rows
    return {
        "pollution_risk": probs[:, 0:1],
        "explosion_risk": probs[:, 1:2],
        "gas_leak_risk": probs[:, 2:3],
    }


# --------------------------------------------------------------------------
# Deterministic parameter init (shapes from the module's __init__).
# Hidden-sized matrices are pre-transposed (kernel computes x @ W) and cast
# to bf16; biases / tiny matrices stay f32.
# --------------------------------------------------------------------------
def init_params(input_size, key):
    keys = jax.random.split(key, 18)
    kscale = 1.0 / (H ** 0.5)
    bf16 = jnp.bfloat16
    Fp = ((input_size + SUBLANE - 1) // SUBLANE) * SUBLANE

    def uni(kk, shape):
        return jax.random.uniform(kk, shape, jnp.float32, -kscale, kscale)

    p = {}
    # LSTM layer 0 / layer 1 (PyTorch stores (4H, in) / (4H, H); we transpose)
    wih0 = uni(keys[0], (4 * H, input_size)); whh0 = uni(keys[1], (4 * H, H))
    bih0 = uni(keys[2], (4 * H,));            bhh0 = uni(keys[3], (4 * H,))
    wih1 = uni(keys[4], (4 * H, H));          whh1 = uni(keys[5], (4 * H, H))
    bih1 = uni(keys[6], (4 * H,));            bhh1 = uni(keys[7], (4 * H,))
    p["wih0"] = jnp.pad(wih0.T, ((0, Fp - input_size), (0, 0)))  # (Fp, 4H) f32
    p["whh0"] = whh0.T.astype(bf16)           # (H, 4H)
    p["b0"] = (bih0 + bhh0)[None, :]
    p["wih1"] = wih1.T.astype(bf16)           # (H, 4H)
    p["whh1"] = whh1.T.astype(bf16)           # (H, 4H)
    p["b1"] = (bih1 + bhh1)[None, :]

    # MultiheadAttention(128, 4): in_proj (3H, H) + bias, out_proj (H, H)+bias.
    # Fused QKV weight: columns ordered [Q | K | V], each head-contiguous.
    in_w = uni(keys[8], (3 * H, H))
    in_b = uni(keys[9], (3 * H,))
    p["wqkv"] = in_w.T.astype(bf16)                          # (H, 3H)
    p["bqkv"] = in_b[None, :]                                # (1, 3H)

    out_w = uni(keys[10], (H, H)); out_b = uni(keys[11], (H,))
    # out = concat_heads @ out_w.T + out_b; split rows of out_w.T per head.
    p["wo"] = out_w.T.reshape(NUM_HEADS, HEAD_DIM, H).astype(bf16)
    p["bo"] = out_b[None, :]

    # Three Linear(128, 1) heads, stacked into (H, 3) / (1, 3)
    wp, bp_ = uni(keys[12], (1, H)), uni(keys[13], (1,))
    we, be = uni(keys[14], (1, H)), uni(keys[15], (1,))
    wg, bg = uni(keys[16], (1, H)), uni(keys[17], (1,))
    p["wheads"] = jnp.concatenate([wp, we, wg], axis=0).T     # (H, 3)
    p["bheads"] = jnp.stack([bp_[0], be[0], bg[0]])[None, :]  # (1, 3)
    return p


if __name__ == "__main__":
    input_size, B, T = 6, 4, 8
    key = jax.random.PRNGKey(0)
    kx, kp = jax.random.split(key)

    x = jax.random.normal(kx, (B, T, input_size), jnp.float32)
    params = init_params(input_size, kp)

    fwd = jax.jit(enhanced_lstm_forward)
    out = jax.block_until_ready(fwd(x, params))

    assert out["pollution_risk"].shape == (B, 1)
    assert out["explosion_risk"].shape == (B, 1)
    assert out["gas_leak_risk"].shape == (B, 1)
    for v in out.values():
        assert bool(jnp.all(jnp.isfinite(v)))
        assert bool(jnp.all((v >= 0.0) & (v <= 1.0)))

    print("KERNEL_OK")
</pallas_src>

<mosaic_0001>
module attributes {stable_mosaic.version = 11 : i64} {
  func.func @_fused_forward_kernel(%arg0: memref<64x8xf32, #tpu.memory_space<vmem>>, %arg1: memref<8x512xf32, #tpu.memory_space<vmem>>, %arg2: memref<128x512xbf16, #tpu.memory_space<vmem>>, %arg3: memref<1x512xf32, #tpu.memory_space<vmem>>, %arg4: memref<128x512xbf16, #tpu.memory_space<vmem>>, %arg5: memref<128x512xbf16, #tpu.memory_space<vmem>>, %arg6: memref<1x512xf32, #tpu.memory_space<vmem>>, %arg7: memref<128x384xbf16, #tpu.memory_space<vmem>>, %arg8: memref<1x384xf32, #tpu.memory_space<vmem>>, %arg9: memref<4x32x128xbf16, #tpu.memory_space<vmem>>, %arg10: memref<1x128xf32, #tpu.memory_space<vmem>>, %arg11: memref<128x3xf32, #tpu.memory_space<vmem>>, %arg12: memref<1x3xf32, #tpu.memory_space<vmem>>, %arg13: memref<8x3xf32, #tpu.memory_space<vmem>>, %arg14: memref<64x512xf32, #tpu.memory_space<vmem>>) attributes {dimension_semantics = [], scalar_prefetch = 0 : i64, scratch_operands = 1 : i64, tpu.core_type = #tpu.core_type<tc>} {
    %c0 = arith.constant 0 : index
    %c0_0 = arith.constant 0 : index
    %0 = vector.load %arg0[%c0, %c0_0] : memref<64x8xf32, #tpu.memory_space<vmem>>, vector<64x8xf32>
    %c0_1 = arith.constant 0 : index
    %c0_2 = arith.constant 0 : index
    %1 = vector.load %arg1[%c0_1, %c0_2] : memref<8x512xf32, #tpu.memory_space<vmem>>, vector<8x512xf32>
    %cst = arith.constant dense<0.000000e+00> : vector<64x512xf32>
    %2 = tpu.matmul %0, %1, %cst {dimension_numbers = #tpu.dot_dimension_numbers<[1], [0], [0], [1], [0, 0, 1, 1], [], []>} : vector<64x8xf32>, vector<8x512xf32>, vector<64x512xf32> -> vector<64x512xf32>
    %c0_3 = arith.constant 0 : index
    %c0_4 = arith.constant 0 : index
    %3 = vector.load %arg3[%c0_3, %c0_4] : memref<1x512xf32, #tpu.memory_space<vmem>>, vector<1x512xf32>
    %4 = vector.broadcast %3 : vector<1x512xf32> to vector<64x512xf32>
    %5 = arith.addf %2, %4 : vector<64x512xf32>
    %c0_5 = arith.constant 0 : index
    %c0_6 = arith.constant 0 : index
    %6 = vector.load %arg14[%c0_5, %c0_6] : memref<64x512xf32, #tpu.memory_space<vmem>>, vector<64x512xf32>
    tpu.vector_store %arg14[%c0_5, %c0_6], %5 {strides = array<i32>} : memref<64x512xf32, #tpu.memory_space<vmem>>, vector<64x512xf32>,
    %cst_7 = arith.constant 0.000000e+00 : f32
    %7 = vector.broadcast %cst_7 : f32 to vector<8x128xf32>
    %c0_8 = arith.constant 0 : index
    %c0_9 = arith.constant 0 : index
    %8 = vector.load %arg6[%c0_8, %c0_9] : memref<1x512xf32, #tpu.memory_space<vmem>>, vector<1x512xf32>
    %9 = vector.shape_cast %8 : vector<1x512xf32> to vector<1x512xf32>
    %10 = vector.broadcast %9 : vector<1x512xf32> to vector<8x512xf32>
    %c0_i32 = arith.constant 0 : i32
    %c8_i32 = arith.constant 8 : i32
    %11 = arith.muli %c0_i32, %c8_i32 : i32
    %12 = tpu.assume_multiple %11, 8 : i32
    %13 = arith.index_cast %12 : i32 to index
    %c0_10 = arith.constant 0 : index
    %14 = vector.load %arg14[%13, %c0_10] : memref<64x512xf32, #tpu.memory_space<vmem>>, vector<8x512xf32>
    %15 = arith.truncf %7 : vector<8x128xf32> to vector<8x128xbf16>
    %c0_11 = arith.constant 0 : index
    %c0_12 = arith.constant 0 : index
    %16 = vector.load %arg2[%c0_11, %c0_12] : memref<128x512xbf16, #tpu.memory_space<vmem>>, vector<128x512xbf16>
    %cst_13 = arith.constant dense<0.000000e+00> : vector<8x512xf32>
    %17 = tpu.matmul %15, %16, %cst_13 {dimension_numbers = #tpu.dot_dimension_numbers<[1], [0], [0], [1], [0, 0, 1, 1], [], []>} : vector<8x128xbf16>, vector<128x512xbf16>, vector<8x512xf32> -> vector<8x512xf32>
    %18 = arith.addf %14, %17 : vector<8x512xf32>
    %19 = vector.extract_strided_slice %18 {offsets = [0, 0], sizes = [8, 128], strides = [1, 1]} : vector<8x512xf32> to vector<8x128xf32>
    %cst_14 = arith.constant 5.000000e-01 : f32
    %20 = vector.broadcast %cst_14 : f32 to vector<8x128xf32>
    %21 = arith.mulf %20, %19 : vector<8x128xf32>
    %22 = math.tanh %21 : vector<8x128xf32>
    %cst_15 = arith.constant 5.000000e-01 : f32
    %23 = vector.broadcast %cst_15 : f32 to vector<8x128xf32>
    %24 = arith.mulf %23, %22 : vector<8x128xf32>
    %cst_16 = arith.constant 5.000000e-01 : f32
    %25 = vector.broadcast %cst_16 : f32 to vector<8x128xf32>
    %26 = arith.addf %24, %25 : vector<8x128xf32>
    %27 = vector.extract_strided_slice %18 {offsets = [0, 128], sizes = [8, 128], strides = [1, 1]} : vector<8x512xf32> to vector<8x128xf32>
    %cst_17 = arith.constant 5.000000e-01 : f32
    %28 = vector.broadcast %cst_17 : f32 to vector<8x128xf32>
    %29 = arith.mulf %28, %27 : vector<8x128xf32>
    %30 = math.tanh %29 : vector<8x128xf32>
    %cst_18 = arith.constant 5.000000e-01 : f32
    %31 = vector.broadcast %cst_18 : f32 to vector<8x128xf32>
    %32 = arith.mulf %31, %30 : vector<8x128xf32>
    %cst_19 = arith.constant 5.000000e-01 : f32
    %33 = vector.broadcast %cst_19 : f32 to vector<8x128xf32>
    %34 = arith.addf %32, %33 : vector<8x128xf32>
    %35 = vector.extract_strided_slice %18 {offsets = [0, 256], sizes = [8, 128], strides = [1, 1]} : vector<8x512xf32> to vector<8x128xf32>
    %36 = math.tanh %35 : vector<8x128xf32>
    %37 = vector.extract_strided_slice %18 {offsets = [0, 384], sizes = [8, 128], strides = [1, 1]} : vector<8x512xf32> to vector<8x128xf32>
    %cst_20 = arith.constant 5.000000e-01 : f32
    %38 = vector.broadcast %cst_20 : f32 to vector<8x128xf32>
    %39 = arith.mulf %38, %37 : vector<8x128xf32>
    %40 = math.tanh %39 : vector<8x128xf32>
    %cst_21 = arith.constant 5.000000e-01 : f32
    %41 = vector.broadcast %cst_21 : f32 to vector<8x128xf32>
    %42 = arith.mulf %41, %40 : vector<8x128xf32>
    %cst_22 = arith.constant 5.000000e-01 : f32
    %43 = vector.broadcast %cst_22 : f32 to vector<8x128xf32>
    %44 = arith.addf %42, %43 : vector<8x128xf32>
    %45 = arith.mulf %34, %7 : vector<8x128xf32>
    %46 = arith.mulf %26, %36 : vector<8x128xf32>
    %47 = arith.addf %45, %46 : vector<8x128xf32>
    %48 = math.tanh %47 : vector<8x128xf32>
    %49 = arith.mulf %44, %48 : vector<8x128xf32>
    %50 = arith.truncf %49 : vector<8x128xf32> to vector<8x128xbf16>
    %c0_23 = arith.constant 0 : index
    %c0_24 = arith.constant 0 : index
    %51 = vector.load %arg4[%c0_23, %c0_24] : memref<128x512xbf16, #tpu.memory_space<vmem>>, vector<128x512xbf16>
    %cst_25 = arith.constant dense<0.000000e+00> : vector<8x512xf32>
    %52 = tpu.matmul %50, %51, %cst_25 {dimension_numbers = #tpu.dot_dimension_numbers<[1], [0], [0], [1], [0, 0, 1, 1], [], []>} : vector<8x128xbf16>, vector<128x512xbf16>, vector<8x512xf32> -> vector<8x512xf32>
    %53 = arith.truncf %7 : vector<8x128xf32> to vector<8x128xbf16>
    %c0_26 = arith.constant 0 : index
    %c0_27 = arith.constant 0 : index
    %54 = vector.load %arg5[%c0_26, %c0_27] : memref<128x512xbf16, #tpu.memory_space<vmem>>, vector<128x512xbf16>
    %cst_28 = arith.constant dense<0.000000e+00> : vector<8x512xf32>
    %55 = tpu.matmul %53, %54, %cst_28 {dimension_numbers = #tpu.dot_dimension_numbers<[1], [0], [0], [1], [0, 0, 1, 1], [], []>} : vector<8x128xbf16>, vector<128x512xbf16>, vector<8x512xf32> -> vector<8x512xf32>
    %56 = arith.addf %52, %55 : vector<8x512xf32>
    %57 = arith.addf %56, %10 : vector<8x512xf32>
    %58 = vector.extract_strided_slice %57 {offsets = [0, 0], sizes = [8, 128], strides = [1, 1]} : vector<8x512xf32> to vector<8x128xf32>
    %cst_29 = arith.constant 5.000000e-01 : f32
    %59 = vector.broadcast %cst_29 : f32 to vector<8x128xf32>
    %60 = arith.mulf %59, %58 : vector<8x128xf32>
    %61 = math.tanh %60 : vector<8x128xf32>
    %cst_30 = arith.constant 5.000000e-01 : f32
    %62 = vector.broadcast %cst_30 : f32 to vector<8x128xf32>
    %63 = arith.mulf %62, %61 : vector<8x128xf32>
    %cst_31 = arith.constant 5.000000e-01 : f32
    %64 = vector.broadcast %cst_31 : f32 to vector<8x128xf32>
    %65 = arith.addf %63, %64 : vector<8x128xf32>
    %66 = vector.extract_strided_slice %57 {offsets = [0, 128], sizes = [8, 128], strides = [1, 1]} : vector<8x512xf32> to vector<8x128xf32>
    %cst_32 = arith.constant 5.000000e-01 : f32
    %67 = vector.broadcast %cst_32 : f32 to vector<8x128xf32>
    %68 = arith.mulf %67, %66 : vector<8x128xf32>
    %69 = math.tanh %68 : vector<8x128xf32>
    %cst_33 = arith.constant 5.000000e-01 : f32
    %70 = vector.broadcast %cst_33 : f32 to vector<8x128xf32>
    %71 = arith.mulf %70, %69 : vector<8x128xf32>
    %cst_34 = arith.constant 5.000000e-01 : f32
    %72 = vector.broadcast %cst_34 : f32 to vector<8x128xf32>
    %73 = arith.addf %71, %72 : vector<8x128xf32>
    %74 = vector.extract_strided_slice %57 {offsets = [0, 256], sizes = [8, 128], strides = [1, 1]} : vector<8x512xf32> to vector<8x128xf32>
    %75 = math.tanh %74 : vector<8x128xf32>
    %76 = vector.extract_strided_slice %57 {offsets = [0, 384], sizes = [8, 128], strides = [1, 1]} : vector<8x512xf32> to vector<8x128xf32>
    %cst_35 = arith.constant 5.000000e-01 : f32
    %77 = vector.broadcast %cst_35 : f32 to vector<8x128xf32>
    %78 = arith.mulf %77, %76 : vector<8x128xf32>
    %79 = math.tanh %78 : vector<8x128xf32>
    %cst_36 = arith.constant 5.000000e-01 : f32
    %80 = vector.broadcast %cst_36 : f32 to vector<8x128xf32>
    %81 = arith.mulf %80, %79 : vector<8x128xf32>
    %cst_37 = arith.constant 5.000000e-01 : f32
    %82 = vector.broadcast %cst_37 : f32 to vector<8x128xf32>
    %83 = arith.addf %81, %82 : vector<8x128xf32>
    %84 = arith.mulf %73, %7 : vector<8x128xf32>
    %85 = arith.mulf %65, %75 : vector<8x128xf32>
    %86 = arith.addf %84, %85 : vector<8x128xf32>
    %87 = math.tanh %86 : vector<8x128xf32>
    %88 = arith.mulf %83, %87 : vector<8x128xf32>
    %c1_i32 = arith.constant 1 : i32
    %c8_i32_38 = arith.constant 8 : i32
    %89 = arith.muli %c1_i32, %c8_i32_38 : i32
    %90 = tpu.assume_multiple %89, 8 : i32
    %91 = arith.index_cast %90 : i32 to index
    %c0_39 = arith.constant 0 : index
    %92 = vector.load %arg14[%91, %c0_39] : memref<64x512xf32, #tpu.memory_space<vmem>>, vector<8x512xf32>
    %93 = arith.truncf %49 : vector<8x128xf32> to vector<8x128xbf16>
    %c0_40 = arith.constant 0 : index
    %c0_41 = arith.constant 0 : index
    %94 = vector.load %arg2[%c0_40, %c0_41] : memref<128x512xbf16, #tpu.memory_space<vmem>>, vector<128x512xbf16>
    %cst_42 = arith.constant dense<0.000000e+00> : vector<8x512xf32>
    %95 = tpu.matmul %93, %94, %cst_42 {dimension_numbers = #tpu.dot_dimension_numbers<[1], [0], [0], [1], [0, 0, 1, 1], [], []>} : vector<8x128xbf16>, vector<128x512xbf16>, vector<8x512xf32> -> vector<8x512xf32>
    %96 = arith.addf %92, %95 : vector<8x512xf32>
    %97 = vector.extract_strided_slice %96 {offsets = [0, 0], sizes = [8, 128], strides = [1, 1]} : vector<8x512xf32> to vector<8x128xf32>
    %cst_43 = arith.constant 5.000000e-01 : f32
    %98 = vector.broadcast %cst_43 : f32 to vector<8x128xf32>
    %99 = arith.mulf %98, %97 : vector<8x128xf32>
    %100 = math.tanh %99 : vector<8x128xf32>
    %cst_44 = arith.constant 5.000000e-01 : f32
    %101 = vector.broadcast %cst_44 : f32 to vector<8x128xf32>
    %102 = arith.mulf %101, %100 : vector<8x128xf32>
    %cst_45 = arith.constant 5.000000e-01 : f32
    %103 = vector.broadcast %cst_45 : f32 to vector<8x128xf32>
    %104 = arith.addf %102, %103 : vector<8x128xf32>
    %105 = vector.extract_strided_slice %96 {offsets = [0, 128], sizes = [8, 128], strides = [1, 1]} : vector<8x512xf32> to vector<8x128xf32>
    %cst_46 = arith.constant 5.000000e-01 : f32
    %106 = vector.broadcast %cst_46 : f32 to vector<8x128xf32>
    %107 = arith.mulf %106, %105 : vector<8x128xf32>
    %108 = math.tanh %107 : vector<8x128xf32>
    %cst_47 = arith.constant 5.000000e-01 : f32
    %109 = vector.broadcast %cst_47 : f32 to vector<8x128xf32>
    %110 = arith.mulf %109, %108 : vector<8x128xf32>
    %cst_48 = arith.constant 5.000000e-01 : f32
    %111 = vector.broadcast %cst_48 : f32 to vector<8x128xf32>
    %112 = arith.addf %110, %111 : vector<8x128xf32>
    %113 = vector.extract_strided_slice %96 {offsets = [0, 256], sizes = [8, 128], strides = [1, 1]} : vector<8x512xf32> to vector<8x128xf32>
    %114 = math.tanh %113 : vector<8x128xf32>
    %115 = vector.extract_strided_slice %96 {offsets = [0, 384], sizes = [8, 128], strides = [1, 1]} : vector<8x512xf32> to vector<8x128xf32>
    %cst_49 = arith.constant 5.000000e-01 : f32
    %116 = vector.broadcast %cst_49 : f32 to vector<8x128xf32>
    %117 = arith.mulf %116, %115 : vector<8x128xf32>
    %118 = math.tanh %117 : vector<8x128xf32>
    %cst_50 = arith.constant 5.000000e-01 : f32
    %119 = vector.broadcast %cst_50 : f32 to vector<8x128xf32>
    %120 = arith.mulf %119, %118 : vector<8x128xf32>
    %cst_51 = arith.constant 5.000000e-01 : f32
    %121 = vector.broadcast %cst_51 : f32 to vector<8x128xf32>
    %122 = arith.addf %120, %121 : vector<8x128xf32>
    %123 = arith.mulf %112, %47 : vector<8x128xf32>
    %124 = arith.mulf %104, %114 : vector<8x128xf32>
    %125 = arith.addf %123, %124 : vector<8x128xf32>
    %126 = math.tanh %125 : vector<8x128xf32>
    %127 = arith.mulf %122, %126 : vector<8x128xf32>
    %128 = arith.truncf %127 : vector<8x128xf32> to vector<8x128xbf16>
    %c0_52 = arith.constant 0 : index
    %c0_53 = arith.constant 0 : index
    %129 = vector.load %arg4[%c0_52, %c0_53] : memref<128x512xbf16, #tpu.memory_space<vmem>>, vector<128x512xbf16>
    %cst_54 = arith.constant dense<0.000000e+00> : vector<8x512xf32>
    %130 = tpu.matmul %128, %129, %cst_54 {dimension_numbers = #tpu.dot_dimension_numbers<[1], [0], [0], [1], [0, 0, 1, 1], [], []>} : vector<8x128xbf16>, vector<128x512xbf16>, vector<8x512xf32> -> vector<8x512xf32>
    %131 = arith.truncf %88 : vector<8x128xf32> to vector<8x128xbf16>
    %c0_55 = arith.constant 0 : index
    %c0_56 = arith.constant 0 : index
    %132 = vector.load %arg5[%c0_55, %c0_56] : memref<128x512xbf16, #tpu.memory_space<vmem>>, vector<128x512xbf16>
    %cst_57 = arith.constant dense<0.000000e+00> : vector<8x512xf32>
    %133 = tpu.matmul %131, %132, %cst_57 {dimension_numbers = #tpu.dot_dimension_numbers<[1], [0], [0], [1], [0, 0, 1, 1], [], []>} : vector<8x128xbf16>, vector<128x512xbf16>, vector<8x512xf32> -> vector<8x512xf32>
    %134 = arith.addf %130, %133 : vector<8x512xf32>
    %135 = arith.addf %134, %10 : vector<8x512xf32>
    %136 = vector.extract_strided_slice %135 {offsets = [0, 0], sizes = [8, 128], strides = [1, 1]} : vector<8x512xf32> to vector<8x128xf32>
    %cst_58 = arith.constant 5.000000e-01 : f32
    %137 = vector.broadcast %cst_58 : f32 to vector<8x128xf32>
    %138 = arith.mulf %137, %136 : vector<8x128xf32>
    %139 = math.tanh %138 : vector<8x128xf32>
    %cst_59 = arith.constant 5.000000e-01 : f32
    %140 = vector.broadcast %cst_59 : f32 to vector<8x128xf32>
    %141 = arith.mulf %140, %139 : vector<8x128xf32>
    %cst_60 = arith.constant 5.000000e-01 : f32
    %142 = vector.broadcast %cst_60 : f32 to vector<8x128xf32>
    %143 = arith.addf %141, %142 : vector<8x128xf32>
    %144 = vector.extract_strided_slice %135 {offsets = [0, 128], sizes = [8, 128], strides = [1, 1]} : vector<8x512xf32> to vector<8x128xf32>
    %cst_61 = arith.constant 5.000000e-01 : f32
    %145 = vector.broadcast %cst_61 : f32 to vector<8x128xf32>
    %146 = arith.mulf %145, %144 : vector<8x128xf32>
    %147 = math.tanh %146 : vector<8x128xf32>
    %cst_62 = arith.constant 5.000000e-01 : f32
    %148 = vector.broadcast %cst_62 : f32 to vector<8x128xf32>
    %149 = arith.mulf %148, %147 : vector<8x128xf32>
    %cst_63 = arith.constant 5.000000e-01 : f32
    %150 = vector.broadcast %cst_63 : f32 to vector<8x128xf32>
    %151 = arith.addf %149, %150 : vector<8x128xf32>
    %152 = vector.extract_strided_slice %135 {offsets = [0, 256], sizes = [8, 128], strides = [1, 1]} : vector<8x512xf32> to vector<8x128xf32>
    %153 = math.tanh %152 : vector<8x128xf32>
    %154 = vector.extract_strided_slice %135 {offsets = [0, 384], sizes = [8, 128], strides = [1, 1]} : vector<8x512xf32> to vector<8x128xf32>
    %cst_64 = arith.constant 5.000000e-01 : f32
    %155 = vector.broadcast %cst_64 : f32 to vector<8x128xf32>
    %156 = arith.mulf %155, %154 : vector<8x128xf32>
    %157 = math.tanh %156 : vector<8x128xf32>
    %cst_65 = arith.constant 5.000000e-01 : f32
    %158 = vector.broadcast %cst_65 : f32 to vector<8x128xf32>
    %159 = arith.mulf %158, %157 : vector<8x128xf32>
    %cst_66 = arith.constant 5.000000e-01 : f32
    %160 = vector.broadcast %cst_66 : f32 to vector<8x128xf32>
    %161 = arith.addf %159, %160 : vector<8x128xf32>
    %162 = arith.mulf %151, %86 : vector<8x128xf32>
    %163 = arith.mulf %143, %153 : vector<8x128xf32>
    %164 = arith.addf %162, %163 : vector<8x128xf32>
    %165 = math.tanh %164 : vector<8x128xf32>
    %166 = arith.mulf %161, %165 : vector<8x128xf32>
    %c2_i32 = arith.constant 2 : i32
    %c8_i32_67 = arith.constant 8 : i32
    %167 = arith.muli %c2_i32, %c8_i32_67 : i32
    %168 = tpu.assume_multiple %167, 8 : i32
    %169 = arith.index_cast %168 : i32 to index
    %c0_68 = arith.constant 0 : index
    %170 = vector.load %arg14[%169, %c0_68] : memref<64x512xf32, #tpu.memory_space<vmem>>, vector<8x512xf32>
    %171 = arith.truncf %127 : vector<8x128xf32> to vector<8x128xbf16>
    %c0_69 = arith.constant 0 : index
    %c0_70 = arith.constant 0 : index
    %172 = vector.load %arg2[%c0_69, %c0_70] : memref<128x512xbf16, #tpu.memory_space<vmem>>, vector<128x512xbf16>
    %cst_71 = arith.constant dense<0.000000e+00> : vector<8x512xf32>
    %173 = tpu.matmul %171, %172, %cst_71 {dimension_numbers = #tpu.dot_dimension_numbers<[1], [0], [0], [1], [0, 0, 1, 1], [], []>} : vector<8x128xbf16>, vector<128x512xbf16>, vector<8x512xf32> -> vector<8x512xf32>
    %174 = arith.addf %170, %173 : vector<8x512xf32>
    %175 = vector.extract_strided_slice %174 {offsets = [0, 0], sizes = [8, 128], strides = [1, 1]} : vector<8x512xf32> to vector<8x128xf32>
    %cst_72 = arith.constant 5.000000e-01 : f32
    %176 = vector.broadcast %cst_72 : f32 to vector<8x128xf32>
    %177 = arith.mulf %176, %175 : vector<8x128xf32>
    %178 = math.tanh %177 : vector<8x128xf32>
    %cst_73 = arith.constant 5.000000e-01 : f32
    %179 = vector.broadcast %cst_73 : f32 to vector<8x128xf32>
    %180 = arith.mulf %179, %178 : vector<8x128xf32>
    %cst_74 = arith.constant 5.000000e-01 : f32
    %181 = vector.broadcast %cst_74 : f32 to vector<8x128xf32>
    %182 = arith.addf %180, %181 : vector<8x128xf32>
    %183 = vector.extract_strided_slice %174 {offsets = [0, 128], sizes = [8, 128], strides = [1, 1]} : vector<8x512xf32> to vector<8x128xf32>
    %cst_75 = arith.constant 5.000000e-01 : f32
    %184 = vector.broadcast %cst_75 : f32 to vector<8x128xf32>
    %185 = arith.mulf %184, %183 : vector<8x128xf32>
    %186 = math.tanh %185 : vector<8x128xf32>
    %cst_76 = arith.constant 5.000000e-01 : f32
    %187 = vector.broadcast %cst_76 : f32 to vector<8x128xf32>
    %188 = arith.mulf %187, %186 : vector<8x128xf32>
    %cst_77 = arith.constant 5.000000e-01 : f32
    %189 = vector.broadcast %cst_77 : f32 to vector<8x128xf32>
    %190 = arith.addf %188, %189 : vector<8x128xf32>
    %191 = vector.extract_strided_slice %174 {offsets = [0, 256], sizes = [8, 128], strides = [1, 1]} : vector<8x512xf32> to vector<8x128xf32>
    %192 = math.tanh %191 : vector<8x128xf32>
    %193 = vector.extract_strided_slice %174 {offsets = [0, 384], sizes = [8, 128], strides = [1, 1]} : vector<8x512xf32> to vector<8x128xf32>
    %cst_78 = arith.constant 5.000000e-01 : f32
    %194 = vector.broadcast %cst_78 : f32 to vector<8x128xf32>
    %195 = arith.mulf %194, %193 : vector<8x128xf32>
    %196 = math.tanh %195 : vector<8x128xf32>
    %cst_79 = arith.constant 5.000000e-01 : f32
    %197 = vector.broadcast %cst_79 : f32 to vector<8x128xf32>
    %198 = arith.mulf %197, %196 : vector<8x128xf32>
    %cst_80 = arith.constant 5.000000e-01 : f32
    %199 = vector.broadcast %cst_80 : f32 to vector<8x128xf32>
    %200 = arith.addf %198, %199 : vector<8x128xf32>
    %201 = arith.mulf %190, %125 : vector<8x128xf32>
    %202 = arith.mulf %182, %192 : vector<8x128xf32>
    %203 = arith.addf %201, %202 : vector<8x128xf32>
    %204 = math.tanh %203 : vector<8x128xf32>
    %205 = arith.mulf %200, %204 : vector<8x128xf32>
    %206 = arith.truncf %205 : vector<8x128xf32> to vector<8x128xbf16>
    %c0_81 = arith.constant 0 : index
    %c0_82 = arith.constant 0 : index
    %207 = vector.load %arg4[%c0_81, %c0_82] : memref<128x512xbf16, #tpu.memory_space<vmem>>, vector<128x512xbf16>
    %cst_83 = arith.constant dense<0.000000e+00> : vector<8x512xf32>
    %208 = tpu.matmul %206, %207, %cst_83 {dimension_numbers = #tpu.dot_dimension_numbers<[1], [0], [0], [1], [0, 0, 1, 1], [], []>} : vector<8x128xbf16>, vector<128x512xbf16>, vector<8x512xf32> -> vector<8x512xf32>
    %209 = arith.truncf %166 : vector<8x128xf32> to vector<8x128xbf16>
    %c0_84 = arith.constant 0 : index
    %c0_85 = arith.constant 0 : index
    %210 = vector.load %arg5[%c0_84, %c0_85] : memref<128x512xbf16, #tpu.memory_space<vmem>>, vector<128x512xbf16>
    %cst_86 = arith.constant dense<0.000000e+00> : vector<8x512xf32>
    %211 = tpu.matmul %209, %210, %cst_86 {dimension_numbers = #tpu.dot_dimension_numbers<[1], [0], [0], [1], [0, 0, 1, 1], [], []>} : vector<8x128xbf16>, vector<128x512xbf16>, vector<8x512xf32> -> vector<8x512xf32>
    %212 = arith.addf %208, %211 : vector<8x512xf32>
    %213 = arith.addf %212, %10 : vector<8x512xf32>
    %214 = vector.extract_strided_slice %213 {offsets = [0, 0], sizes = [8, 128], strides = [1, 1]} : vector<8x512xf32> to vector<8x128xf32>
    %cst_87 = arith.constant 5.000000e-01 : f32
    %215 = vector.broadcast %cst_87 : f32 to vector<8x128xf32>
    %216 = arith.mulf %215, %214 : vector<8x128xf32>
    %217 = math.tanh %216 : vector<8x128xf32>
    %cst_88 = arith.constant 5.000000e-01 : f32
    %218 = vector.broadcast %cst_88 : f32 to vector<8x128xf32>
    %219 = arith.mulf %218, %217 : vector<8x128xf32>
    %cst_89 = arith.constant 5.000000e-01 : f32
    %220 = vector.broadcast %cst_89 : f32 to vector<8x128xf32>
    %221 = arith.addf %219, %220 : vector<8x128xf32>
    %222 = vector.extract_strided_slice %213 {offsets = [0, 128], sizes = [8, 128], strides = [1, 1]} : vector<8x512xf32> to vector<8x128xf32>
    %cst_90 = arith.constant 5.000000e-01 : f32
    %223 = vector.broadcast %cst_90 : f32 to vector<8x128xf32>
    %224 = arith.mulf %223, %222 : vector<8x128xf32>
    %225 = math.tanh %224 : vector<8x128xf32>
    %cst_91 = arith.constant 5.000000e-01 : f32
    %226 = vector.broadcast %cst_91 : f32 to vector<8x128xf32>
    %227 = arith.mulf %226, %225 : vector<8x128xf32>
    %cst_92 = arith.constant 5.000000e-01 : f32
    %228 = vector.broadcast %cst_92 : f32 to vector<8x128xf32>
    %229 = arith.addf %227, %228 : vector<8x128xf32>
    %230 = vector.extract_strided_slice %213 {offsets = [0, 256], sizes = [8, 128], strides = [1, 1]} : vector<8x512xf32> to vector<8x128xf32>
    %231 = math.tanh %230 : vector<8x128xf32>
    %232 = vector.extract_strided_slice %213 {offsets = [0, 384], sizes = [8, 128], strides = [1, 1]} : vector<8x512xf32> to vector<8x128xf32>
    %cst_93 = arith.constant 5.000000e-01 : f32
    %233 = vector.broadcast %cst_93 : f32 to vector<8x128xf32>
    %234 = arith.mulf %233, %232 : vector<8x128xf32>
    %235 = math.tanh %234 : vector<8x128xf32>
    %cst_94 = arith.constant 5.000000e-01 : f32
    %236 = vector.broadcast %cst_94 : f32 to vector<8x128xf32>
    %237 = arith.mulf %236, %235 : vector<8x128xf32>
    %cst_95 = arith.constant 5.000000e-01 : f32
    %238 = vector.broadcast %cst_95 : f32 to vector<8x128xf32>
    %239 = arith.addf %237, %238 : vector<8x128xf32>
    %240 = arith.mulf %229, %164 : vector<8x128xf32>
    %241 = arith.mulf %221, %231 : vector<8x128xf32>
    %242 = arith.addf %240, %241 : vector<8x128xf32>
    %243 = math.tanh %242 : vector<8x128xf32>
    %244 = arith.mulf %239, %243 : vector<8x128xf32>
    %c3_i32 = arith.constant 3 : i32
    %c8_i32_96 = arith.constant 8 : i32
    %245 = arith.muli %c3_i32, %c8_i32_96 : i32
    %246 = tpu.assume_multiple %245, 8 : i32
    %247 = arith.index_cast %246 : i32 to index
    %c0_97 = arith.constant 0 : index
    %248 = vector.load %arg14[%247, %c0_97] : memref<64x512xf32, #tpu.memory_space<vmem>>, vector<8x512xf32>
    %249 = arith.truncf %205 : vector<8x128xf32> to vector<8x128xbf16>
    %c0_98 = arith.constant 0 : index
    %c0_99 = arith.constant 0 : index
    %250 = vector.load %arg2[%c0_98, %c0_99] : memref<128x512xbf16, #tpu.memory_space<vmem>>, vector<128x512xbf16>
    %cst_100 = arith.constant dense<0.000000e+00> : vector<8x512xf32>
    %251 = tpu.matmul %249, %250, %cst_100 {dimension_numbers = #tpu.dot_dimension_numbers<[1], [0], [0], [1], [0, 0, 1, 1], [], []>} : vector<8x128xbf16>, vector<128x512xbf16>, vector<8x512xf32> -> vector<8x512xf32>
    %252 = arith.addf %248, %251 : vector<8x512xf32>
    %253 = vector.extract_strided_slice %252 {offsets = [0, 0], sizes = [8, 128], strides = [1, 1]} : vector<8x512xf32> to vector<8x128xf32>
    %cst_101 = arith.constant 5.000000e-01 : f32
    %254 = vector.broadcast %cst_101 : f32 to vector<8x128xf32>
    %255 = arith.mulf %254, %253 : vector<8x128xf32>
    %256 = math.tanh %255 : vector<8x128xf32>
    %cst_102 = arith.constant 5.000000e-01 : f32
    %257 = vector.broadcast %cst_102 : f32 to vector<8x128xf32>
    %258 = arith.mulf %257, %256 : vector<8x128xf32>
    %cst_103 = arith.constant 5.000000e-01 : f32
    %259 = vector.broadcast %cst_103 : f32 to vector<8x128xf32>
    %260 = arith.addf %258, %259 : vector<8x128xf32>
    %261 = vector.extract_strided_slice %252 {offsets = [0, 128], sizes = [8, 128], strides = [1, 1]} : vector<8x512xf32> to vector<8x128xf32>
    %cst_104 = arith.constant 5.000000e-01 : f32
    %262 = vector.broadcast %cst_104 : f32 to vector<8x128xf32>
    %263 = arith.mulf %262, %261 : vector<8x128xf32>
    %264 = math.tanh %263 : vector<8x128xf32>
    %cst_105 = arith.constant 5.000000e-01 : f32
    %265 = vector.broadcast %cst_105 : f32 to vector<8x128xf32>
    %266 = arith.mulf %265, %264 : vector<8x128xf32>
    %cst_106 = arith.constant 5.000000e-01 : f32
    %267 = vector.broadcast %cst_106 : f32 to vector<8x128xf32>
    %268 = arith.addf %266, %267 : vector<8x128xf32>
    %269 = vector.extract_strided_slice %252 {offsets = [0, 256], sizes = [8, 128], strides = [1, 1]} : vector<8x512xf32> to vector<8x128xf32>
    %270 = math.tanh %269 : vector<8x128xf32>
    %271 = vector.extract_strided_slice %252 {offsets = [0, 384], sizes = [8, 128], strides = [1, 1]} : vector<8x512xf32> to vector<8x128xf32>
    %cst_107 = arith.constant 5.000000e-01 : f32
    %272 = vector.broadcast %cst_107 : f32 to vector<8x128xf32>
    %273 = arith.mulf %272, %271 : vector<8x128xf32>
    %274 = math.tanh %273 : vector<8x128xf32>
    %cst_108 = arith.constant 5.000000e-01 : f32
    %275 = vector.broadcast %cst_108 : f32 to vector<8x128xf32>
    %276 = arith.mulf %275, %274 : vector<8x128xf32>
    %cst_109 = arith.constant 5.000000e-01 : f32
    %277 = vector.broadcast %cst_109 : f32 to vector<8x128xf32>
    %278 = arith.addf %276, %277 : vector<8x128xf32>
    %279 = arith.mulf %268, %203 : vector<8x128xf32>
    %280 = arith.mulf %260, %270 : vector<8x128xf32>
    %281 = arith.addf %279, %280 : vector<8x128xf32>
    %282 = math.tanh %281 : vector<8x128xf32>
    %283 = arith.mulf %278, %282 : vector<8x128xf32>
    %284 = arith.truncf %283 : vector<8x128xf32> to vector<8x128xbf16>
    %c0_110 = arith.constant 0 : index
    %c0_111 = arith.constant 0 : index
    %285 = vector.load %arg4[%c0_110, %c0_111] : memref<128x512xbf16, #tpu.memory_space<vmem>>, vector<128x512xbf16>
    %cst_112 = arith.constant dense<0.000000e+00> : vector<8x512xf32>
    %286 = tpu.matmul %284, %285, %cst_112 {dimension_numbers = #tpu.dot_dimension_numbers<[1], [0], [0], [1], [0, 0, 1, 1], [], []>} : vector<8x128xbf16>, vector<128x512xbf16>, vector<8x512xf32> -> vector<8x512xf32>
    %287 = arith.truncf %244 : vector<8x128xf32> to vector<8x128xbf16>
    %c0_113 = arith.constant 0 : index
    %c0_114 = arith.constant 0 : index
    %288 = vector.load %arg5[%c0_113, %c0_114] : memref<128x512xbf16, #tpu.memory_space<vmem>>, vector<128x512xbf16>
    %cst_115 = arith.constant dense<0.000000e+00> : vector<8x512xf32>
    %289 = tpu.matmul %287, %288, %cst_115 {dimension_numbers = #tpu.dot_dimension_numbers<[1], [0], [0], [1], [0, 0, 1, 1], [], []>} : vector<8x128xbf16>, vector<128x512xbf16>, vector<8x512xf32> -> vector<8x512xf32>
    %290 = arith.addf %286, %289 : vector<8x512xf32>
    %291 = arith.addf %290, %10 : vector<8x512xf32>
    %292 = vector.extract_strided_slice %291 {offsets = [0, 0], sizes = [8, 128], strides = [1, 1]} : vector<8x512xf32> to vector<8x128xf32>
    %cst_116 = arith.constant 5.000000e-01 : f32
    %293 = vector.broadcast %cst_116 : f32 to vector<8x128xf32>
    %294 = arith.mulf %293, %292 : vector<8x128xf32>
    %295 = math.tanh %294 : vector<8x128xf32>
    %cst_117 = arith.constant 5.000000e-01 : f32
    %296 = vector.broadcast %cst_117 : f32 to vector<8x128xf32>
    %297 = arith.mulf %296, %295 : vector<8x128xf32>
    %cst_118 = arith.constant 5.000000e-01 : f32
    %298 = vector.broadcast %cst_118 : f32 to vector<8x128xf32>
    %299 = arith.addf %297, %298 : vector<8x128xf32>
    %300 = vector.extract_strided_slice %291 {offsets = [0, 128], sizes = [8, 128], strides = [1, 1]} : vector<8x512xf32> to vector<8x128xf32>
    %cst_119 = arith.constant 5.000000e-01 : f32
    %301 = vector.broadcast %cst_119 : f32 to vector<8x128xf32>
    %302 = arith.mulf %301, %300 : vector<8x128xf32>
    %303 = math.tanh %302 : vector<8x128xf32>
    %cst_120 = arith.constant 5.000000e-01 : f32
    %304 = vector.broadcast %cst_120 : f32 to vector<8x128xf32>
    %305 = arith.mulf %304, %303 : vector<8x128xf32>
    %cst_121 = arith.constant 5.000000e-01 : f32
    %306 = vector.broadcast %cst_121 : f32 to vector<8x128xf32>
    %307 = arith.addf %305, %306 : vector<8x128xf32>
    %308 = vector.extract_strided_slice %291 {offsets = [0, 256], sizes = [8, 128], strides = [1, 1]} : vector<8x512xf32> to vector<8x128xf32>
    %309 = math.tanh %308 : vector<8x128xf32>
    %310 = vector.extract_strided_slice %291 {offsets = [0, 384], sizes = [8, 128], strides = [1, 1]} : vector<8x512xf32> to vector<8x128xf32>
    %cst_122 = arith.constant 5.000000e-01 : f32
    %311 = vector.broadcast %cst_122 : f32 to vector<8x128xf32>
    %312 = arith.mulf %311, %310 : vector<8x128xf32>
    %313 = math.tanh %312 : vector<8x128xf32>
    %cst_123 = arith.constant 5.000000e-01 : f32
    %314 = vector.broadcast %cst_123 : f32 to vector<8x128xf32>
    %315 = arith.mulf %314, %313 : vector<8x128xf32>
    %cst_124 = arith.constant 5.000000e-01 : f32
    %316 = vector.broadcast %cst_124 : f32 to vector<8x128xf32>
    %317 = arith.addf %315, %316 : vector<8x128xf32>
    %318 = arith.mulf %307, %242 : vector<8x128xf32>
    %319 = arith.mulf %299, %309 : vector<8x128xf32>
    %320 = arith.addf %318, %319 : vector<8x128xf32>
    %321 = math.tanh %320 : vector<8x128xf32>
    %322 = arith.mulf %317, %321 : vector<8x128xf32>
    %c4_i32 = arith.constant 4 : i32
    %c8_i32_125 = arith.constant 8 : i32
    %323 = arith.muli %c4_i32, %c8_i32_125 : i32
    %324 = tpu.assume_multiple %323, 8 : i32
    %325 = arith.index_cast %324 : i32 to index
    %c0_126 = arith.constant 0 : index
    %326 = vector.load %arg14[%325, %c0_126] : memref<64x512xf32, #tpu.memory_space<vmem>>, vector<8x512xf32>
    %327 = arith.truncf %283 : vector<8x128xf32> to vector<8x128xbf16>
    %c0_127 = arith.constant 0 : index
    %c0_128 = arith.constant 0 : index
    %328 = vector.load %arg2[%c0_127, %c0_128] : memref<128x512xbf16, #tpu.memory_space<vmem>>, vector<128x512xbf16>
    %cst_129 = arith.constant dense<0.000000e+00> : vector<8x512xf32>
    %329 = tpu.matmul %327, %328, %cst_129 {dimension_numbers = #tpu.dot_dimension_numbers<[1], [0], [0], [1], [0, 0, 1, 1], [], []>} : vector<8x128xbf16>, vector<128x512xbf16>, vector<8x512xf32> -> vector<8x512xf32>
    %330 = arith.addf %326, %329 : vector<8x512xf32>
    %331 = vector.extract_strided_slice %330 {offsets = [0, 0], sizes = [8, 128], strides = [1, 1]} : vector<8x512xf32> to vector<8x128xf32>
    %cst_130 = arith.constant 5.000000e-01 : f32
    %332 = vector.broadcast %cst_130 : f32 to vector<8x128xf32>
    %333 = arith.mulf %332, %331 : vector<8x128xf32>
    %334 = math.tanh %333 : vector<8x128xf32>
    %cst_131 = arith.constant 5.000000e-01 : f32
    %335 = vector.broadcast %cst_131 : f32 to vector<8x128xf32>
    %336 = arith.mulf %335, %334 : vector<8x128xf32>
    %cst_132 = arith.constant 5.000000e-01 : f32
    %337 = vector.broadcast %cst_132 : f32 to vector<8x128xf32>
    %338 = arith.addf %336, %337 : vector<8x128xf32>
    %339 = vector.extract_strided_slice %330 {offsets = [0, 128], sizes = [8, 128], strides = [1, 1]} : vector<8x512xf32> to vector<8x128xf32>
    %cst_133 = arith.constant 5.000000e-01 : f32
    %340 = vector.broadcast %cst_133 : f32 to vector<8x128xf32>
    %341 = arith.mulf %340, %339 : vector<8x128xf32>
    %342 = math.tanh %341 : vector<8x128xf32>
    %cst_134 = arith.constant 5.000000e-01 : f32
    %343 = vector.broadcast %cst_134 : f32 to vector<8x128xf32>
    %344 = arith.mulf %343, %342 : vector<8x128xf32>
    %cst_135 = arith.constant 5.000000e-01 : f32
    %345 = vector.broadcast %cst_135 : f32 to vector<8x128xf32>
    %346 = arith.addf %344, %345 : vector<8x128xf32>
    %347 = vector.extract_strided_slice %330 {offsets = [0, 256], sizes = [8, 128], strides = [1, 1]} : vector<8x512xf32> to vector<8x128xf32>
    %348 = math.tanh %347 : vector<8x128xf32>
    %349 = vector.extract_strided_slice %330 {offsets = [0, 384], sizes = [8, 128], strides = [1, 1]} : vector<8x512xf32> to vector<8x128xf32>
    %cst_136 = arith.constant 5.000000e-01 : f32
    %350 = vector.broadcast %cst_136 : f32 to vector<8x128xf32>
    %351 = arith.mulf %350, %349 : vector<8x128xf32>
    %352 = math.tanh %351 : vector<8x128xf32>
    %cst_137 = arith.constant 5.000000e-01 : f32
    %353 = vector.broadcast %cst_137 : f32 to vector<8x128xf32>
    %354 = arith.mulf %353, %352 : vector<8x128xf32>
    %cst_138 = arith.constant 5.000000e-01 : f32
    %355 = vector.broadcast %cst_138 : f32 to vector<8x128xf32>
    %356 = arith.addf %354, %355 : vector<8x128xf32>
    %357 = arith.mulf %346, %281 : vector<8x128xf32>
    %358 = arith.mulf %338, %348 : vector<8x128xf32>
    %359 = arith.addf %357, %358 : vector<8x128xf32>
    %360 = math.tanh %359 : vector<8x128xf32>
    %361 = arith.mulf %356, %360 : vector<8x128xf32>
    %362 = arith.truncf %361 : vector<8x128xf32> to vector<8x128xbf16>
    %c0_139 = arith.constant 0 : index
    %c0_140 = arith.constant 0 : index
    %363 = vector.load %arg4[%c0_139, %c0_140] : memref<128x512xbf16, #tpu.memory_space<vmem>>, vector<128x512xbf16>
    %cst_141 = arith.constant dense<0.000000e+00> : vector<8x512xf32>
    %364 = tpu.matmul %362, %363, %cst_141 {dimension_numbers = #tpu.dot_dimension_numbers<[1], [0], [0], [1], [0, 0, 1, 1], [], []>} : vector<8x128xbf16>, vector<128x512xbf16>, vector<8x512xf32> -> vector<8x512xf32>
    %365 = arith.truncf %322 : vector<8x128xf32> to vector<8x128xbf16>
    %c0_142 = arith.constant 0 : index
    %c0_143 = arith.constant 0 : index
    %366 = vector.load %arg5[%c0_142, %c0_143] : memref<128x512xbf16, #tpu.memory_space<vmem>>, vector<128x512xbf16>
    %cst_144 = arith.constant dense<0.000000e+00> : vector<8x512xf32>
    %367 = tpu.matmul %365, %366, %cst_144 {dimension_numbers = #tpu.dot_dimension_numbers<[1], [0], [0], [1], [0, 0, 1, 1], [], []>} : vector<8x128xbf16>, vector<128x512xbf16>, vector<8x512xf32> -> vector<8x512xf32>
    %368 = arith.addf %364, %367 : vector<8x512xf32>
    %369 = arith.addf %368, %10 : vector<8x512xf32>
    %370 = vector.extract_strided_slice %369 {offsets = [0, 0], sizes = [8, 128], strides = [1, 1]} : vector<8x512xf32> to vector<8x128xf32>
    %cst_145 = arith.constant 5.000000e-01 : f32
    %371 = vector.broadcast %cst_145 : f32 to vector<8x128xf32>
    %372 = arith.mulf %371, %370 : vector<8x128xf32>
    %373 = math.tanh %372 : vector<8x128xf32>
    %cst_146 = arith.constant 5.000000e-01 : f32
    %374 = vector.broadcast %cst_146 : f32 to vector<8x128xf32>
    %375 = arith.mulf %374, %373 : vector<8x128xf32>
    %cst_147 = arith.constant 5.000000e-01 : f32
    %376 = vector.broadcast %cst_147 : f32 to vector<8x128xf32>
    %377 = arith.addf %375, %376 : vector<8x128xf32>
    %378 = vector.extract_strided_slice %369 {offsets = [0, 128], sizes = [8, 128], strides = [1, 1]} : vector<8x512xf32> to vector<8x128xf32>
    %cst_148 = arith.constant 5.000000e-01 : f32
    %379 = vector.broadcast %cst_148 : f32 to vector<8x128xf32>
    %380 = arith.mulf %379, %378 : vector<8x128xf32>
    %381 = math.tanh %380 : vector<8x128xf32>
    %cst_149 = arith.constant 5.000000e-01 : f32
    %382 = vector.broadcast %cst_149 : f32 to vector<8x128xf32>
    %383 = arith.mulf %382, %381 : vector<8x128xf32>
    %cst_150 = arith.constant 5.000000e-01 : f32
    %384 = vector.broadcast %cst_150 : f32 to vector<8x128xf32>
    %385 = arith.addf %383, %384 : vector<8x128xf32>
    %386 = vector.extract_strided_slice %369 {offsets = [0, 256], sizes = [8, 128], strides = [1, 1]} : vector<8x512xf32> to vector<8x128xf32>
    %387 = math.tanh %386 : vector<8x128xf32>
    %388 = vector.extract_strided_slice %369 {offsets = [0, 384], sizes = [8, 128], strides = [1, 1]} : vector<8x512xf32> to vector<8x128xf32>
    %cst_151 = arith.constant 5.000000e-01 : f32
    %389 = vector.broadcast %cst_151 : f32 to vector<8x128xf32>
    %390 = arith.mulf %389, %388 : vector<8x128xf32>
    %391 = math.tanh %390 : vector<8x128xf32>
    %cst_152 = arith.constant 5.000000e-01 : f32
    %392 = vector.broadcast %cst_152 : f32 to vector<8x128xf32>
    %393 = arith.mulf %392, %391 : vector<8x128xf32>
    %cst_153 = arith.constant 5.000000e-01 : f32
    %394 = vector.broadcast %cst_153 : f32 to vector<8x128xf32>
    %395 = arith.addf %393, %394 : vector<8x128xf32>
    %396 = arith.mulf %385, %320 : vector<8x128xf32>
    %397 = arith.mulf %377, %387 : vector<8x128xf32>
    %398 = arith.addf %396, %397 : vector<8x128xf32>
    %399 = math.tanh %398 : vector<8x128xf32>
    %400 = arith.mulf %395, %399 : vector<8x128xf32>
    %c5_i32 = arith.constant 5 : i32
    %c8_i32_154 = arith.constant 8 : i32
    %401 = arith.muli %c5_i32, %c8_i32_154 : i32
    %402 = tpu.assume_multiple %401, 8 : i32
    %403 = arith.index_cast %402 : i32 to index
    %c0_155 = arith.constant 0 : index
    %404 = vector.load %arg14[%403, %c0_155] : memref<64x512xf32, #tpu.memory_space<vmem>>, vector<8x512xf32>
    %405 = arith.truncf %361 : vector<8x128xf32> to vector<8x128xbf16>
    %c0_156 = arith.constant 0 : index
    %c0_157 = arith.constant 0 : index
    %406 = vector.load %arg2[%c0_156, %c0_157] : memref<128x512xbf16, #tpu.memory_space<vmem>>, vector<128x512xbf16>
    %cst_158 = arith.constant dense<0.000000e+00> : vector<8x512xf32>
    %407 = tpu.matmul %405, %406, %cst_158 {dimension_numbers = #tpu.dot_dimension_numbers<[1], [0], [0], [1], [0, 0, 1, 1], [], []>} : vector<8x128xbf16>, vector<128x512xbf16>, vector<8x512xf32> -> vector<8x512xf32>
    %408 = arith.addf %404, %407 : vector<8x512xf32>
    %409 = vector.extract_strided_slice %408 {offsets = [0, 0], sizes = [8, 128], strides = [1, 1]} : vector<8x512xf32> to vector<8x128xf32>
    %cst_159 = arith.constant 5.000000e-01 : f32
    %410 = vector.broadcast %cst_159 : f32 to vector<8x128xf32>
    %411 = arith.mulf %410, %409 : vector<8x128xf32>
    %412 = math.tanh %411 : vector<8x128xf32>
    %cst_160 = arith.constant 5.000000e-01 : f32
    %413 = vector.broadcast %cst_160 : f32 to vector<8x128xf32>
    %414 = arith.mulf %413, %412 : vector<8x128xf32>
    %cst_161 = arith.constant 5.000000e-01 : f32
    %415 = vector.broadcast %cst_161 : f32 to vector<8x128xf32>
    %416 = arith.addf %414, %415 : vector<8x128xf32>
    %417 = vector.extract_strided_slice %408 {offsets = [0, 128], sizes = [8, 128], strides = [1, 1]} : vector<8x512xf32> to vector<8x128xf32>
    %cst_162 = arith.constant 5.000000e-01 : f32
    %418 = vector.broadcast %cst_162 : f32 to vector<8x128xf32>
    %419 = arith.mulf %418, %417 : vector<8x128xf32>
    %420 = math.tanh %419 : vector<8x128xf32>
    %cst_163 = arith.constant 5.000000e-01 : f32
    %421 = vector.broadcast %cst_163 : f32 to vector<8x128xf32>
    %422 = arith.mulf %421, %420 : vector<8x128xf32>
    %cst_164 = arith.constant 5.000000e-01 : f32
    %423 = vector.broadcast %cst_164 : f32 to vector<8x128xf32>
    %424 = arith.addf %422, %423 : vector<8x128xf32>
    %425 = vector.extract_strided_slice %408 {offsets = [0, 256], sizes = [8, 128], strides = [1, 1]} : vector<8x512xf32> to vector<8x128xf32>
    %426 = math.tanh %425 : vector<8x128xf32>
    %427 = vector.extract_strided_slice %408 {offsets = [0, 384], sizes = [8, 128], strides = [1, 1]} : vector<8x512xf32> to vector<8x128xf32>
    %cst_165 = arith.constant 5.000000e-01 : f32
    %428 = vector.broadcast %cst_165 : f32 to vector<8x128xf32>
    %429 = arith.mulf %428, %427 : vector<8x128xf32>
    %430 = math.tanh %429 : vector<8x128xf32>
    %cst_166 = arith.constant 5.000000e-01 : f32
    %431 = vector.broadcast %cst_166 : f32 to vector<8x128xf32>
    %432 = arith.mulf %431, %430 : vector<8x128xf32>
    %cst_167 = arith.constant 5.000000e-01 : f32
    %433 = vector.broadcast %cst_167 : f32 to vector<8x128xf32>
    %434 = arith.addf %432, %433 : vector<8x128xf32>
    %435 = arith.mulf %424, %359 : vector<8x128xf32>
    %436 = arith.mulf %416, %426 : vector<8x128xf32>
    %437 = arith.addf %435, %436 : vector<8x128xf32>
    %438 = math.tanh %437 : vector<8x128xf32>
    %439 = arith.mulf %434, %438 : vector<8x128xf32>
    %440 = arith.truncf %439 : vector<8x128xf32> to vector<8x128xbf16>
    %c0_168 = arith.constant 0 : index
    %c0_169 = arith.constant 0 : index
    %441 = vector.load %arg4[%c0_168, %c0_169] : memref<128x512xbf16, #tpu.memory_space<vmem>>, vector<128x512xbf16>
    %cst_170 = arith.constant dense<0.000000e+00> : vector<8x512xf32>
    %442 = tpu.matmul %440, %441, %cst_170 {dimension_numbers = #tpu.dot_dimension_numbers<[1], [0], [0], [1], [0, 0, 1, 1], [], []>} : vector<8x128xbf16>, vector<128x512xbf16>, vector<8x512xf32> -> vector<8x512xf32>
    %443 = arith.truncf %400 : vector<8x128xf32> to vector<8x128xbf16>
    %c0_171 = arith.constant 0 : index
    %c0_172 = arith.constant 0 : index
    %444 = vector.load %arg5[%c0_171, %c0_172] : memref<128x512xbf16, #tpu.memory_space<vmem>>, vector<128x512xbf16>
    %cst_173 = arith.constant dense<0.000000e+00> : vector<8x512xf32>
    %445 = tpu.matmul %443, %444, %cst_173 {dimension_numbers = #tpu.dot_dimension_numbers<[1], [0], [0], [1], [0, 0, 1, 1], [], []>} : vector<8x128xbf16>, vector<128x512xbf16>, vector<8x512xf32> -> vector<8x512xf32>
    %446 = arith.addf %442, %445 : vector<8x512xf32>
    %447 = arith.addf %446, %10 : vector<8x512xf32>
    %448 = vector.extract_strided_slice %447 {offsets = [0, 0], sizes = [8, 128], strides = [1, 1]} : vector<8x512xf32> to vector<8x128xf32>
    %cst_174 = arith.constant 5.000000e-01 : f32
    %449 = vector.broadcast %cst_174 : f32 to vector<8x128xf32>
    %450 = arith.mulf %449, %448 : vector<8x128xf32>
    %451 = math.tanh %450 : vector<8x128xf32>
    %cst_175 = arith.constant 5.000000e-01 : f32
    %452 = vector.broadcast %cst_175 : f32 to vector<8x128xf32>
    %453 = arith.mulf %452, %451 : vector<8x128xf32>
    %cst_176 = arith.constant 5.000000e-01 : f32
    %454 = vector.broadcast %cst_176 : f32 to vector<8x128xf32>
    %455 = arith.addf %453, %454 : vector<8x128xf32>
    %456 = vector.extract_strided_slice %447 {offsets = [0, 128], sizes = [8, 128], strides = [1, 1]} : vector<8x512xf32> to vector<8x128xf32>
    %cst_177 = arith.constant 5.000000e-01 : f32
    %457 = vector.broadcast %cst_177 : f32 to vector<8x128xf32>
    %458 = arith.mulf %457, %456 : vector<8x128xf32>
    %459 = math.tanh %458 : vector<8x128xf32>
    %cst_178 = arith.constant 5.000000e-01 : f32
    %460 = vector.broadcast %cst_178 : f32 to vector<8x128xf32>
    %461 = arith.mulf %460, %459 : vector<8x128xf32>
    %cst_179 = arith.constant 5.000000e-01 : f32
    %462 = vector.broadcast %cst_179 : f32 to vector<8x128xf32>
    %463 = arith.addf %461, %462 : vector<8x128xf32>
    %464 = vector.extract_strided_slice %447 {offsets = [0, 256], sizes = [8, 128], strides = [1, 1]} : vector<8x512xf32> to vector<8x128xf32>
    %465 = math.tanh %464 : vector<8x128xf32>
    %466 = vector.extract_strided_slice %447 {offsets = [0, 384], sizes = [8, 128], strides = [1, 1]} : vector<8x512xf32> to vector<8x128xf32>
    %cst_180 = arith.constant 5.000000e-01 : f32
    %467 = vector.broadcast %cst_180 : f32 to vector<8x128xf32>
    %468 = arith.mulf %467, %466 : vector<8x128xf32>
    %469 = math.tanh %468 : vector<8x128xf32>
    %cst_181 = arith.constant 5.000000e-01 : f32
    %470 = vector.broadcast %cst_181 : f32 to vector<8x128xf32>
    %471 = arith.mulf %470, %469 : vector<8x128xf32>
    %cst_182 = arith.constant 5.000000e-01 : f32
    %472 = vector.broadcast %cst_182 : f32 to vector<8x128xf32>
    %473 = arith.addf %471, %472 : vector<8x128xf32>
    %474 = arith.mulf %463, %398 : vector<8x128xf32>
    %475 = arith.mulf %455, %465 : vector<8x128xf32>
    %476 = arith.addf %474, %475 : vector<8x128xf32>
    %477 = math.tanh %476 : vector<8x128xf32>
    %478 = arith.mulf %473, %477 : vector<8x128xf32>
    %c6_i32 = arith.constant 6 : i32
    %c8_i32_183 = arith.constant 8 : i32
    %479 = arith.muli %c6_i32, %c8_i32_183 : i32
    %480 = tpu.assume_multiple %479, 8 : i32
    %481 = arith.index_cast %480 : i32 to index
    %c0_184 = arith.constant 0 : index
    %482 = vector.load %arg14[%481, %c0_184] : memref<64x512xf32, #tpu.memory_space<vmem>>, vector<8x512xf32>
    %483 = arith.truncf %439 : vector<8x128xf32> to vector<8x128xbf16>
    %c0_185 = arith.constant 0 : index
    %c0_186 = arith.constant 0 : index
    %484 = vector.load %arg2[%c0_185, %c0_186] : memref<128x512xbf16, #tpu.memory_space<vmem>>, vector<128x512xbf16>
    %cst_187 = arith.constant dense<0.000000e+00> : vector<8x512xf32>
    %485 = tpu.matmul %483, %484, %cst_187 {dimension_numbers = #tpu.dot_dimension_numbers<[1], [0], [0], [1], [0, 0, 1, 1], [], []>} : vector<8x128xbf16>, vector<128x512xbf16>, vector<8x512xf32> -> vector<8x512xf32>
    %486 = arith.addf %482, %485 : vector<8x512xf32>
    %487 = vector.extract_strided_slice %486 {offsets = [0, 0], sizes = [8, 128], strides = [1, 1]} : vector<8x512xf32> to vector<8x128xf32>
    %cst_188 = arith.constant 5.000000e-01 : f32
    %488 = vector.broadcast %cst_188 : f32 to vector<8x128xf32>
    %489 = arith.mulf %488, %487 : vector<8x128xf32>
    %490 = math.tanh %489 : vector<8x128xf32>
    %cst_189 = arith.constant 5.000000e-01 : f32
    %491 = vector.broadcast %cst_189 : f32 to vector<8x128xf32>
    %492 = arith.mulf %491, %490 : vector<8x128xf32>
    %cst_190 = arith.constant 5.000000e-01 : f32
    %493 = vector.broadcast %cst_190 : f32 to vector<8x128xf32>
    %494 = arith.addf %492, %493 : vector<8x128xf32>
    %495 = vector.extract_strided_slice %486 {offsets = [0, 128], sizes = [8, 128], strides = [1, 1]} : vector<8x512xf32> to vector<8x128xf32>
    %cst_191 = arith.constant 5.000000e-01 : f32
    %496 = vector.broadcast %cst_191 : f32 to vector<8x128xf32>
    %497 = arith.mulf %496, %495 : vector<8x128xf32>
    %498 = math.tanh %497 : vector<8x128xf32>
    %cst_192 = arith.constant 5.000000e-01 : f32
    %499 = vector.broadcast %cst_192 : f32 to vector<8x128xf32>
    %500 = arith.mulf %499, %498 : vector<8x128xf32>
    %cst_193 = arith.constant 5.000000e-01 : f32
    %501 = vector.broadcast %cst_193 : f32 to vector<8x128xf32>
    %502 = arith.addf %500, %501 : vector<8x128xf32>
    %503 = vector.extract_strided_slice %486 {offsets = [0, 256], sizes = [8, 128], strides = [1, 1]} : vector<8x512xf32> to vector<8x128xf32>
    %504 = math.tanh %503 : vector<8x128xf32>
    %505 = vector.extract_strided_slice %486 {offsets = [0, 384], sizes = [8, 128], strides = [1, 1]} : vector<8x512xf32> to vector<8x128xf32>
    %cst_194 = arith.constant 5.000000e-01 : f32
    %506 = vector.broadcast %cst_194 : f32 to vector<8x128xf32>
    %507 = arith.mulf %506, %505 : vector<8x128xf32>
    %508 = math.tanh %507 : vector<8x128xf32>
    %cst_195 = arith.constant 5.000000e-01 : f32
    %509 = vector.broadcast %cst_195 : f32 to vector<8x128xf32>
    %510 = arith.mulf %509, %508 : vector<8x128xf32>
    %cst_196 = arith.constant 5.000000e-01 : f32
    %511 = vector.broadcast %cst_196 : f32 to vector<8x128xf32>
    %512 = arith.addf %510, %511 : vector<8x128xf32>
    %513 = arith.mulf %502, %437 : vector<8x128xf32>
    %514 = arith.mulf %494, %504 : vector<8x128xf32>
    %515 = arith.addf %513, %514 : vector<8x128xf32>
    %516 = math.tanh %515 : vector<8x128xf32>
    %517 = arith.mulf %512, %516 : vector<8x128xf32>
    %518 = arith.truncf %517 : vector<8x128xf32> to vector<8x128xbf16>
    %c0_197 = arith.constant 0 : index
    %c0_198 = arith.constant 0 : index
    %519 = vector.load %arg4[%c0_197, %c0_198] : memref<128x512xbf16, #tpu.memory_space<vmem>>, vector<128x512xbf16>
    %cst_199 = arith.constant dense<0.000000e+00> : vector<8x512xf32>
    %520 = tpu.matmul %518, %519, %cst_199 {dimension_numbers = #tpu.dot_dimension_numbers<[1], [0], [0], [1], [0, 0, 1, 1], [], []>} : vector<8x128xbf16>, vector<128x512xbf16>, vector<8x512xf32> -> vector<8x512xf32>
    %521 = arith.truncf %478 : vector<8x128xf32> to vector<8x128xbf16>
    %c0_200 = arith.constant 0 : index
    %c0_201 = arith.constant 0 : index
    %522 = vector.load %arg5[%c0_200, %c0_201] : memref<128x512xbf16, #tpu.memory_space<vmem>>, vector<128x512xbf16>
    %cst_202 = arith.constant dense<0.000000e+00> : vector<8x512xf32>
    %523 = tpu.matmul %521, %522, %cst_202 {dimension_numbers = #tpu.dot_dimension_numbers<[1], [0], [0], [1], [0, 0, 1, 1], [], []>} : vector<8x128xbf16>, vector<128x512xbf16>, vector<8x512xf32> -> vector<8x512xf32>
    %524 = arith.addf %520, %523 : vector<8x512xf32>
    %525 = arith.addf %524, %10 : vector<8x512xf32>
    %526 = vector.extract_strided_slice %525 {offsets = [0, 0], sizes = [8, 128], strides = [1, 1]} : vector<8x512xf32> to vector<8x128xf32>
    %cst_203 = arith.constant 5.000000e-01 : f32
    %527 = vector.broadcast %cst_203 : f32 to vector<8x128xf32>
    %528 = arith.mulf %527, %526 : vector<8x128xf32>
    %529 = math.tanh %528 : vector<8x128xf32>
    %cst_204 = arith.constant 5.000000e-01 : f32
    %530 = vector.broadcast %cst_204 : f32 to vector<8x128xf32>
    %531 = arith.mulf %530, %529 : vector<8x128xf32>
    %cst_205 = arith.constant 5.000000e-01 : f32
    %532 = vector.broadcast %cst_205 : f32 to vector<8x128xf32>
    %533 = arith.addf %531, %532 : vector<8x128xf32>
    %534 = vector.extract_strided_slice %525 {offsets = [0, 128], sizes = [8, 128], strides = [1, 1]} : vector<8x512xf32> to vector<8x128xf32>
    %cst_206 = arith.constant 5.000000e-01 : f32
    %535 = vector.broadcast %cst_206 : f32 to vector<8x128xf32>
    %536 = arith.mulf %535, %534 : vector<8x128xf32>
    %537 = math.tanh %536 : vector<8x128xf32>
    %cst_207 = arith.constant 5.000000e-01 : f32
    %538 = vector.broadcast %cst_207 : f32 to vector<8x128xf32>
    %539 = arith.mulf %538, %537 : vector<8x128xf32>
    %cst_208 = arith.constant 5.000000e-01 : f32
    %540 = vector.broadcast %cst_208 : f32 to vector<8x128xf32>
    %541 = arith.addf %539, %540 : vector<8x128xf32>
    %542 = vector.extract_strided_slice %525 {offsets = [0, 256], sizes = [8, 128], strides = [1, 1]} : vector<8x512xf32> to vector<8x128xf32>
    %543 = math.tanh %542 : vector<8x128xf32>
    %544 = vector.extract_strided_slice %525 {offsets = [0, 384], sizes = [8, 128], strides = [1, 1]} : vector<8x512xf32> to vector<8x128xf32>
    %cst_209 = arith.constant 5.000000e-01 : f32
    %545 = vector.broadcast %cst_209 : f32 to vector<8x128xf32>
    %546 = arith.mulf %545, %544 : vector<8x128xf32>
    %547 = math.tanh %546 : vector<8x128xf32>
    %cst_210 = arith.constant 5.000000e-01 : f32
    %548 = vector.broadcast %cst_210 : f32 to vector<8x128xf32>
    %549 = arith.mulf %548, %547 : vector<8x128xf32>
    %cst_211 = arith.constant 5.000000e-01 : f32
    %550 = vector.broadcast %cst_211 : f32 to vector<8x128xf32>
    %551 = arith.addf %549, %550 : vector<8x128xf32>
    %552 = arith.mulf %541, %476 : vector<8x128xf32>
    %553 = arith.mulf %533, %543 : vector<8x128xf32>
    %554 = arith.addf %552, %553 : vector<8x128xf32>
    %555 = math.tanh %554 : vector<8x128xf32>
    %556 = arith.mulf %551, %555 : vector<8x128xf32>
    %c7_i32 = arith.constant 7 : i32
    %c8_i32_212 = arith.constant 8 : i32
    %557 = arith.muli %c7_i32, %c8_i32_212 : i32
    %558 = tpu.assume_multiple %557, 8 : i32
    %559 = arith.index_cast %558 : i32 to index
    %c0_213 = arith.constant 0 : index
    %560 = vector.load %arg14[%559, %c0_213] : memref<64x512xf32, #tpu.memory_space<vmem>>, vector<8x512xf32>
    %561 = arith.truncf %517 : vector<8x128xf32> to vector<8x128xbf16>
    %c0_214 = arith.constant 0 : index
    %c0_215 = arith.constant 0 : index
    %562 = vector.load %arg2[%c0_214, %c0_215] : memref<128x512xbf16, #tpu.memory_space<vmem>>, vector<128x512xbf16>
    %cst_216 = arith.constant dense<0.000000e+00> : vector<8x512xf32>
    %563 = tpu.matmul %561, %562, %cst_216 {dimension_numbers = #tpu.dot_dimension_numbers<[1], [0], [0], [1], [0, 0, 1, 1], [], []>} : vector<8x128xbf16>, vector<128x512xbf16>, vector<8x512xf32> -> vector<8x512xf32>
    %564 = arith.addf %560, %563 : vector<8x512xf32>
    %565 = vector.extract_strided_slice %564 {offsets = [0, 0], sizes = [8, 128], strides = [1, 1]} : vector<8x512xf32> to vector<8x128xf32>
    %cst_217 = arith.constant 5.000000e-01 : f32
    %566 = vector.broadcast %cst_217 : f32 to vector<8x128xf32>
    %567 = arith.mulf %566, %565 : vector<8x128xf32>
    %568 = math.tanh %567 : vector<8x128xf32>
    %cst_218 = arith.constant 5.000000e-01 : f32
    %569 = vector.broadcast %cst_218 : f32 to vector<8x128xf32>
    %570 = arith.mulf %569, %568 : vector<8x128xf32>
    %cst_219 = arith.constant 5.000000e-01 : f32
    %571 = vector.broadcast %cst_219 : f32 to vector<8x128xf32>
    %572 = arith.addf %570, %571 : vector<8x128xf32>
    %573 = vector.extract_strided_slice %564 {offsets = [0, 128], sizes = [8, 128], strides = [1, 1]} : vector<8x512xf32> to vector<8x128xf32>
    %cst_220 = arith.constant 5.000000e-01 : f32
    %574 = vector.broadcast %cst_220 : f32 to vector<8x128xf32>
    %575 = arith.mulf %574, %573 : vector<8x128xf32>
    %576 = math.tanh %575 : vector<8x128xf32>
    %cst_221 = arith.constant 5.000000e-01 : f32
    %577 = vector.broadcast %cst_221 : f32 to vector<8x128xf32>
    %578 = arith.mulf %577, %576 : vector<8x128xf32>
    %cst_222 = arith.constant 5.000000e-01 : f32
    %579 = vector.broadcast %cst_222 : f32 to vector<8x128xf32>
    %580 = arith.addf %578, %579 : vector<8x128xf32>
    %581 = vector.extract_strided_slice %564 {offsets = [0, 256], sizes = [8, 128], strides = [1, 1]} : vector<8x512xf32> to vector<8x128xf32>
    %582 = math.tanh %581 : vector<8x128xf32>
    %583 = vector.extract_strided_slice %564 {offsets = [0, 384], sizes = [8, 128], strides = [1, 1]} : vector<8x512xf32> to vector<8x128xf32>
    %cst_223 = arith.constant 5.000000e-01 : f32
    %584 = vector.broadcast %cst_223 : f32 to vector<8x128xf32>
    %585 = arith.mulf %584, %583 : vector<8x128xf32>
    %586 = math.tanh %585 : vector<8x128xf32>
    %cst_224 = arith.constant 5.000000e-01 : f32
    %587 = vector.broadcast %cst_224 : f32 to vector<8x128xf32>
    %588 = arith.mulf %587, %586 : vector<8x128xf32>
    %cst_225 = arith.constant 5.000000e-01 : f32
    %589 = vector.broadcast %cst_225 : f32 to vector<8x128xf32>
    %590 = arith.addf %588, %589 : vector<8x128xf32>
    %591 = arith.mulf %580, %515 : vector<8x128xf32>
    %592 = arith.mulf %572, %582 : vector<8x128xf32>
    %593 = arith.addf %591, %592 : vector<8x128xf32>
    %594 = math.tanh %593 : vector<8x128xf32>
    %595 = arith.mulf %590, %594 : vector<8x128xf32>
    %596 = arith.truncf %595 : vector<8x128xf32> to vector<8x128xbf16>
    %c0_226 = arith.constant 0 : index
    %c0_227 = arith.constant 0 : index
    %597 = vector.load %arg4[%c0_226, %c0_227] : memref<128x512xbf16, #tpu.memory_space<vmem>>, vector<128x512xbf16>
    %cst_228 = arith.constant dense<0.000000e+00> : vector<8x512xf32>
    %598 = tpu.matmul %596, %597, %cst_228 {dimension_numbers = #tpu.dot_dimension_numbers<[1], [0], [0], [1], [0, 0, 1, 1], [], []>} : vector<8x128xbf16>, vector<128x512xbf16>, vector<8x512xf32> -> vector<8x512xf32>
    %599 = arith.truncf %556 : vector<8x128xf32> to vector<8x128xbf16>
    %c0_229 = arith.constant 0 : index
    %c0_230 = arith.constant 0 : index
    %600 = vector.load %arg5[%c0_229, %c0_230] : memref<128x512xbf16, #tpu.memory_space<vmem>>, vector<128x512xbf16>
    %cst_231 = arith.constant dense<0.000000e+00> : vector<8x512xf32>
    %601 = tpu.matmul %599, %600, %cst_231 {dimension_numbers = #tpu.dot_dimension_numbers<[1], [0], [0], [1], [0, 0, 1, 1], [], []>} : vector<8x128xbf16>, vector<128x512xbf16>, vector<8x512xf32> -> vector<8x512xf32>
    %602 = arith.addf %598, %601 : vector<8x512xf32>
    %603 = arith.addf %602, %10 : vector<8x512xf32>
    %604 = vector.extract_strided_slice %603 {offsets = [0, 0], sizes = [8, 128], strides = [1, 1]} : vector<8x512xf32> to vector<8x128xf32>
    %cst_232 = arith.constant 5.000000e-01 : f32
    %605 = vector.broadcast %cst_232 : f32 to vector<8x128xf32>
    %606 = arith.mulf %605, %604 : vector<8x128xf32>
    %607 = math.tanh %606 : vector<8x128xf32>
    %cst_233 = arith.constant 5.000000e-01 : f32
    %608 = vector.broadcast %cst_233 : f32 to vector<8x128xf32>
    %609 = arith.mulf %608, %607 : vector<8x128xf32>
    %cst_234 = arith.constant 5.000000e-01 : f32
    %610 = vector.broadcast %cst_234 : f32 to vector<8x128xf32>
    %611 = arith.addf %609, %610 : vector<8x128xf32>
    %612 = vector.extract_strided_slice %603 {offsets = [0, 128], sizes = [8, 128], strides = [1, 1]} : vector<8x512xf32> to vector<8x128xf32>
    %cst_235 = arith.constant 5.000000e-01 : f32
    %613 = vector.broadcast %cst_235 : f32 to vector<8x128xf32>
    %614 = arith.mulf %613, %612 : vector<8x128xf32>
    %615 = math.tanh %614 : vector<8x128xf32>
    %cst_236 = arith.constant 5.000000e-01 : f32
    %616 = vector.broadcast %cst_236 : f32 to vector<8x128xf32>
    %617 = arith.mulf %616, %615 : vector<8x128xf32>
    %cst_237 = arith.constant 5.000000e-01 : f32
    %618 = vector.broadcast %cst_237 : f32 to vector<8x128xf32>
    %619 = arith.addf %617, %618 : vector<8x128xf32>
    %620 = vector.extract_strided_slice %603 {offsets = [0, 256], sizes = [8, 128], strides = [1, 1]} : vector<8x512xf32> to vector<8x128xf32>
    %621 = math.tanh %620 : vector<8x128xf32>
    %622 = vector.extract_strided_slice %603 {offsets = [0, 384], sizes = [8, 128], strides = [1, 1]} : vector<8x512xf32> to vector<8x128xf32>
    %cst_238 = arith.constant 5.000000e-01 : f32
    %623 = vector.broadcast %cst_238 : f32 to vector<8x128xf32>
    %624 = arith.mulf %623, %622 : vector<8x128xf32>
    %625 = math.tanh %624 : vector<8x128xf32>
    %cst_239 = arith.constant 5.000000e-01 : f32
    %626 = vector.broadcast %cst_239 : f32 to vector<8x128xf32>
    %627 = arith.mulf %626, %625 : vector<8x128xf32>
    %cst_240 = arith.constant 5.000000e-01 : f32
    %628 = vector.broadcast %cst_240 : f32 to vector<8x128xf32>
    %629 = arith.addf %627, %628 : vector<8x128xf32>
    %630 = arith.mulf %619, %554 : vector<8x128xf32>
    %631 = arith.mulf %611, %621 : vector<8x128xf32>
    %632 = arith.addf %630, %631 : vector<8x128xf32>
    %633 = math.tanh %632 : vector<8x128xf32>
    %634 = arith.mulf %629, %633 : vector<8x128xf32>
    %c8_i32_241 = arith.constant 8 : i32
    %635 = arith.truncf %634 : vector<8x128xf32> to vector<8x128xbf16>
    %c0_242 = arith.constant 0 : index
    %c0_243 = arith.constant 0 : index
    %636 = vector.load %arg7[%c0_242, %c0_243] : memref<128x384xbf16, #tpu.memory_space<vmem>>, vector<128x384xbf16>
    %cst_244 = arith.constant dense<0.000000e+00> : vector<8x384xf32>
    %637 = tpu.matmul %635, %636, %cst_244 {dimension_numbers = #tpu.dot_dimension_numbers<[1], [0], [0], [1], [0, 0, 1, 1], [], []>} : vector<8x128xbf16>, vector<128x384xbf16>, vector<8x384xf32> -> vector<8x384xf32>
    %c0_245 = arith.constant 0 : index
    %c0_246 = arith.constant 0 : index
    %638 = vector.load %arg8[%c0_245, %c0_246] : memref<1x384xf32, #tpu.memory_space<vmem>>, vector<1x384xf32>
    %639 = vector.broadcast %638 : vector<1x384xf32> to vector<8x384xf32>
    %640 = arith.addf %637, %639 : vector<8x384xf32>
    %641 = tpu.iota {dimensions = array<i32: 1>} : vector<8x8xi32>
    %c4_i32_247 = arith.constant 4 : i32
    %642 = vector.broadcast %c4_i32_247 : i32 to vector<8x8xi32>
    %643 = arith.cmpi slt, %641, %642 : vector<8x8xi32>
    %cst_248 = arith.constant 0.000000e+00 : f32
    %644 = vector.broadcast %cst_248 : f32 to vector<8x128xf32>
    %645 = vector.extract_strided_slice %640 {offsets = [0, 0], sizes = [8, 32], strides = [1, 1]} : vector<8x384xf32> to vector<8x32xf32>
    %646 = arith.truncf %645 : vector<8x32xf32> to vector<8x32xbf16>
    %647 = vector.extract_strided_slice %640 {offsets = [0, 128], sizes = [8, 32], strides = [1, 1]} : vector<8x384xf32> to vector<8x32xf32>
    %648 = arith.truncf %647 : vector<8x32xf32> to vector<8x32xbf16>
    %649 = vector.extract_strided_slice %640 {offsets = [0, 256], sizes = [8, 32], strides = [1, 1]} : vector<8x384xf32> to vector<8x32xf32>
    %650 = arith.truncf %649 : vector<8x32xf32> to vector<8x32xbf16>
    %cst_249 = arith.constant dense<0.000000e+00> : vector<8x8xf32>
    %651 = tpu.matmul %646, %648, %cst_249 {dimension_numbers = #tpu.dot_dimension_numbers<[1], [1], [0], [0], [0, 0, 1, 0], [], []>} : vector<8x32xbf16>, vector<8x32xbf16>, vector<8x8xf32> -> vector<8x8xf32>
    %cst_250 = arith.constant 0.176776692 : f32
    %652 = vector.broadcast %cst_250 : f32 to vector<8x8xf32>
    %653 = arith.mulf %651, %652 : vector<8x8xf32>
    %cst_251 = arith.constant -1.000000e+30 : f32
    %654 = vector.broadcast %cst_251 : f32 to vector<8x8xf32>
    %655 = arith.select %643, %653, %654 : vector<8x8xi1>, vector<8x8xf32>
    %cst_252 = arith.constant dense<0xFF800000> : vector<8xf32>
    %656 = vector.multi_reduction <maximumf>, %655, %cst_252 [1] : vector<8x8xf32> to vector<8xf32>
    %657 = vector.shape_cast %656 : vector<8xf32> to vector<8x1xf32>
    %658 = vector.broadcast %657 : vector<8x1xf32> to vector<8x8xf32>
    %659 = arith.subf %655, %658 : vector<8x8xf32>
    %660 = math.exp %659 : vector<8x8xf32>
    %cst_253 = arith.constant dense<0.000000e+00> : vector<8xf32>
    %661 = vector.multi_reduction <add>, %660, %cst_253 [1] : vector<8x8xf32> to vector<8xf32>
    %662 = vector.shape_cast %661 : vector<8xf32> to vector<8x1xf32>
    %663 = tpu.reciprocal %662 {approx = true} : vector<8x1xf32> -> vector<8x1xf32>
    %664 = vector.broadcast %663 : vector<8x1xf32> to vector<8x8xf32>
    %665 = arith.mulf %660, %664 : vector<8x8xf32>
    %666 = arith.truncf %665 : vector<8x8xf32> to vector<8x8xbf16>
    %cst_254 = arith.constant dense<0.000000e+00> : vector<8x32xf32>
    %667 = tpu.matmul %666, %650, %cst_254 {dimension_numbers = #tpu.dot_dimension_numbers<[1], [0], [0], [1], [0, 0, 1, 1], [], []>} : vector<8x8xbf16>, vector<8x32xbf16>, vector<8x32xf32> -> vector<8x32xf32>
    %668 = arith.truncf %667 : vector<8x32xf32> to vector<8x32xbf16>
    %c0_255 = arith.constant 0 : index
    %c0_256 = arith.constant 0 : index
    %c0_257 = arith.constant 0 : index
    %669 = vector.load %arg9[%c0_255, %c0_256, %c0_257] : memref<4x32x128xbf16, #tpu.memory_space<vmem>>, vector<1x32x128xbf16>
    %670 = vector.shape_cast %669 : vector<1x32x128xbf16> to vector<32x128xbf16>
    %cst_258 = arith.constant dense<0.000000e+00> : vector<8x128xf32>
    %671 = tpu.matmul %668, %670, %cst_258 {dimension_numbers = #tpu.dot_dimension_numbers<[1], [0], [0], [1], [0, 0, 1, 1], [], []>} : vector<8x32xbf16>, vector<32x128xbf16>, vector<8x128xf32> -> vector<8x128xf32>
    %672 = arith.addf %644, %671 : vector<8x128xf32>
    %673 = vector.extract_strided_slice %640 {offsets = [0, 32], sizes = [8, 32], strides = [1, 1]} : vector<8x384xf32> to vector<8x32xf32>
    %674 = arith.truncf %673 : vector<8x32xf32> to vector<8x32xbf16>
    %675 = vector.extract_strided_slice %640 {offsets = [0, 160], sizes = [8, 32], strides = [1, 1]} : vector<8x384xf32> to vector<8x32xf32>
    %676 = arith.truncf %675 : vector<8x32xf32> to vector<8x32xbf16>
    %677 = vector.extract_strided_slice %640 {offsets = [0, 288], sizes = [8, 32], strides = [1, 1]} : vector<8x384xf32> to vector<8x32xf32>
    %678 = arith.truncf %677 : vector<8x32xf32> to vector<8x32xbf16>
    %cst_259 = arith.constant dense<0.000000e+00> : vector<8x8xf32>
    %679 = tpu.matmul %674, %676, %cst_259 {dimension_numbers = #tpu.dot_dimension_numbers<[1], [1], [0], [0], [0, 0, 1, 0], [], []>} : vector<8x32xbf16>, vector<8x32xbf16>, vector<8x8xf32> -> vector<8x8xf32>
    %cst_260 = arith.constant 0.176776692 : f32
    %680 = vector.broadcast %cst_260 : f32 to vector<8x8xf32>
    %681 = arith.mulf %679, %680 : vector<8x8xf32>
    %cst_261 = arith.constant -1.000000e+30 : f32
    %682 = vector.broadcast %cst_261 : f32 to vector<8x8xf32>
    %683 = arith.select %643, %681, %682 : vector<8x8xi1>, vector<8x8xf32>
    %cst_262 = arith.constant dense<0xFF800000> : vector<8xf32>
    %684 = vector.multi_reduction <maximumf>, %683, %cst_262 [1] : vector<8x8xf32> to vector<8xf32>
    %685 = vector.shape_cast %684 : vector<8xf32> to vector<8x1xf32>
    %686 = vector.broadcast %685 : vector<8x1xf32> to vector<8x8xf32>
    %687 = arith.subf %683, %686 : vector<8x8xf32>
    %688 = math.exp %687 : vector<8x8xf32>
    %cst_263 = arith.constant dense<0.000000e+00> : vector<8xf32>
    %689 = vector.multi_reduction <add>, %688, %cst_263 [1] : vector<8x8xf32> to vector<8xf32>
    %690 = vector.shape_cast %689 : vector<8xf32> to vector<8x1xf32>
    %691 = tpu.reciprocal %690 {approx = true} : vector<8x1xf32> -> vector<8x1xf32>
    %692 = vector.broadcast %691 : vector<8x1xf32> to vector<8x8xf32>
    %693 = arith.mulf %688, %692 : vector<8x8xf32>
    %694 = arith.truncf %693 : vector<8x8xf32> to vector<8x8xbf16>
    %cst_264 = arith.constant dense<0.000000e+00> : vector<8x32xf32>
    %695 = tpu.matmul %694, %678, %cst_264 {dimension_numbers = #tpu.dot_dimension_numbers<[1], [0], [0], [1], [0, 0, 1, 1], [], []>} : vector<8x8xbf16>, vector<8x32xbf16>, vector<8x32xf32> -> vector<8x32xf32>
    %696 = arith.truncf %695 : vector<8x32xf32> to vector<8x32xbf16>
    %c1 = arith.constant 1 : index
    %c0_265 = arith.constant 0 : index
    %c0_266 = arith.constant 0 : index
    %697 = vector.load %arg9[%c1, %c0_265, %c0_266] : memref<4x32x128xbf16, #tpu.memory_space<vmem>>, vector<1x32x128xbf16>
    %698 = vector.shape_cast %697 : vector<1x32x128xbf16> to vector<32x128xbf16>
    %cst_267 = arith.constant dense<0.000000e+00> : vector<8x128xf32>
    %699 = tpu.matmul %696, %698, %cst_267 {dimension_numbers = #tpu.dot_dimension_numbers<[1], [0], [0], [1], [0, 0, 1, 1], [], []>} : vector<8x32xbf16>, vector<32x128xbf16>, vector<8x128xf32> -> vector<8x128xf32>
    %700 = arith.addf %672, %699 : vector<8x128xf32>
    %701 = vector.extract_strided_slice %640 {offsets = [0, 64], sizes = [8, 32], strides = [1, 1]} : vector<8x384xf32> to vector<8x32xf32>
    %702 = arith.truncf %701 : vector<8x32xf32> to vector<8x32xbf16>
    %703 = vector.extract_strided_slice %640 {offsets = [0, 192], sizes = [8, 32], strides = [1, 1]} : vector<8x384xf32> to vector<8x32xf32>
    %704 = arith.truncf %703 : vector<8x32xf32> to vector<8x32xbf16>
    %705 = vector.extract_strided_slice %640 {offsets = [0, 320], sizes = [8, 32], strides = [1, 1]} : vector<8x384xf32> to vector<8x32xf32>
    %706 = arith.truncf %705 : vector<8x32xf32> to vector<8x32xbf16>
    %cst_268 = arith.constant dense<0.000000e+00> : vector<8x8xf32>
    %707 = tpu.matmul %702, %704, %cst_268 {dimension_numbers = #tpu.dot_dimension_numbers<[1], [1], [0], [0], [0, 0, 1, 0], [], []>} : vector<8x32xbf16>, vector<8x32xbf16>, vector<8x8xf32> -> vector<8x8xf32>
    %cst_269 = arith.constant 0.176776692 : f32
    %708 = vector.broadcast %cst_269 : f32 to vector<8x8xf32>
    %709 = arith.mulf %707, %708 : vector<8x8xf32>
    %cst_270 = arith.constant -1.000000e+30 : f32
    %710 = vector.broadcast %cst_270 : f32 to vector<8x8xf32>
    %711 = arith.select %643, %709, %710 : vector<8x8xi1>, vector<8x8xf32>
    %cst_271 = arith.constant dense<0xFF800000> : vector<8xf32>
    %712 = vector.multi_reduction <maximumf>, %711, %cst_271 [1] : vector<8x8xf32> to vector<8xf32>
    %713 = vector.shape_cast %712 : vector<8xf32> to vector<8x1xf32>
    %714 = vector.broadcast %713 : vector<8x1xf32> to vector<8x8xf32>
    %715 = arith.subf %711, %714 : vector<8x8xf32>
    %716 = math.exp %715 : vector<8x8xf32>
    %cst_272 = arith.constant dense<0.000000e+00> : vector<8xf32>
    %717 = vector.multi_reduction <add>, %716, %cst_272 [1] : vector<8x8xf32> to vector<8xf32>
    %718 = vector.shape_cast %717 : vector<8xf32> to vector<8x1xf32>
    %719 = tpu.reciprocal %718 {approx = true} : vector<8x1xf32> -> vector<8x1xf32>
    %720 = vector.broadcast %719 : vector<8x1xf32> to vector<8x8xf32>
    %721 = arith.mulf %716, %720 : vector<8x8xf32>
    %722 = arith.truncf %721 : vector<8x8xf32> to vector<8x8xbf16>
    %cst_273 = arith.constant dense<0.000000e+00> : vector<8x32xf32>
    %723 = tpu.matmul %722, %706, %cst_273 {dimension_numbers = #tpu.dot_dimension_numbers<[1], [0], [0], [1], [0, 0, 1, 1], [], []>} : vector<8x8xbf16>, vector<8x32xbf16>, vector<8x32xf32> -> vector<8x32xf32>
    %724 = arith.truncf %723 : vector<8x32xf32> to vector<8x32xbf16>
    %c2 = arith.constant 2 : index
    %c0_274 = arith.constant 0 : index
    %c0_275 = arith.constant 0 : index
    %725 = vector.load %arg9[%c2, %c0_274, %c0_275] : memref<4x32x128xbf16, #tpu.memory_space<vmem>>, vector<1x32x128xbf16>
    %726 = vector.shape_cast %725 : vector<1x32x128xbf16> to vector<32x128xbf16>
    %cst_276 = arith.constant dense<0.000000e+00> : vector<8x128xf32>
    %727 = tpu.matmul %724, %726, %cst_276 {dimension_numbers = #tpu.dot_dimension_numbers<[1], [0], [0], [1], [0, 0, 1, 1], [], []>} : vector<8x32xbf16>, vector<32x128xbf16>, vector<8x128xf32> -> vector<8x128xf32>
    %728 = arith.addf %700, %727 : vector<8x128xf32>
    %729 = vector.extract_strided_slice %640 {offsets = [0, 96], sizes = [8, 32], strides = [1, 1]} : vector<8x384xf32> to vector<8x32xf32>
    %730 = arith.truncf %729 : vector<8x32xf32> to vector<8x32xbf16>
    %731 = vector.extract_strided_slice %640 {offsets = [0, 224], sizes = [8, 32], strides = [1, 1]} : vector<8x384xf32> to vector<8x32xf32>
    %732 = arith.truncf %731 : vector<8x32xf32> to vector<8x32xbf16>
    %733 = vector.extract_strided_slice %640 {offsets = [0, 352], sizes = [8, 32], strides = [1, 1]} : vector<8x384xf32> to vector<8x32xf32>
    %734 = arith.truncf %733 : vector<8x32xf32> to vector<8x32xbf16>
    %cst_277 = arith.constant dense<0.000000e+00> : vector<8x8xf32>
    %735 = tpu.matmul %730, %732, %cst_277 {dimension_numbers = #tpu.dot_dimension_numbers<[1], [1], [0], [0], [0, 0, 1, 0], [], []>} : vector<8x32xbf16>, vector<8x32xbf16>, vector<8x8xf32> -> vector<8x8xf32>
    %cst_278 = arith.constant 0.176776692 : f32
    %736 = vector.broadcast %cst_278 : f32 to vector<8x8xf32>
    %737 = arith.mulf %735, %736 : vector<8x8xf32>
    %cst_279 = arith.constant -1.000000e+30 : f32
    %738 = vector.broadcast %cst_279 : f32 to vector<8x8xf32>
    %739 = arith.select %643, %737, %738 : vector<8x8xi1>, vector<8x8xf32>
    %cst_280 = arith.constant dense<0xFF800000> : vector<8xf32>
    %740 = vector.multi_reduction <maximumf>, %739, %cst_280 [1] : vector<8x8xf32> to vector<8xf32>
    %741 = vector.shape_cast %740 : vector<8xf32> to vector<8x1xf32>
    %742 = vector.broadcast %741 : vector<8x1xf32> to vector<8x8xf32>
    %743 = arith.subf %739, %742 : vector<8x8xf32>
    %744 = math.exp %743 : vector<8x8xf32>
    %cst_281 = arith.constant dense<0.000000e+00> : vector<8xf32>
    %745 = vector.multi_reduction <add>, %744, %cst_281 [1] : vector<8x8xf32> to vector<8xf32>
    %746 = vector.shape_cast %745 : vector<8xf32> to vector<8x1xf32>
    %747 = tpu.reciprocal %746 {approx = true} : vector<8x1xf32> -> vector<8x1xf32>
    %748 = vector.broadcast %747 : vector<8x1xf32> to vector<8x8xf32>
    %749 = arith.mulf %744, %748 : vector<8x8xf32>
    %750 = arith.truncf %749 : vector<8x8xf32> to vector<8x8xbf16>
    %cst_282 = arith.constant dense<0.000000e+00> : vector<8x32xf32>
    %751 = tpu.matmul %750, %734, %cst_282 {dimension_numbers = #tpu.dot_dimension_numbers<[1], [0], [0], [1], [0, 0, 1, 1], [], []>} : vector<8x8xbf16>, vector<8x32xbf16>, vector<8x32xf32> -> vector<8x32xf32>
    %752 = arith.truncf %751 : vector<8x32xf32> to vector<8x32xbf16>
    %c3 = arith.constant 3 : index
    %c0_283 = arith.constant 0 : index
    %c0_284 = arith.constant 0 : index
    %753 = vector.load %arg9[%c3, %c0_283, %c0_284] : memref<4x32x128xbf16, #tpu.memory_space<vmem>>, vector<1x32x128xbf16>
    %754 = vector.shape_cast %753 : vector<1x32x128xbf16> to vector<32x128xbf16>
    %cst_285 = arith.constant dense<0.000000e+00> : vector<8x128xf32>
    %755 = tpu.matmul %752, %754, %cst_285 {dimension_numbers = #tpu.dot_dimension_numbers<[1], [0], [0], [1], [0, 0, 1, 1], [], []>} : vector<8x32xbf16>, vector<32x128xbf16>, vector<8x128xf32> -> vector<8x128xf32>
    %756 = arith.addf %728, %755 : vector<8x128xf32>
    %c0_286 = arith.constant 0 : index
    %c0_287 = arith.constant 0 : index
    %757 = vector.load %arg10[%c0_286, %c0_287] : memref<1x128xf32, #tpu.memory_space<vmem>>, vector<1x128xf32>
    %758 = vector.broadcast %757 : vector<1x128xf32> to vector<8x128xf32>
    %759 = arith.addf %756, %758 : vector<8x128xf32>
    %c0_288 = arith.constant 0 : index
    %c0_289 = arith.constant 0 : index
    %760 = vector.load %arg11[%c0_288, %c0_289] : memref<128x3xf32, #tpu.memory_space<vmem>>, vector<128x3xf32>
    %cst_290 = arith.constant dense<0.000000e+00> : vector<8x3xf32>
    %761 = tpu.matmul %759, %760, %cst_290 {dimension_numbers = #tpu.dot_dimension_numbers<[1], [0], [0], [1], [0, 0, 1, 1], [], []>} : vector<8x128xf32>, vector<128x3xf32>, vector<8x3xf32> -> vector<8x3xf32>
    %c0_291 = arith.constant 0 : index
    %c0_292 = arith.constant 0 : index
    %762 = vector.load %arg12[%c0_291, %c0_292] : memref<1x3xf32, #tpu.memory_space<vmem>>, vector<1x3xf32>
    %763 = vector.broadcast %762 : vector<1x3xf32> to vector<8x3xf32>
    %764 = arith.addf %761, %763 : vector<8x3xf32>
    %cst_293 = arith.constant 5.000000e-01 : f32
    %765 = vector.broadcast %cst_293 : f32 to vector<8x3xf32>
    %766 = arith.mulf %765, %764 : vector<8x3xf32>
    %767 = math.tanh %766 : vector<8x3xf32>
    %cst_294 = arith.constant 5.000000e-01 : f32
    %768 = vector.broadcast %cst_294 : f32 to vector<8x3xf32>
    %769 = arith.mulf %768, %767 : vector<8x3xf32>
    %cst_295 = arith.constant 5.000000e-01 : f32
    %770 = vector.broadcast %cst_295 : f32 to vector<8x3xf32>
    %771 = arith.addf %769, %770 : vector<8x3xf32>
    %c0_296 = arith.constant 0 : index
    %c0_297 = arith.constant 0 : index
    %772 = vector.load %arg13[%c0_296, %c0_297] : memref<8x3xf32, #tpu.memory_space<vmem>>, vector<8x3xf32>
    tpu.vector_store %arg13[%c0_296, %c0_297], %771 {strides = array<i32>} : memref<8x3xf32, #tpu.memory_space<vmem>>, vector<8x3xf32>,
    return
  }
}

</mosaic_0001>

<llo_original>
// kernel: enhanced_lstm_forward.1
$region0: #{enhanced_lstm_forward.1}
  #allocation0 [shape = 'u32[]', space=smem, size = 0x4, offset = 0x4, fixed_abs, tag = 'smem constant byte address 0x4 - core index']
  #allocation1 [shape = 'u32[144,128]{1,0:T(1,128)}', space=vmem, size = 0x12000, scoped, tag = 'internal scratch']
  #allocation2 [shape = 'f32[64,512]{1,0:T(8,128)}', space=vmem, size = 0x20000, scoped, tag = 'scratch operand']
  %s0 = inlined_call_operand.vmem [shape: f32[64,8], index: 0, kind: input, shape index: {}]
  %s1 = inlined_call_operand.hbm [shape: f32[8,512], index: 1, kind: input, shape index: {}]
  %s2 = inlined_call_operand.vmem [shape: bf16[128,512], index: 2, kind: input, shape index: {}]
  %s3 = inlined_call_operand.hbm [shape: f32[1,512], index: 3, kind: input, shape index: {}]
  %s4 = inlined_call_operand.hbm [shape: bf16[128,512], index: 4, kind: input, shape index: {}]
  %s5 = inlined_call_operand.hbm [shape: bf16[128,512], index: 5, kind: input, shape index: {}]
  %s6 = inlined_call_operand.hbm [shape: f32[1,512], index: 6, kind: input, shape index: {}]
  %s7 = inlined_call_operand.hbm [shape: bf16[128,384], index: 7, kind: input, shape index: {}]
  %s8 = inlined_call_operand.hbm [shape: f32[1,384], index: 8, kind: input, shape index: {}]
  %s9 = inlined_call_operand.vmem [shape: bf16[4,32,128], index: 9, kind: input, shape index: {}]
  %s10 = inlined_call_operand.vmem [shape: f32[1,128], index: 10, kind: input, shape index: {}]
  %s11 = inlined_call_operand.vmem [shape: f32[128,3], index: 11, kind: input, shape index: {}]
  %s12 = inlined_call_operand.hbm [shape: f32[1,3], index: 12, kind: input, shape index: {}]
  %s13 = inlined_call_operand.vmem [shape: f32[8,3], index: 13, kind: output, shape index: {}]
  %s14 = sld [smem:[#allocation0]]
  $region94: #{enhanced_lstm_forward.1} parent=0
    _
  %s16 = ssub.s32 1, %s14
  %s17 = scalar_select 0, %s16, %s14
  $region1: #{enhanced_lstm_forward.1} parent=0
    #allocation3 [shape = 'u8[16384]{0}', space=vmem, size = 0x4000, scoped, tag = 'input window, operand 1, single buffered']
    #allocation4 [shape = 's32[1]{0}', space=sflag, size = 0x4, scoped, tag = 'scoped memory for enhanced_lstm_forward.1']
    #allocation5 [shape = 'u8[2048]{0}', space=vmem, size = 0x800, scoped, tag = 'input window, operand 3, single buffered']
    #allocation6 [shape = 's32[1]{0}', space=sflag, size = 0x4, scoped, tag = 'scoped memory for enhanced_lstm_forward.1']
    #allocation7 [shape = 'u8[131072]{0}', space=vmem, size = 0x20000, scoped, tag = 'input window, operand 4, single buffered']
    #allocation8 [shape = 'u8[131072]{0}', space=vmem, size = 0x20000, scoped, tag = 'input window, operand 5, single buffered']
    #allocation9 [shape = 's32[1]{0}', space=sflag, size = 0x4, scoped, tag = 'scoped memory for enhanced_lstm_forward.1']
    #allocation10 [shape = 'u8[2048]{0}', space=vmem, size = 0x800, scoped, tag = 'input window, operand 6, single buffered']
    #allocation11 [shape = 'u8[98304]{0}', space=vmem, size = 0x18000, scoped, tag = 'input window, operand 7, single buffered']
    #allocation12 [shape = 's32[1]{0}', space=sflag, size = 0x4, scoped, tag = 'scoped memory for enhanced_lstm_forward.1']
    #allocation13 [shape = 'u8[1536]{0}', space=vmem, size = 0x800, scoped, tag = 'input window, operand 8, single buffered']
    #allocation14 [shape = 'u8[512]{0}', space=vmem, size = 0x400, scoped, tag = 'input window, operand 12, single buffered']
    #allocation15 [shape = 's32[1]{0}', space=sflag, size = 0x4, scoped, tag = 'scoped memory for enhanced_lstm_forward.1']
    %18 = vsyncpa [#allocation4], 0
    %19 = vsyncpa [#allocation6], 0
    %20 = vsyncpa [#allocation9], 0
    %21 = vsyncpa [#allocation12], 0
    %22 = vsyncpa [#allocation15], 0
    // Predicated region
    $region2: #{enhanced_lstm_forward.1} parent=1 // pred_check
      _
    $region3: #{enhanced_lstm_forward.1} parent=1 // pred_check_branch
      %24 = sbr.rel (0) target = $region5
    $region4: #{enhanced_lstm_forward.1} parent=1 // pred_region
      _
    $region5: #{enhanced_lstm_forward.1} parent=1 // pred_fallthru
      _
    // Predicated region
    $region6: #{enhanced_lstm_forward.1} parent=1 // pred_check
      _
    $region7: #{enhanced_lstm_forward.1} parent=1 // pred_check_branch
      %26 = sbr.rel (0) target = $region9
    $region8: #{enhanced_lstm_forward.1} parent=1 // pred_region
      %s28 = ssub.s32 512, 512
      %29 = vsyncadd [#allocation4], %s28
      %s31 = sshll.u32 [#allocation3], 4
      %s32 = int_to_ptr.vmem [resolvable:$true] %s31
      %34 = dma.hbm_to_vmem [thread:$0]  %s1, 512, %s32, [#allocation4]
    $region9: #{enhanced_lstm_forward.1} parent=1 // pred_fallthru
      _
    // Predicated region
    $region10: #{enhanced_lstm_forward.1} parent=1 // pred_check
      _
    $region11: #{enhanced_lstm_forward.1} parent=1 // pred_check_branch
      %36 = sbr.rel (0) target = $region13
    $region12: #{enhanced_lstm_forward.1} parent=1 // pred_region
      _
    $region13: #{enhanced_lstm_forward.1} parent=1 // pred_fallthru
      _
    // Predicated region
    $region14: #{enhanced_lstm_forward.1} parent=1 // pred_check
      _
    $region15: #{enhanced_lstm_forward.1} parent=1 // pred_check_branch
      %38 = sbr.rel (0) target = $region17
    $region16: #{enhanced_lstm_forward.1} parent=1 // pred_region
      %s40 = ssub.s32 64, 64
      %41 = vsyncadd [#allocation6], %s40
      %s43 = sshll.u32 [#allocation5], 4
      %s44 = int_to_ptr.vmem [resolvable:$true] %s43
      %46 = dma.hbm_to_vmem [thread:$0]  %s3, 64, %s44, [#allocation6]
    $region17: #{enhanced_lstm_forward.1} parent=1 // pred_fallthru
      _
    // Predicated region
    $region18: #{enhanced_lstm_forward.1} parent=1 // pred_check
      _
    $region19: #{enhanced_lstm_forward.1} parent=1 // pred_check_branch
      %48 = sbr.rel (0) target = $region21
    $region20: #{enhanced_lstm_forward.1} parent=1 // pred_region
      %s50 = ssub.s32 4096, 4096
      %51 = vsyncadd [#allocation6], %s50
      %s52 = sshll.u32 [#allocation7], 4
      %s53 = int_to_ptr.vmem [resolvable:$true] %s52
      %58 = dma.hbm_to_vmem [thread:$0]  %s4, 4096, %s53, [#allocation6], 256, 256, 16
    $region21: #{enhanced_lstm_forward.1} parent=1 // pred_fallthru
      _
    // Predicated region
    $region22: #{enhanced_lstm_forward.1} parent=1 // pred_check
      _
    $region23: #{enhanced_lstm_forward.1} parent=1 // pred_check_branch
      %60 = sbr.rel (0) target = $region25
    $region24: #{enhanced_lstm_forward.1} parent=1 // pred_region
      %s62 = ssub.s32 4096, 4096
      %63 = vsyncadd [#allocation9], %s62
      %s64 = sshll.u32 [#allocation8], 4
      %s65 = int_to_ptr.vmem [resolvable:$true] %s64
      %70 = dma.hbm_to_vmem [thread:$0]  %s5, 4096, %s65, [#allocation9], 256, 256, 16
    $region25: #{enhanced_lstm_forward.1} parent=1 // pred_fallthru
      _
    // Predicated region
    $region26: #{enhanced_lstm_forward.1} parent=1 // pred_check
      _
    $region27: #{enhanced_lstm_forward.1} parent=1 // pred_check_branch
      %72 = sbr.rel (0) target = $region29
    $region28: #{enhanced_lstm_forward.1} parent=1 // pred_region
      %s74 = ssub.s32 64, 64
      %75 = vsyncadd [#allocation9], %s74
      %s77 = sshll.u32 [#allocation10], 4
      %s78 = int_to_ptr.vmem [resolvable:$true] %s77
      %80 = dma.hbm_to_vmem [thread:$0]  %s6, 64, %s78, [#allocation9]
    $region29: #{enhanced_lstm_forward.1} parent=1 // pred_fallthru
      _
    // Predicated region
    $region30: #{enhanced_lstm_forward.1} parent=1 // pred_check
      _
    $region31: #{enhanced_lstm_forward.1} parent=1 // pred_check_branch
      %82 = sbr.rel (0) target = $region33
    $region32: #{enhanced_lstm_forward.1} parent=1 // pred_region
      %s84 = ssub.s32 3072, 3072
      %85 = vsyncadd [#allocation12], %s84
      %s86 = sshll.u32 [#allocation11], 4
      %s87 = int_to_ptr.vmem [resolvable:$true] %s86
      %92 = dma.hbm_to_vmem [thread:$0]  %s7, 3072, %s87, [#allocation12], 192, 192, 12
    $region33: #{enhanced_lstm_forward.1} parent=1 // pred_fallthru
      _
    // Predicated region
    $region34: #{enhanced_lstm_forward.1} parent=1 // pred_check
      _
    $region35: #{enhanced_lstm_forward.1} parent=1 // pred_check_branch
      %94 = sbr.rel (0) target = $region37
    $region36: #{enhanced_lstm_forward.1} parent=1 // pred_region
      %s96 = ssub.s32 48, 48
      %97 = vsyncadd [#allocation12], %s96
      %s99 = sshll.u32 [#allocation13], 4
      %s100 = int_to_ptr.vmem [resolvable:$true] %s99
      %102 = dma.hbm_to_vmem [thread:$0]  %s8, 48, %s100, [#allocation12]
    $region37: #{enhanced_lstm_forward.1} parent=1 // pred_fallthru
      _
    // Predicated region
    $region38: #{enhanced_lstm_forward.1} parent=1 // pred_check
      _
    $region39: #{enhanced_lstm_forward.1} parent=1 // pred_check_branch
      %104 = sbr.rel (0) target = $region41
    $region40: #{enhanced_lstm_forward.1} parent=1 // pred_region
      _
    $region41: #{enhanced_lstm_forward.1} parent=1 // pred_fallthru
      _
    // Predicated region
    $region42: #{enhanced_lstm_forward.1} parent=1 // pred_check
      _
    $region43: #{enhanced_lstm_forward.1} parent=1 // pred_check_branch
      %106 = sbr.rel (0) target = $region45
    $region44: #{enhanced_lstm_forward.1} parent=1 // pred_region
      _
    $region45: #{enhanced_lstm_forward.1} parent=1 // pred_fallthru
      _
    // Predicated region
    $region46: #{enhanced_lstm_forward.1} parent=1 // pred_check
      _
    $region47: #{enhanced_lstm_forward.1} parent=1 // pred_check_branch
      %108 = sbr.rel (0) target = $region49
    $region48: #{enhanced_lstm_forward.1} parent=1 // pred_region
      _
    $region49: #{enhanced_lstm_forward.1} parent=1 // pred_fallthru
      _
    // Predicated region
    $region50: #{enhanced_lstm_forward.1} parent=1 // pred_check
      _
    $region51: #{enhanced_lstm_forward.1} parent=1 // pred_check_branch
      %110 = sbr.rel (0) target = $region53
    $region52: #{enhanced_lstm_forward.1} parent=1 // pred_region
      %s112 = ssub.s32 16, 16
      %113 = vsyncadd [#allocation15], %s112
      %s115 = sshll.u32 [#allocation14], 4
      %s116 = int_to_ptr.vmem [resolvable:$true] %s115
      %118 = dma.hbm_to_vmem [thread:$0]  %s12, 16, %s116, [#allocation15]
    $region53: #{enhanced_lstm_forward.1} parent=1 // pred_fallthru
      _
    // Predicated region
    $region54: #{enhanced_lstm_forward.1} parent=1 // pred_check
      _
    $region55: #{enhanced_lstm_forward.1} parent=1 // pred_check_branch
      %120 = sbr.rel (0) target = $region57
    $region56: #{enhanced_lstm_forward.1} parent=1 // pred_region
      %121 = dma.done [#allocation4], 512
    $region57: #{enhanced_lstm_forward.1} parent=1 // pred_fallthru
      _
    // Predicated region
    $region58: #{enhanced_lstm_forward.1} parent=1 // pred_check
      _
    $region59: #{enhanced_lstm_forward.1} parent=1 // pred_check_branch
      %123 = sbr.rel (0) target = $region61
    $region60: #{enhanced_lstm_forward.1} parent=1 // pred_region
      %124 = dma.done [#allocation6], 64
    $region61: #{enhanced_lstm_forward.1} parent=1 // pred_fallthru
      _
    // Predicated region
    $region62: #{enhanced_lstm_forward.1} parent=1 // pred_check
      _
    $region63: #{enhanced_lstm_forward.1} parent=1 // pred_check_branch
      %126 = sbr.rel (0) target = $region65
    $region64: #{enhanced_lstm_forward.1} parent=1 // pred_region
      %127 = dma.done [#allocation6], 4096
    $region65: #{enhanced_lstm_forward.1} parent=1 // pred_fallthru
      _
    // Predicated region
    $region66: #{enhanced_lstm_forward.1} parent=1 // pred_check
      _
    $region67: #{enhanced_lstm_forward.1} parent=1 // pred_check_branch
      %129 = sbr.rel (0) target = $region69
    $region68: #{enhanced_lstm_forward.1} parent=1 // pred_region
      %130 = dma.done [#allocation9], 4096
    $region69: #{enhanced_lstm_forward.1} parent=1 // pred_fallthru
      _
    // Predicated region
    $region70: #{enhanced_lstm_forward.1} parent=1 // pred_check
      _
    $region71: #{enhanced_lstm_forward.1} parent=1 // pred_check_branch
      %132 = sbr.rel (0) target = $region73
    $region72: #{enhanced_lstm_forward.1} parent=1 // pred_region
      %133 = dma.done [#allocation9], 64
    $region73: #{enhanced_lstm_forward.1} parent=1 // pred_fallthru
      _
    // Predicated region
    $region74: #{enhanced_lstm_forward.1} parent=1 // pred_check
      _
    $region75: #{enhanced_lstm_forward.1} parent=1 // pred_check_branch
      %135 = sbr.rel (0) target = $region77
    $region76: #{enhanced_lstm_forward.1} parent=1 // pred_region
      %136 = dma.done [#allocation12], 3072
    $region77: #{enhanced_lstm_forward.1} parent=1 // pred_fallthru
      _
    // Predicated region
    $region78: #{enhanced_lstm_forward.1} parent=1 // pred_check
      _
    $region79: #{enhanced_lstm_forward.1} parent=1 // pred_check_branch
      %138 = sbr.rel (0) target = $region81
    $region80: #{enhanced_lstm_forward.1} parent=1 // pred_region
      %139 = dma.done [#allocation12], 48
    $region81: #{enhanced_lstm_forward.1} parent=1 // pred_fallthru
      _
    // Predicated region
    $region82: #{enhanced_lstm_forward.1} parent=1 // pred_check
      _
    $region83: #{enhanced_lstm_forward.1} parent=1 // pred_check_branch
      %141 = sbr.rel (0) target = $region85
    $region84: #{enhanced_lstm_forward.1} parent=1 // pred_region
      %142 = dma.done [#allocation15], 16
    $region85: #{enhanced_lstm_forward.1} parent=1 // pred_fallthru
      _
    %v144 = vld [vmem:[%s0] sm:$0xff]
    %v145 = vld [vmem:[%s0 + $0x8] sm:$0xff]
    %v146 = vld [vmem:[%s0 + $0x10] sm:$0xff]
    %v147 = vld [vmem:[%s0 + $0x18] sm:$0xff]
    %v148 = vld [vmem:[%s0 + $0x20] sm:$0xff]
    %v149 = vld [vmem:[%s0 + $0x28] sm:$0xff]
    %v150 = vld [vmem:[%s0 + $0x30] sm:$0xff]
    %v151 = vld [vmem:[%s0 + $0x38] sm:$0xff]
    %v152 = vld [vmem:[#allocation3] sm:$0xff]
    %v153 = vld [vmem:[#allocation3 + $0x8] sm:$0xff]
    %v154 = vld [vmem:[#allocation3 + $0x10] sm:$0xff]
    %v155 = vld [vmem:[#allocation3 + $0x18] sm:$0xff]
    %v156 = vld [vmem:[#allocation5] sm:$0xf]
    %v158 = vlaneseq
    %v159 = vshrl.u32 %v158, 7
    %v160 = vsub.s32 0, %v159
    %v161 = vrot.slane %v156, %v160
    %v162 = vlaneseq
    %v163 = vshrl.u32 %v162, 7
    %v164 = vsub.s32 1, %v163
    %v165 = vrot.slane %v156, %v164
    %v166 = vlaneseq
    %v167 = vshrl.u32 %v166, 7
    %v168 = vsub.s32 2, %v167
    %v169 = vrot.slane %v156, %v168
    %v170 = vlaneseq
    %v171 = vshrl.u32 %v170, 7
    %v172 = vsub.s32 3, %v171
    %v173 = vrot.slane %v156, %v172
    %vm178 = vcmask 64512
    %v180 = vsel %vm178, %v144, 0
    %v183 = vsel %vm178, %v145, 0
    %v186 = vsel %vm178, %v146, 0
    %v189 = vsel %vm178, %v147, 0
    %v192 = vsel %vm178, %v148, 0
    %v195 = vsel %vm178, %v149, 0
    %v198 = vsel %vm178, %v150, 0
    %v201 = vsel %vm178, %v151, 0
    %203 = vmatprep.subr.mxu0 %v153
    %204 = vmatpush1.msra.mxu0 %v152
    %205 = vmatprep.subr.mxu0 0.0
    %206 = vmatpush1.msra.mxu0 0.0
    %207 = vmatprep.subr.mxu0 0.0
    %208 = vmatpush1.msra.mxu0 0.0
    %209 = vmatprep.subr.mxu0 0.0
    %210 = vmatpush1.msra.mxu0 0.0
    %211 = vmatprep.subr.mxu0 0.0
    %212 = vmatpush1.msra.mxu0 0.0
    %213 = vmatprep.subr.mxu0 0.0
    %214 = vmatpush1.msra.mxu0 0.0
    %215 = vmatprep.subr.mxu0 0.0
    %216 = vmatpush1.msra.mxu0 0.0
    %217 = vmatprep.subr.mxu0 0.0
    %218 = vmatpush1.msra.mxu0 0.0
    %219 = vmatprep.subr.mxu0 0.0
    %220 = vmatpush1.msra.mxu0 0.0
    %221 = vmatprep.subr.mxu0 0.0
    %222 = vmatpush1.msra.mxu0 0.0
    %223 = vmatprep.subr.mxu0 0.0
    %224 = vmatpush1.msra.mxu0 0.0
    %225 = vmatprep.subr.mxu0 0.0
    %226 = vmatpush1.msra.mxu0 0.0
    %227 = vmatprep.subr.mxu0 0.0
    %228 = vmatpush1.msra.mxu0 0.0
    %229 = vmatprep.subr.mxu0 0.0
    %230 = vmatpush1.msra.mxu0 0.0
    %231 = vmatprep.subr.mxu0 0.0
    %232 = vmatpush1.msra.mxu0 0.0
    %233 = vmatprep.subr.mxu0 0.0
    %234 = vmatpush1.msra.mxu0 0.0
    %235 = vmatprep.subr.mxu0 0.0
    %236 = vmatpush1.msra.mxu0 0.0
    %237 = vmatprep.subr.mxu0 0.0
    %238 = vmatpush1.msra.mxu0 0.0
    %239 = vmatprep.subr.mxu0 0.0
    %240 = vmatpush1.msra.mxu0 0.0
    %241 = vmatprep.subr.mxu0 0.0
    %242 = vmatpush1.msra.mxu0 0.0
    %243 = vmatprep.subr.mxu0 0.0
    %244 = vmatpush1.msra.mxu0 0.0
    %245 = vmatprep.subr.mxu0 0.0
    %246 = vmatpush1.msra.mxu0 0.0
    %247 = vmatprep.subr.mxu0 0.0
    %248 = vmatpush1.msra.mxu0 0.0
    %249 = vmatprep.subr.mxu0 0.0
    %250 = vmatpush1.msra.mxu0 0.0
    %251 = vmatprep.subr.mxu0 0.0
    %252 = vmatpush1.msra.mxu0 0.0
    %253 = vmatprep.subr.mxu0 0.0
    %254 = vmatpush1.msra.mxu0 0.0
    %255 = vmatprep.subr.mxu0 0.0
    %256 = vmatpush1.msra.mxu0 0.0
    %257 = vmatprep.subr.mxu0 0.0
    %258 = vmatpush1.msra.mxu0 0.0
    %259 = vmatprep.subr.mxu0 0.0
    %260 = vmatpush1.msra.mxu0 0.0
    %261 = vmatprep.subr.mxu0 0.0
    %262 = vmatpush1.msra.mxu0 0.0
    %263 = vmatprep.subr.mxu0 0.0
    %264 = vmatpush1.msra.mxu0 0.0
    %265 = vmatprep.subr.mxu0 0.0
    %266 = vmatpush1.msra.mxu0 0.0
    %267 = vmatprep.mubr.f32.mxu0 0.0
    %268 = vmatmul.mubr.f32.gmra.mrb[0].mxu0 %v180
    %v269 = vpop.f32.mrb[0].mxu0
    %v270 = vadd.f32 %v161, %v269
    %v271 = vpop.f32.mrb[0].mxu0
    %v272 = vadd.f32 %v165, %v271
    %273 = vmatprep.mubr.f32.mxu0 0.0
    %274 = vmatmul.mubr.f32.gmra.mrb[0].mxu0 %v183
    %v275 = vpop.f32.mrb[0].mxu0
    %v276 = vadd.f32 %v161, %v275
    %v277 = vpop.f32.mrb[0].mxu0
    %v278 = vadd.f32 %v165, %v277
    %279 = vmatprep.mubr.f32.mxu0 0.0
    %280 = vmatmul.mubr.f32.gmra.mrb[0].mxu0 %v186
    %v281 = vpop.f32.mrb[0].mxu0
    %v282 = vadd.f32 %v161, %v281
    %v283 = vpop.f32.mrb[0].mxu0
    %v284 = vadd.f32 %v165, %v283
    %285 = vmatprep.mubr.f32.mxu0 0.0
    %286 = vmatmul.mubr.f32.gmra.mrb[0].mxu0 %v189
    %v287 = vpop.f32.mrb[0].mxu0
    %v288 = vadd.f32 %v161, %v287
    %v289 = vpop.f32.mrb[0].mxu0
    %v290 = vadd.f32 %v165, %v289
    %291 = vmatprep.mubr.f32.mxu0 0.0
    %292 = vmatmul.mubr.f32.gmra.mrb[0].mxu0 %v192
    %v293 = vpop.f32.mrb[0].mxu0
    %v294 = vadd.f32 %v161, %v293
    %v295 = vpop.f32.mrb[0].mxu0
    %v296 = vadd.f32 %v165, %v295
    %297 = vmatprep.mubr.f32.mxu0 0.0
    %298 = vmatmul.mubr.f32.gmra.mrb[0].mxu0 %v195
    %v299 = vpop.f32.mrb[0].mxu0
    %v300 = vadd.f32 %v161, %v299
    %v301 = vpop.f32.mrb[0].mxu0
    %v302 = vadd.f32 %v165, %v301
    %303 = vmatprep.mubr.f32.mxu0 0.0
    %304 = vmatmul.mubr.f32.gmra.mrb[0].mxu0 %v198
    %v305 = vpop.f32.mrb[0].mxu0
    %v306 = vadd.f32 %v161, %v305
    %v307 = vpop.f32.mrb[0].mxu0
    %v308 = vadd.f32 %v165, %v307
    %309 = vmatprep.mubr.f32.mxu0 0.0
    %310 = vmatmul.mubr.f32.gmra.mrb[0].mxu0 %v201
    %v311 = vpop.f32.mrb[0].mxu0
    %v312 = vadd.f32 %v161, %v311
    %v313 = vpop.f32.mrb[0].mxu0
    %v314 = vadd.f32 %v165, %v313
    %315 = vdwg.mxu0
    %316 = vmatprep.subr.mxu0 %v155
    %317 = vmatpush1.msra.mxu0 %v154
    %318 = vmatprep.subr.mxu0 0.0
    %319 = vmatpush1.msra.mxu0 0.0
    %320 = vmatprep.subr.mxu0 0.0
    %321 = vmatpush1.msra.mxu0 0.0
    %322 = vmatprep.subr.mxu0 0.0
    %323 = vmatpush1.msra.mxu0 0.0
    %324 = vmatprep.subr.mxu0 0.0
    %325 = vmatpush1.msra.mxu0 0.0
    %326 = vmatprep.subr.mxu0 0.0
    %327 = vmatpush1.msra.mxu0 0.0
    %328 = vmatprep.subr.mxu0 0.0
    %329 = vmatpush1.msra.mxu0 0.0
    %330 = vmatprep.subr.mxu0 0.0
    %331 = vmatpush1.msra.mxu0 0.0
    %332 = vmatprep.subr.mxu0 0.0
    %333 = vmatpush1.msra.mxu0 0.0
    %334 = vmatprep.subr.mxu0 0.0
    %335 = vmatpush1.msra.mxu0 0.0
    %336 = vmatprep.subr.mxu0 0.0
    %337 = vmatpush1.msra.mxu0 0.0
    %338 = vmatprep.subr.mxu0 0.0
    %339 = vmatpush1.msra.mxu0 0.0
    %340 = vmatprep.subr.mxu0 0.0
    %341 = vmatpush1.msra.mxu0 0.0
    %342 = vmatprep.subr.mxu0 0.0
    %343 = vmatpush1.msra.mxu0 0.0
    %344 = vmatprep.subr.mxu0 0.0
    %345 = vmatpush1.msra.mxu0 0.0
    %346 = vmatprep.subr.mxu0 0.0
    %347 = vmatpush1.msra.mxu0 0.0
    %348 = vmatprep.subr.mxu0 0.0
    %349 = vmatpush1.msra.mxu0 0.0
    %350 = vmatprep.subr.mxu0 0.0
    %351 = vmatpush1.msra.mxu0 0.0
    %352 = vmatprep.subr.mxu0 0.0
    %353 = vmatpush1.msra.mxu0 0.0
    %354 = vmatprep.subr.mxu0 0.0
    %355 = vmatpush1.msra.mxu0 0.0
    %356 = vmatprep.subr.mxu0 0.0
    %357 = vmatpush1.msra.mxu0 0.0
    %358 = vmatprep.subr.mxu0 0.0
    %359 = vmatpush1.msra.mxu0 0.0
    %360 = vmatprep.subr.mxu0 0.0
    %361 = vmatpush1.msra.mxu0 0.0
    %362 = vmatprep.subr.mxu0 0.0
    %363 = vmatpush1.msra.mxu0 0.0
    %364 = vmatprep.subr.mxu0 0.0
    %365 = vmatpush1.msra.mxu0 0.0
    %366 = vmatprep.subr.mxu0 0.0
    %367 = vmatpush1.msra.mxu0 0.0
    %368 = vmatprep.subr.mxu0 0.0
    %369 = vmatpush1.msra.mxu0 0.0
    %370 = vmatprep.subr.mxu0 0.0
    %371 = vmatpush1.msra.mxu0 0.0
    %372 = vmatprep.subr.mxu0 0.0
    %373 = vmatpush1.msra.mxu0 0.0
    %374 = vmatprep.subr.mxu0 0.0
    %375 = vmatpush1.msra.mxu0 0.0
    %376 = vmatprep.subr.mxu0 0.0
    %377 = vmatpush1.msra.mxu0 0.0
    %378 = vmatprep.subr.mxu0 0.0
    %379 = vmatpush1.msra.mxu0 0.0
    %380 = vmatprep.mubr.f32.mxu0 0.0
    %381 = vmatmul.mubr.f32.gmra.mrb[0].mxu0 %v180
    %v382 = vpop.f32.mrb[0].mxu0
    %v383 = vadd.f32 %v169, %v382
    %v384 = vpop.f32.mrb[0].mxu0
    %v385 = vadd.f32 %v173, %v384
    %386 = vmatprep.mubr.f32.mxu0 0.0
    %387 = vmatmul.mubr.f32.gmra.mrb[0].mxu0 %v183
    %v388 = vpop.f32.mrb[0].mxu0
    %v389 = vadd.f32 %v169, %v388
    %v390 = vpop.f32.mrb[0].mxu0
    %v391 = vadd.f32 %v173, %v390
    %392 = vmatprep.mubr.f32.mxu0 0.0
    %393 = vmatmul.mubr.f32.gmra.mrb[0].mxu0 %v186
    %v394 = vpop.f32.mrb[0].mxu0
    %v395 = vadd.f32 %v169, %v394
    %v396 = vpop.f32.mrb[0].mxu0
    %v397 = vadd.f32 %v173, %v396
    %398 = vmatprep.mubr.f32.mxu0 0.0
    %399 = vmatmul.mubr.f32.gmra.mrb[0].mxu0 %v189
    %v400 = vpop.f32.mrb[0].mxu0
    %v401 = vadd.f32 %v169, %v400
    %v402 = vpop.f32.mrb[0].mxu0
    %v403 = vadd.f32 %v173, %v402
    %404 = vmatprep.mubr.f32.mxu0 0.0
    %405 = vmatmul.mubr.f32.gmra.mrb[0].mxu0 %v192
    %v406 = vpop.f32.mrb[0].mxu0
    %v407 = vadd.f32 %v169, %v406
    %v408 = vpop.f32.mrb[0].mxu0
    %v409 = vadd.f32 %v173, %v408
    %410 = vmatprep.mubr.f32.mxu0 0.0
    %411 = vmatmul.mubr.f32.gmra.mrb[0].mxu0 %v195
    %v412 = vpop.f32.mrb[0].mxu0
    %v413 = vadd.f32 %v169, %v412
    %v414 = vpop.f32.mrb[0].mxu0
    %v415 = vadd.f32 %v173, %v414
    %416 = vmatprep.mubr.f32.mxu0 0.0
    %417 = vmatmul.mubr.f32.gmra.mrb[0].mxu0 %v198
    %v418 = vpop.f32.mrb[0].mxu0
    %v419 = vadd.f32 %v169, %v418
    %v420 = vpop.f32.mrb[0].mxu0
    %v421 = vadd.f32 %v173, %v420
    %422 = vmatprep.mubr.f32.mxu0 0.0
    %423 = vmatmul.mubr.f32.gmra.mrb[0].mxu0 %v201
    %v424 = vpop.f32.mrb[0].mxu0
    %v425 = vadd.f32 %v169, %v424
    %v426 = vpop.f32.mrb[0].mxu0
    %v427 = vadd.f32 %v173, %v426
    %428 = vdwg.mxu0
    %429 = vst [vmem:[#allocation2] sm:$0xff] %v270
    %430 = vst [vmem:[#allocation2 + $0x8] sm:$0xff] %v272
    %431 = vst [vmem:[#allocation2 + $0x10] sm:$0xff] %v383
    %432 = vst [vmem:[#allocation2 + $0x18] sm:$0xff] %v385
    %433 = vst [vmem:[#allocation2 + $0x20] sm:$0xff] %v276
    %434 = vst [vmem:[#allocation2 + $0x28] sm:$0xff] %v278
    %435 = vst [vmem:[#allocation2 + $0x30] sm:$0xff] %v389
    %436 = vst [vmem:[#allocation2 + $0x38] sm:$0xff] %v391
    %437 = vst [vmem:[#allocation2 + $0x40] sm:$0xff] %v282
    %438 = vst [vmem:[#allocation2 + $0x48] sm:$0xff] %v284
    %439 = vst [vmem:[#allocation2 + $0x50] sm:$0xff] %v395
    %440 = vst [vmem:[#allocation2 + $0x58] sm:$0xff] %v397
    %441 = vst [vmem:[#allocation2 + $0x60] sm:$0xff] %v288
    %442 = vst [vmem:[#allocation2 + $0x68] sm:$0xff] %v290
    %443 = vst [vmem:[#allocation2 + $0x70] sm:$0xff] %v401
    %444 = vst [vmem:[#allocation2 + $0x78] sm:$0xff] %v403
    %445 = vst [vmem:[#allocation2 + $0x80] sm:$0xff] %v294
    %446 = vst [vmem:[#allocation2 + $0x88] sm:$0xff] %v296
    %447 = vst [vmem:[#allocation2 + $0x90] sm:$0xff] %v407
    %448 = vst [vmem:[#allocation2 + $0x98] sm:$0xff] %v409
    %449 = vst [vmem:[#allocation2 + $0xa0] sm:$0xff] %v300
    %450 = vst [vmem:[#allocation2 + $0xa8] sm:$0xff] %v302
    %451 = vst [vmem:[#allocation2 + $0xb0] sm:$0xff] %v413
    %452 = vst [vmem:[#allocation2 + $0xb8] sm:$0xff] %v415
    %453 = vst [vmem:[#allocation2 + $0xc0] sm:$0xff] %v306
    %454 = vst [vmem:[#allocation2 + $0xc8] sm:$0xff] %v308
    %455 = vst [vmem:[#allocation2 + $0xd0] sm:$0xff] %v419
    %456 = vst [vmem:[#allocation2 + $0xd8] sm:$0xff] %v421
    %457 = vst [vmem:[#allocation2 + $0xe0] sm:$0xff] %v312
    %458 = vst [vmem:[#allocation2 + $0xe8] sm:$0xff] %v314
    %459 = vst [vmem:[#allocation2 + $0xf0] sm:$0xff] %v425
    %460 = vst [vmem:[#allocation2 + $0xf8] sm:$0xff] %v427
    %v461 = vld [vmem:[#allocation10] sm:$0xf]
    %v463 = vlaneseq
    %v464 = vshrl.u32 %v463, 7
    %v465 = vsub.s32 0, %v464
    %v466 = vrot.slane %v461, %v465
    %v467 = vlaneseq
    %v468 = vshrl.u32 %v467, 7
    %v469 = vsub.s32 1, %v468
    %v470 = vrot.slane %v461, %v469
    %v471 = vlaneseq
    %v472 = vshrl.u32 %v471, 7
    %v473 = vsub.s32 2, %v472
    %v474 = vrot.slane %v461, %v473
    %v475 = vlaneseq
    %v476 = vshrl.u32 %v475, 7
    %v477 = vsub.s32 3, %v476
    %v478 = vrot.slane %v461, %v477
    %s483 = smul.u32 0, 4
    %s484 = smul.addr %s483, 8
    %s485 = scalar_lea.vmem [#allocation2], %s484
    %v486 = vld [vmem:[%s485] sm:$0xff]
    %v487 = vld [vmem:[%s485 + $0x8] sm:$0xff]
    %v488 = vld [vmem:[%s485 + $0x10] sm:$0xff]
    %v489 = vld [vmem:[%s485 + $0x18] sm:$0xff]
    %v490 = vld [vmem:[%s2] sm:$0xff]
    %v491 = vld [vmem:[%s2 + $0x8] sm:$0xff]
    %v492 = vld [vmem:[%s2 + $0x10] sm:$0xff]
    %v493 = vld [vmem:[%s2 + $0x18] sm:$0xff]
    %v494 = vld [vmem:[%s2 + $0x20] sm:$0xff]
    %v495 = vld [vmem:[%s2 + $0x28] sm:$0xff]
    %v496 = vld [vmem:[%s2 + $0x30] sm:$0xff]
    %v497 = vld [vmem:[%s2 + $0x38] sm:$0xff]
    %v498 = vld [vmem:[%s2 + $0x40] sm:$0xff]
    %v499 = vld [vmem:[%s2 + $0x48] sm:$0xff]
    %v500 = vld [vmem:[%s2 + $0x50] sm:$0xff]
    %v501 = vld [vmem:[%s2 + $0x58] sm:$0xff]
    %v502 = vld [vmem:[%s2 + $0x60] sm:$0xff]
    %v503 = vld [vmem:[%s2 + $0x68] sm:$0xff]
    %v504 = vld [vmem:[%s2 + $0x70] sm:$0xff]
    %v505 = vld [vmem:[%s2 + $0x78] sm:$0xff]
    %v506 = vld [vmem:[%s2 + $0x80] sm:$0xff]
    %v507 = vld [vmem:[%s2 + $0x88] sm:$0xff]
    %v508 = vld [vmem:[%s2 + $0x90] sm:$0xff]
    %v509 = vld [vmem:[%s2 + $0x98] sm:$0xff]
    %v510 = vld [vmem:[%s2 + $0xa0] sm:$0xff]
    %v511 = vld [vmem:[%s2 + $0xa8] sm:$0xff]
    %v512 = vld [vmem:[%s2 + $0xb0] sm:$0xff]
    %v513 = vld [vmem:[%s2 + $0xb8] sm:$0xff]
    %v514 = vld [vmem:[%s2 + $0xc0] sm:$0xff]
    %v515 = vld [vmem:[%s2 + $0xc8] sm:$0xff]
    %v516 = vld [vmem:[%s2 + $0xd0] sm:$0xff]
    %v517 = vld [vmem:[%s2 + $0xd8] sm:$0xff]
    %v518 = vld [vmem:[%s2 + $0xe0] sm:$0xff]
    %v519 = vld [vmem:[%s2 + $0xe8] sm:$0xff]
    %v520 = vld [vmem:[%s2 + $0xf0] sm:$0xff]
    %v521 = vld [vmem:[%s2 + $0xf8] sm:$0xff]
    %v554 = vunpack.c.l.b16 %v490
    %v555 = vunpack.c.h.b16 %v490
    %v556 = vunpack.c.l.b16 %v491
    %v557 = vunpack.c.h.b16 %v491
    %v558 = vunpack.c.l.b16 %v492
    %v559 = vunpack.c.h.b16 %v492
    %v560 = vunpack.c.l.b16 %v493
    %v561 = vunpack.c.h.b16 %v493
    %v562 = vunpack.c.l.b16 %v494
    %v563 = vunpack.c.h.b16 %v494
    %v564 = vunpack.c.l.b16 %v495
    %v565 = vunpack.c.h.b16 %v495
    %v566 = vunpack.c.l.b16 %v496
    %v567 = vunpack.c.h.b16 %v496
    %v568 = vunpack.c.l.b16 %v497
    %v569 = vunpack.c.h.b16 %v497
    %v570 = vunpack.c.l.b16 %v498
    %v571 = vunpack.c.h.b16 %v498
    %v572 = vunpack.c.l.b16 %v499
    %v573 = vunpack.c.h.b16 %v499
    %v574 = vunpack.c.l.b16 %v500
    %v575 = vunpack.c.h.b16 %v500
    %v576 = vunpack.c.l.b16 %v501
    %v577 = vunpack.c.h.b16 %v501
    %v578 = vunpack.c.l.b16 %v502
    %v579 = vunpack.c.h.b16 %v502
    %v580 = vunpack.c.l.b16 %v503
    %v581 = vunpack.c.h.b16 %v503
    %v582 = vunpack.c.l.b16 %v504
    %v583 = vunpack.c.h.b16 %v504
    %v584 = vunpack.c.l.b16 %v505
    %v585 = vunpack.c.h.b16 %v505
    %v586 = vunpack.c.l.b16 %v506
    %v587 = vunpack.c.h.b16 %v506
    %v588 = vunpack.c.l.b16 %v507
    %v589 = vunpack.c.h.b16 %v507
    %v590 = vunpack.c.l.b16 %v508
    %v591 = vunpack.c.h.b16 %v508
    %v592 = vunpack.c.l.b16 %v509
    %v593 = vunpack.c.h.b16 %v509
    %v594 = vunpack.c.l.b16 %v510
    %v595 = vunpack.c.h.b16 %v510
    %v596 = vunpack.c.l.b16 %v511
    %v597 = vunpack.c.h.b16 %v511
    %v598 = vunpack.c.l.b16 %v512
    %v599 = vunpack.c.h.b16 %v512
    %v600 = vunpack.c.l.b16 %v513
    %v601 = vunpack.c.h.b16 %v513
    %v602 = vunpack.c.l.b16 %v514
    %v603 = vunpack.c.h.b16 %v514
    %v604 = vunpack.c.l.b16 %v515
    %v605 = vunpack.c.h.b16 %v515
    %v606 = vunpack.c.l.b16 %v516
    %v607 = vunpack.c.h.b16 %v516
    %v608 = vunpack.c.l.b16 %v517
    %v609 = vunpack.c.h.b16 %v517
    %v610 = vunpack.c.l.b16 %v518
    %v611 = vunpack.c.h.b16 %v518
    %v612 = vunpack.c.l.b16 %v519
    %v613 = vunpack.c.h.b16 %v519
    %v614 = vunpack.c.l.b16 %v520
    %v615 = vunpack.c.h.b16 %v520
    %v616 = vunpack.c.l.b16 %v521
    %v617 = vunpack.c.h.b16 %v521
    %v618 = vpack.c.b16 %v558, %v554
    %v619 = vpack.c.b16 %v559, %v555
    %v620 = vpack.c.b16 %v560, %v556
    %v621 = vpack.c.b16 %v561, %v557
    %v622 = vpack.c.b16 %v566, %v562
    %v623 = vpack.c.b16 %v567, %v563
    %v624 = vpack.c.b16 %v568, %v564
    %v625 = vpack.c.b16 %v569, %v565
    %v626 = vpack.c.b16 %v574, %v570
    %v627 = vpack.c.b16 %v575, %v571
    %v628 = vpack.c.b16 %v576, %v572
    %v629 = vpack.c.b16 %v577, %v573
    %v630 = vpack.c.b16 %v582, %v578
    %v631 = vpack.c.b16 %v583, %v579
    %v632 = vpack.c.b16 %v584, %v580
    %v633 = vpack.c.b16 %v585, %v581
    %v634 = vpack.c.b16 %v590, %v586
    %v635 = vpack.c.b16 %v591, %v587
    %v636 = vpack.c.b16 %v592, %v588
    %v637 = vpack.c.b16 %v593, %v589
    %v638 = vpack.c.b16 %v598, %v594
    %v639 = vpack.c.b16 %v599, %v595
    %v640 = vpack.c.b16 %v600, %v596
    %v641 = vpack.c.b16 %v601, %v597
    %v642 = vpack.c.b16 %v606, %v602
    %v643 = vpack.c.b16 %v607, %v603
    %v644 = vpack.c.b16 %v608, %v604
    %v645 = vpack.c.b16 %v609, %v605
    %v646 = vpack.c.b16 %v614, %v610
    %v647 = vpack.c.b16 %v615, %v611
    %v648 = vpack.c.b16 %v616, %v612
    %v649 = vpack.c.b16 %v617, %v613
    %682 = vmatprep.subr.bf16.mxu0 %v619
    %683 = vmatpush1.bf16.msra.mxu0 %v618
    %684 = vmatprep.subr.bf16.mxu0 %v623
    %685 = vmatpush1.bf16.msra.mxu0 %v622
    %686 = vmatprep.subr.bf16.mxu0 %v627
    %687 = vmatpush1.bf16.msra.mxu0 %v626
    %688 = vmatprep.subr.bf16.mxu0 %v631
    %689 = vmatpush1.bf16.msra.mxu0 %v630
    %690 = vmatprep.subr.bf16.mxu0 %v635
    %691 = vmatpush1.bf16.msra.mxu0 %v634
    %692 = vmatprep.subr.bf16.mxu0 %v639
    %693 = vmatpush1.bf16.msra.mxu0 %v638
    %694 = vmatprep.subr.bf16.mxu0 %v643
    %695 = vmatpush1.bf16.msra.mxu0 %v642
    %696 = vmatprep.subr.bf16.mxu0 %v647
    %697 = vmatpush1.bf16.msra.mxu0 %v646
    %698 = vmatprep.subr.bf16.mxu0 0
    %699 = vmatpush1.bf16.msra.mxu0 0
    %700 = vmatprep.subr.bf16.mxu0 0
    %701 = vmatpush1.bf16.msra.mxu0 0
    %702 = vmatprep.subr.bf16.mxu0 0
    %703 = vmatpush1.bf16.msra.mxu0 0
    %704 = vmatprep.subr.bf16.mxu0 0
    %705 = vmatpush1.bf16.msra.mxu0 0
    %706 = vmatprep.subr.bf16.mxu0 0
    %707 = vmatpush1.bf16.msra.mxu0 0
    %708 = vmatprep.subr.bf16.mxu0 0
    %709 = vmatpush1.bf16.msra.mxu0 0
    %710 = vmatprep.subr.bf16.mxu0 0
    %711 = vmatpush1.bf16.msra.mxu0 0
    %712 = vmatprep.subr.bf16.mxu0 0
    %713 = vmatpush1.bf16.msra.mxu0 0
    %714 = vmatprep.mubr.bf16.mxu0 0
    %715 = vmatmul.mubr.bf16.gmra.mrb[0].mxu0 0
    %v716 = vpop.f32.mrb[0].mxu0
    %v717 = vadd.f32 0.0, %v716
    %v718 = vpop.f32.mrb[0].mxu0
    %v719 = vadd.f32 0.0, %v718
    %v720 = vpop.f32.mrb[0].mxu0
    %v721 = vpop.f32.mrb[0].mxu0
    %722 = vdwg.mxu0
    %723 = vmatprep.subr.bf16.mxu0 %v621
    %724 = vmatpush1.bf16.msra.mxu0 %v620
    %725 = vmatprep.subr.bf16.mxu0 %v625
    %726 = vmatpush1.bf16.msra.mxu0 %v624
    %727 = vmatprep.subr.bf16.mxu0 %v629
    %728 = vmatpush1.bf16.msra.mxu0 %v628
    %729 = vmatprep.subr.bf16.mxu0 %v633
    %730 = vmatpush1.bf16.msra.mxu0 %v632
    %731 = vmatprep.subr.bf16.mxu0 %v637
    %732 = vmatpush1.bf16.msra.mxu0 %v636
    %733 = vmatprep.subr.bf16.mxu0 %v641
    %734 = vmatpush1.bf16.msra.mxu0 %v640
    %735 = vmatprep.subr.bf16.mxu0 %v645
    %736 = vmatpush1.bf16.msra.mxu0 %v644
    %737 = vmatprep.subr.bf16.mxu0 %v649
    %738 = vmatpush1.bf16.msra.mxu0 %v648
    %739 = vmatprep.subr.bf16.mxu0 0
    %740 = vmatpush1.bf16.msra.mxu0 0
    %741 = vmatprep.subr.bf16.mxu0 0
    %742 = vmatpush1.bf16.msra.mxu0 0
    %743 = vmatprep.subr.bf16.mxu0 0
    %744 = vmatpush1.bf16.msra.mxu0 0
    %745 = vmatprep.subr.bf16.mxu0 0
    %746 = vmatpush1.bf16.msra.mxu0 0
    %747 = vmatprep.subr.bf16.mxu0 0
    %748 = vmatpush1.bf16.msra.mxu0 0
    %749 = vmatprep.subr.bf16.mxu0 0
    %750 = vmatpush1.bf16.msra.mxu0 0
    %751 = vmatprep.subr.bf16.mxu0 0
    %752 = vmatpush1.bf16.msra.mxu0 0
    %753 = vmatprep.subr.bf16.mxu0 0
    %754 = vmatpush1.bf16.msra.mxu0 0
    %755 = vmatprep.mubr.bf16.mxu0 0
    %756 = vmatmul.mubr.bf16.gmra.mrb[0].mxu0 0
    %v757 = vpop.f32.mrb[0].mxu0
    %v758 = vadd.f32 0.0, %v757
    %v759 = vpop.f32.mrb[0].mxu0
    %v760 = vadd.f32 0.0, %v759
    %v761 = vpop.f32.mrb[0].mxu0
    %v762 = vpop.f32.mrb[0].mxu0
    %763 = vdwg.mxu0
    %v764 = vadd.f32 %v486, %v717
    %v765 = vadd.f32 %v487, %v719
    %v766 = vadd.f32 %v488, %v758
    %v767 = vadd.f32 %v489, %v760
    %v768 = vmul.f32 %v764, 0.5
    %v769 = vtanh.pop %v768
    %v770 = vmul.f32 %v769, 0.5
    %v771 = vadd.f32 %v770, 0.5
    %v772 = vmul.f32 %v765, 0.5
    %v773 = vtanh.pop %v772
    %v774 = vmul.f32 %v773, 0.5
    %v775 = vadd.f32 %v774, 0.5
    %v776 = vtanh.pop %v766
    %v777 = vmul.f32 %v767, 0.5
    %v778 = vtanh.pop %v777
    %v779 = vmul.f32 %v778, 0.5
    %v780 = vadd.f32 %v779, 0.5
    %v781 = vmul.f32 %v775, 0.0
    %v782 = vmul.f32 %v771, %v776
    %v783 = vadd.f32 %v781, %v782
    %v784 = vtanh.pop %v783
    %v785 = vmul.f32 %v780, %v784
    %v786 = vpack.c.bf16 %v785, %v785
    %v787 = vld [vmem:[#allocation7] sm:$0xff]
    %v788 = vld [vmem:[#allocation7 + $0x8] sm:$0xff]
    %v789 = vld [vmem:[#allocation7 + $0x10] sm:$0xff]
    %v790 = vld [vmem:[#allocation7 + $0x18] sm:$0xff]
    %v791 = vld [vmem:[#allocation7 + $0x20] sm:$0xff]
    %v792 = vld [vmem:[#allocation7 + $0x28] sm:$0xff]
    %v793 = vld [vmem:[#allocation7 + $0x30] sm:$0xff]
    %v794 = vld [vmem:[#allocation7 + $0x38] sm:$0xff]
    %v795 = vld [vmem:[#allocation7 + $0x40] sm:$0xff]
    %v796 = vld [vmem:[#allocation7 + $0x48] sm:$0xff]
    %v797 = vld [vmem:[#allocation7 + $0x50] sm:$0xff]
    %v798 = vld [vmem:[#allocation7 + $0x58] sm:$0xff]
    %v799 = vld [vmem:[#allocation7 + $0x60] sm:$0xff]
    %v800 = vld [vmem:[#allocation7 + $0x68] sm:$0xff]
    %v801 = vld [vmem:[#allocation7 + $0x70] sm:$0xff]
    %v802 = vld [vmem:[#allocation7 + $0x78] sm:$0xff]
    %v803 = vld [vmem:[#allocation7 + $0x80] sm:$0xff]
    %v804 = vld [vmem:[#allocation7 + $0x88] sm:$0xff]
    %v805 = vld [vmem:[#allocation7 + $0x90] sm:$0xff]
    %v806 = vld [vmem:[#allocation7 + $0x98] sm:$0xff]
    %v807 = vld [vmem:[#allocation7 + $0xa0] sm:$0xff]
    %v808 = vld [vmem:[#allocation7 + $0xa8] sm:$0xff]
    %v809 = vld [vmem:[#allocation7 + $0xb0] sm:$0xff]
    %v810 = vld [vmem:[#allocation7 + $0xb8] sm:$0xff]
    %v811 = vld [vmem:[#allocation7 + $0xc0] sm:$0xff]
    %v812 = vld [vmem:[#allocation7 + $0xc8] sm:$0xff]
    %v813 = vld [vmem:[#allocation7 + $0xd0] sm:$0xff]
    %v814 = vld [vmem:[#allocation7 + $0xd8] sm:$0xff]
    %v815 = vld [vmem:[#allocation7 + $0xe0] sm:$0xff]
    %v816 = vld [vmem:[#allocation7 + $0xe8] sm:$0xff]
    %v817 = vld [vmem:[#allocation7 + $0xf0] sm:$0xff]
    %v818 = vld [vmem:[#allocation7 + $0xf8] sm:$0xff]
    %v819 = vld [vmem:[#allocation8] sm:$0xff]
    %v820 = vld [vmem:[#allocation8 + $0x8] sm:$0xff]
    %v821 = vld [vmem:[#allocation8 + $0x10] sm:$0xff]
    %v822 = vld [vmem:[#allocation8 + $0x18] sm:$0xff]
    %v823 = vld [vmem:[#allocation8 + $0x20] sm:$0xff]
    %v824 = vld [vmem:[#allocation8 + $0x28] sm:$0xff]
    %v825 = vld [vmem:[#allocation8 + $0x30] sm:$0xff]
    %v826 = vld [vmem:[#allocation8 + $0x38] sm:$0xff]
    %v827 = vld [vmem:[#allocation8 + $0x40] sm:$0xff]
    %v828 = vld [vmem:[#allocation8 + $0x48] sm:$0xff]
    %v829 = vld [vmem:[#allocation8 + $0x50] sm:$0xff]
    %v830 = vld [vmem:[#allocation8 + $0x58] sm:$0xff]
    %v831 = vld [vmem:[#allocation8 + $0x60] sm:$0xff]
    %v832 = vld [vmem:[#allocation8 + $0x68] sm:$0xff]
    %v833 = vld [vmem:[#allocation8 + $0x70] sm:$0xff]
    %v834 = vld [vmem:[#allocation8 + $0x78] sm:$0xff]
    %v835 = vld [vmem:[#allocation8 + $0x80] sm:$0xff]
    %v836 = vld [vmem:[#allocation8 + $0x88] sm:$0xff]
    %v837 = vld [vmem:[#allocation8 + $0x90] sm:$0xff]
    %v838 = vld [vmem:[#allocation8 + $0x98] sm:$0xff]
    %v839 = vld [vmem:[#allocation8 + $0xa0] sm:$0xff]
    %v840 = vld [vmem:[#allocation8 + $0xa8] sm:$0xff]
    %v841 = vld [vmem:[#allocation8 + $0xb0] sm:$0xff]
    %v842 = vld [vmem:[#allocation8 + $0xb8] sm:$0xff]
    %v843 = vld [vmem:[#allocation8 + $0xc0] sm:$0xff]
    %v844 = vld [vmem:[#allocation8 + $0xc8] sm:$0xff]
    %v845 = vld [vmem:[#allocation8 + $0xd0] sm:$0xff]
    %v846 = vld [vmem:[#allocation8 + $0xd8] sm:$0xff]
    %v847 = vld [vmem:[#allocation8 + $0xe0] sm:$0xff]
    %v848 = vld [vmem:[#allocation8 + $0xe8] sm:$0xff]
    %v849 = vld [vmem:[#allocation8 + $0xf0] sm:$0xff]
    %v850 = vld [vmem:[#allocation8 + $0xf8] sm:$0xff]
    %v883 = vunpack.c.l.b16 %v819
    %v884 = vunpack.c.h.b16 %v819
    %v885 = vunpack.c.l.b16 %v820
    %v886 = vunpack.c.h.b16 %v820
    %v887 = vunpack.c.l.b16 %v821
    %v888 = vunpack.c.h.b16 %v821
    %v889 = vunpack.c.l.b16 %v822
    %v890 = vunpack.c.h.b16 %v822
    %v891 = vunpack.c.l.b16 %v823
    %v892 = vunpack.c.h.b16 %v823
    %v893 = vunpack.c.l.b16 %v824
    %v894 = vunpack.c.h.b16 %v824
    %v895 = vunpack.c.l.b16 %v825
    %v896 = vunpack.c.h.b16 %v825
    %v897 = vunpack.c.l.b16 %v826
    %v898 = vunpack.c.h.b16 %v826
    %v899 = vunpack.c.l.b16 %v827
    %v900 = vunpack.c.h.b16 %v827
    %v901 = vunpack.c.l.b16 %v828
    %v902 = vunpack.c.h.b16 %v828
    %v903 = vunpack.c.l.b16 %v829
    %v904 = vunpack.c.h.b16 %v829
    %v905 = vunpack.c.l.b16 %v830
    %v906 = vunpack.c.h.b16 %v830
    %v907 = vunpack.c.l.b16 %v831
    %v908 = vunpack.c.h.b16 %v831
    %v909 = vunpack.c.l.b16 %v832
    %v910 = vunpack.c.h.b16 %v832
    %v911 = vunpack.c.l.b16 %v833
    %v912 = vunpack.c.h.b16 %v833
    %v913 = vunpack.c.l.b16 %v834
    %v914 = vunpack.c.h.b16 %v834
    %v915 = vunpack.c.l.b16 %v835
    %v916 = vunpack.c.h.b16 %v835
    %v917 = vunpack.c.l.b16 %v836
    %v918 = vunpack.c.h.b16 %v836
    %v919 = vunpack.c.l.b16 %v837
    %v920 = vunpack.c.h.b16 %v837
    %v921 = vunpack.c.l.b16 %v838
    %v922 = vunpack.c.h.b16 %v838
    %v923 = vunpack.c.l.b16 %v839
    %v924 = vunpack.c.h.b16 %v839
    %v925 = vunpack.c.l.b16 %v840
    %v926 = vunpack.c.h.b16 %v840
    %v927 = vunpack.c.l.b16 %v841
    %v928 = vunpack.c.h.b16 %v841
    %v929 = vunpack.c.l.b16 %v842
    %v930 = vunpack.c.h.b16 %v842
    %v931 = vunpack.c.l.b16 %v843
    %v932 = vunpack.c.h.b16 %v843
    %v933 = vunpack.c.l.b16 %v844
    %v934 = vunpack.c.h.b16 %v844
    %v935 = vunpack.c.l.b16 %v845
    %v936 = vunpack.c.h.b16 %v845
    %v937 = vunpack.c.l.b16 %v846
    %v938 = vunpack.c.h.b16 %v846
    %v939 = vunpack.c.l.b16 %v847
    %v940 = vunpack.c.h.b16 %v847
    %v941 = vunpack.c.l.b16 %v848
    %v942 = vunpack.c.h.b16 %v848
    %v943 = vunpack.c.l.b16 %v849
    %v944 = vunpack.c.h.b16 %v849
    %v945 = vunpack.c.l.b16 %v850
    %v946 = vunpack.c.h.b16 %v850
    %v947 = vpack.c.b16 %v887, %v883
    %v948 = vpack.c.b16 %v888, %v884
    %v949 = vpack.c.b16 %v889, %v885
    %v950 = vpack.c.b16 %v890, %v886
    %v951 = vpack.c.b16 %v895, %v891
    %v952 = vpack.c.b16 %v896, %v892
    %v953 = vpack.c.b16 %v897, %v893
    %v954 = vpack.c.b16 %v898, %v894
    %v955 = vpack.c.b16 %v903, %v899
    %v956 = vpack.c.b16 %v904, %v900
    %v957 = vpack.c.b16 %v905, %v901
    %v958 = vpack.c.b16 %v906, %v902
    %v959 = vpack.c.b16 %v911, %v907
    %v960 = vpack.c.b16 %v912, %v908
    %v961 = vpack.c.b16 %v913, %v909
    %v962 = vpack.c.b16 %v914, %v910
    %v963 = vpack.c.b16 %v919, %v915
    %v964 = vpack.c.b16 %v920, %v916
    %v965 = vpack.c.b16 %v921, %v917
    %v966 = vpack.c.b16 %v922, %v918
    %v967 = vpack.c.b16 %v927, %v923
    %v968 = vpack.c.b16 %v928, %v924
    %v969 = vpack.c.b16 %v929, %v925
    %v970 = vpack.c.b16 %v930, %v926
    %v971 = vpack.c.b16 %v935, %v931
    %v972 = vpack.c.b16 %v936, %v932
    %v973 = vpack.c.b16 %v937, %v933
    %v974 = vpack.c.b16 %v938, %v934
    %v975 = vpack.c.b16 %v943, %v939
    %v976 = vpack.c.b16 %v944, %v940
    %v977 = vpack.c.b16 %v945, %v941
    %v978 = vpack.c.b16 %v946, %v942
    %1011 = vmatprep.subr.bf16.mxu0 %v948
    %1012 = vmatpush1.bf16.msra.mxu0 %v947
    %1013 = vmatprep.subr.bf16.mxu0 %v952
    %1014 = vmatpush1.bf16.msra.mxu0 %v951
    %1015 = vmatprep.subr.bf16.mxu0 %v956
    %1016 = vmatpush1.bf16.msra.mxu0 %v955
    %1017 = vmatprep.subr.bf16.mxu0 %v960
    %1018 = vmatpush1.bf16.msra.mxu0 %v959
    %1019 = vmatprep.subr.bf16.mxu0 %v964
    %1020 = vmatpush1.bf16.msra.mxu0 %v963
    %1021 = vmatprep.subr.bf16.mxu0 %v968
    %1022 = vmatpush1.bf16.msra.mxu0 %v967
    %1023 = vmatprep.subr.bf16.mxu0 %v972
    %1024 = vmatpush1.bf16.msra.mxu0 %v971
    %1025 = vmatprep.subr.bf16.mxu0 %v976
    %1026 = vmatpush1.bf16.msra.mxu0 %v975
    %1027 = vmatprep.subr.bf16.mxu0 0
    %1028 = vmatpush1.bf16.msra.mxu0 0
    %1029 = vmatprep.subr.bf16.mxu0 0
    %1030 = vmatpush1.bf16.msra.mxu0 0
    %1031 = vmatprep.subr.bf16.mxu0 0
    %1032 = vmatpush1.bf16.msra.mxu0 0
    %1033 = vmatprep.subr.bf16.mxu0 0
    %1034 = vmatpush1.bf16.msra.mxu0 0
    %1035 = vmatprep.subr.bf16.mxu0 0
    %1036 = vmatpush1.bf16.msra.mxu0 0
    %1037 = vmatprep.subr.bf16.mxu0 0
    %1038 = vmatpush1.bf16.msra.mxu0 0
    %1039 = vmatprep.subr.bf16.mxu0 0
    %1040 = vmatpush1.bf16.msra.mxu0 0
    %1041 = vmatprep.subr.bf16.mxu0 0
    %1042 = vmatpush1.bf16.msra.mxu0 0
    %1043 = vmatprep.mubr.bf16.mxu0 0
    %1044 = vmatmul.mubr.bf16.gmra.mrb[0].mxu0 0
    %v1045 = vpop.f32.mrb[0].mxu0
    %v1046 = vadd.f32 0.0, %v1045
    %v1047 = vpop.f32.mrb[0].mxu0
    %v1048 = vadd.f32 0.0, %v1047
    %v1049 = vpop.f32.mrb[0].mxu0
    %v1050 = vpop.f32.mrb[0].mxu0
    %1051 = vdwg.mxu0
    %1052 = vmatprep.subr.bf16.mxu0 %v950
    %1053 = vmatpush1.bf16.msra.mxu0 %v949
    %1054 = vmatprep.subr.bf16.mxu0 %v954
    %1055 = vmatpush1.bf16.msra.mxu0 %v953
    %1056 = vmatprep.subr.bf16.mxu0 %v958
    %1057 = vmatpush1.bf16.msra.mxu0 %v957
    %1058 = vmatprep.subr.bf16.mxu0 %v962
    %1059 = vmatpush1.bf16.msra.mxu0 %v961
    %1060 = vmatprep.subr.bf16.mxu0 %v966
    %1061 = vmatpush1.bf16.msra.mxu0 %v965
    %1062 = vmatprep.subr.bf16.mxu0 %v970
    %1063 = vmatpush1.bf16.msra.mxu0 %v969
    %1064 = vmatprep.subr.bf16.mxu0 %v974
    %1065 = vmatpush1.bf16.msra.mxu0 %v973
    %1066 = vmatprep.subr.bf16.mxu0 %v978
    %1067 = vmatpush1.bf16.msra.mxu0 %v977
    %1068 = vmatprep.subr.bf16.mxu0 0
    %1069 = vmatpush1.bf16.msra.mxu0 0
    %1070 = vmatprep.subr.bf16.mxu0 0
    %1071 = vmatpush1.bf16.msra.mxu0 0
    %1072 = vmatprep.subr.bf16.mxu0 0
    %1073 = vmatpush1.bf16.msra.mxu0 0
    %1074 = vmatprep.subr.bf16.mxu0 0
    %1075 = vmatpush1.bf16.msra.mxu0 0
    %1076 = vmatprep.subr.bf16.mxu0 0
    %1077 = vmatpush1.bf16.msra.mxu0 0
    %1078 = vmatprep.subr.bf16.mxu0 0
    %1079 = vmatpush1.bf16.msra.mxu0 0
    %1080 = vmatprep.subr.bf16.mxu0 0
    %1081 = vmatpush1.bf16.msra.mxu0 0
    %1082 = vmatprep.subr.bf16.mxu0 0
    %1083 = vmatpush1.bf16.msra.mxu0 0
    %1084 = vmatprep.mubr.bf16.mxu0 0
    %1085 = vmatmul.mubr.bf16.gmra.mrb[0].mxu0 0
    %v1086 = vpop.f32.mrb[0].mxu0
    %v1087 = vadd.f32 0.0, %v1086
    %v1088 = vpop.f32.mrb[0].mxu0
    %v1089 = vadd.f32 0.0, %v1088
    %v1090 = vpop.f32.mrb[0].mxu0
    %v1091 = vpop.f32.mrb[0].mxu0
    %1092 = vdwg.mxu0
    %v1125 = vunpack.c.l.b16 %v787
    %v1126 = vunpack.c.h.b16 %v787
    %v1127 = vunpack.c.l.b16 %v788
    %v1128 = vunpack.c.h.b16 %v788
    %v1129 = vunpack.c.l.b16 %v789
    %v1130 = vunpack.c.h.b16 %v789
    %v1131 = vunpack.c.l.b16 %v790
    %v1132 = vunpack.c.h.b16 %v790
    %v1133 = vunpack.c.l.b16 %v791
    %v1134 = vunpack.c.h.b16 %v791
    %v1135 = vunpack.c.l.b16 %v792
    %v1136 = vunpack.c.h.b16 %v792
    %v1137 = vunpack.c.l.b16 %v793
    %v1138 = vunpack.c.h.b16 %v793
    %v1139 = vunpack.c.l.b16 %v794
    %v1140 = vunpack.c.h.b16 %v794
    %v1141 = vunpack.c.l.b16 %v795
    %v1142 = vunpack.c.h.b16 %v795
    %v1143 = vunpack.c.l.b16 %v796
    %v1144 = vunpack.c.h.b16 %v796
    %v1145 = vunpack.c.l.b16 %v797
    %v1146 = vunpack.c.h.b16 %v797
    %v1147 = vunpack.c.l.b16 %v798
    %v1148 = vunpack.c.h.b16 %v798
    %v1149 = vunpack.c.l.b16 %v799
    %v1150 = vunpack.c.h.b16 %v799
    %v1151 = vunpack.c.l.b16 %v800
    %v1152 = vunpack.c.h.b16 %v800
    %v1153 = vunpack.c.l.b16 %v801
    %v1154 = vunpack.c.h.b16 %v801
    %v1155 = vunpack.c.l.b16 %v802
    %v1156 = vunpack.c.h.b16 %v802
    %v1157 = vunpack.c.l.b16 %v803
    %v1158 = vunpack.c.h.b16 %v803
    %v1159 = vunpack.c.l.b16 %v804
    %v1160 = vunpack.c.h.b16 %v804
    %v1161 = vunpack.c.l.b16 %v805
    %v1162 = vunpack.c.h.b16 %v805
    %v1163 = vunpack.c.l.b16 %v806
    %v1164 = vunpack.c.h.b16 %v806
    %v1165 = vunpack.c.l.b16 %v807
    %v1166 = vunpack.c.h.b16 %v807
    %v1167 = vunpack.c.l.b16 %v808
    %v1168 = vunpack.c.h.b16 %v808
    %v1169 = vunpack.c.l.b16 %v809
    %v1170 = vunpack.c.h.b16 %v809
    %v1171 = vunpack.c.l.b16 %v810
    %v1172 = vunpack.c.h.b16 %v810
    %v1173 = vunpack.c.l.b16 %v811
    %v1174 = vunpack.c.h.b16 %v811
    %v1175 = vunpack.c.l.b16 %v812
    %v1176 = vunpack.c.h.b16 %v812
    %v1177 = vunpack.c.l.b16 %v813
    %v1178 = vunpack.c.h.b16 %v813
    %v1179 = vunpack.c.l.b16 %v814
    %v1180 = vunpack.c.h.b16 %v814
    %v1181 = vunpack.c.l.b16 %v815
    %v1182 = vunpack.c.h.b16 %v815
    %v1183 = vunpack.c.l.b16 %v816
    %v1184 = vunpack.c.h.b16 %v816
    %v1185 = vunpack.c.l.b16 %v817
    %v1186 = vunpack.c.h.b16 %v817
    %v1187 = vunpack.c.l.b16 %v818
    %v1188 = vunpack.c.h.b16 %v818
    %v1189 = vpack.c.b16 %v1129, %v1125
    %v1190 = vpack.c.b16 %v1130, %v1126
    %v1191 = vpack.c.b16 %v1131, %v1127
    %v1192 = vpack.c.b16 %v1132, %v1128
    %v1193 = vpack.c.b16 %v1137, %v1133
    %v1194 = vpack.c.b16 %v1138, %v1134
    %v1195 = vpack.c.b16 %v1139, %v1135
    %v1196 = vpack.c.b16 %v1140, %v1136
    %v1197 = vpack.c.b16 %v1145, %v1141
    %v1198 = vpack.c.b16 %v1146, %v1142
    %v1199 = vpack.c.b16 %v1147, %v1143
    %v1200 = vpack.c.b16 %v1148, %v1144
    %v1201 = vpack.c.b16 %v1153, %v1149
    %v1202 = vpack.c.b16 %v1154, %v1150
    %v1203 = vpack.c.b16 %v1155, %v1151
    %v1204 = vpack.c.b16 %v1156, %v1152
    %v1205 = vpack.c.b16 %v1161, %v1157
    %v1206 = vpack.c.b16 %v1162, %v1158
    %v1207 = vpack.c.b16 %v1163, %v1159
    %v1208 = vpack.c.b16 %v1164, %v1160
    %v1209 = vpack.c.b16 %v1169, %v1165
    %v1210 = vpack.c.b16 %v1170, %v1166
    %v1211 = vpack.c.b16 %v1171, %v1167
    %v1212 = vpack.c.b16 %v1172, %v1168
    %v1213 = vpack.c.b16 %v1177, %v1173
    %v1214 = vpack.c.b16 %v1178, %v1174
    %v1215 = vpack.c.b16 %v1179, %v1175
    %v1216 = vpack.c.b16 %v1180, %v1176
    %v1217 = vpack.c.b16 %v1185, %v1181
    %v1218 = vpack.c.b16 %v1186, %v1182
    %v1219 = vpack.c.b16 %v1187, %v1183
    %v1220 = vpack.c.b16 %v1188, %v1184
    %1253 = vmatprep.subr.bf16.mxu0 %v1190
    %1254 = vmatpush1.bf16.msra.mxu0 %v1189
    %1255 = vmatprep.subr.bf16.mxu0 %v1194
    %1256 = vmatpush1.bf16.msra.mxu0 %v1193
    %1257 = vmatprep.subr.bf16.mxu0 %v1198
    %1258 = vmatpush1.bf16.msra.mxu0 %v1197
    %1259 = vmatprep.subr.bf16.mxu0 %v1202
    %1260 = vmatpush1.bf16.msra.mxu0 %v1201
    %1261 = vmatprep.subr.bf16.mxu0 %v1206
    %1262 = vmatpush1.bf16.msra.mxu0 %v1205
    %1263 = vmatprep.subr.bf16.mxu0 %v1210
    %1264 = vmatpush1.bf16.msra.mxu0 %v1209
    %1265 = vmatprep.subr.bf16.mxu0 %v1214
    %1266 = vmatpush1.bf16.msra.mxu0 %v1213
    %1267 = vmatprep.subr.bf16.mxu0 %v1218
    %1268 = vmatpush1.bf16.msra.mxu0 %v1217
    %1269 = vmatprep.subr.bf16.mxu0 0
    %1270 = vmatpush1.bf16.msra.mxu0 0
    %1271 = vmatprep.subr.bf16.mxu0 0
    %1272 = vmatpush1.bf16.msra.mxu0 0
    %1273 = vmatprep.subr.bf16.mxu0 0
    %1274 = vmatpush1.bf16.msra.mxu0 0
    %1275 = vmatprep.subr.bf16.mxu0 0
    %1276 = vmatpush1.bf16.msra.mxu0 0
    %1277 = vmatprep.subr.bf16.mxu0 0
    %1278 = vmatpush1.bf16.msra.mxu0 0
    %1279 = vmatprep.subr.bf16.mxu0 0
    %1280 = vmatpush1.bf16.msra.mxu0 0
    %1281 = vmatprep.subr.bf16.mxu0 0
    %1282 = vmatpush1.bf16.msra.mxu0 0
    %1283 = vmatprep.subr.bf16.mxu0 0
    %1284 = vmatpush1.bf16.msra.mxu0 0
    %1285 = vmatprep.mubr.bf16.mxu0 0
    %1286 = vmatmul.mubr.bf16.gmra.mrb[0].mxu0 %v786
    %v1287 = vpop.f32.mrb[0].mxu0
    %v1288 = vadd.f32 %v1046, %v1287
    %v1289 = vpop.f32.mrb[0].mxu0
    %v1290 = vadd.f32 %v1048, %v1289
    %v1291 = vpop.f32.mrb[0].mxu0
    %v1292 = vpop.f32.mrb[0].mxu0
    %1293 = vdwg.mxu0
    %1294 = vmatprep.subr.bf16.mxu0 %v1192
    %1295 = vmatpush1.bf16.msra.mxu0 %v1191
    %1296 = vmatprep.subr.bf16.mxu0 %v1196
    %1297 = vmatpush1.bf16.msra.mxu0 %v1195
    %1298 = vmatprep.subr.bf16.mxu0 %v1200
    %1299 = vmatpush1.bf16.msra.mxu0 %v1199
    %1300 = vmatprep.subr.bf16.mxu0 %v1204
    %1301 = vmatpush1.bf16.msra.mxu0 %v1203
    %1302 = vmatprep.subr.bf16.mxu0 %v1208
    %1303 = vmatpush1.bf16.msra.mxu0 %v1207
    %1304 = vmatprep.subr.bf16.mxu0 %v1212
    %1305 = vmatpush1.bf16.msra.mxu0 %v1211
    %1306 = vmatprep.subr.bf16.mxu0 %v1216
    %1307 = vmatpush1.bf16.msra.mxu0 %v1215
    %1308 = vmatprep.subr.bf16.mxu0 %v1220
    %1309 = vmatpush1.bf16.msra.mxu0 %v1219
    %1310 = vmatprep.subr.bf16.mxu0 0
    %1311 = vmatpush1.bf16.msra.mxu0 0
    %1312 = vmatprep.subr.bf16.mxu0 0
    %1313 = vmatpush1.bf16.msra.mxu0 0
    %1314 = vmatprep.subr.bf16.mxu0 0
    %1315 = vmatpush1.bf16.msra.mxu0 0
    %1316 = vmatprep.subr.bf16.mxu0 0
    %1317 = vmatpush1.bf16.msra.mxu0 0
    %1318 = vmatprep.subr.bf16.mxu0 0
    %1319 = vmatpush1.bf16.msra.mxu0 0
    %1320 = vmatprep.subr.bf16.mxu0 0
    %1321 = vmatpush1.bf16.msra.mxu0 0
    %1322 = vmatprep.subr.bf16.mxu0 0
    %1323 = vmatpush1.bf16.msra.mxu0 0
    %1324 = vmatprep.subr.bf16.mxu0 0
    %1325 = vmatpush1.bf16.msra.mxu0 0
    %1326 = vmatprep.mubr.bf16.mxu0 0
    %1327 = vmatmul.mubr.bf16.gmra.mrb[0].mxu0 %v786
    %v1328 = vpop.f32.mrb[0].mxu0
    %v1329 = vadd.f32 %v1087, %v1328
    %v1330 = vpop.f32.mrb[0].mxu0
    %v1331 = vadd.f32 %v1089, %v1330
    %v1332 = vpop.f32.mrb[0].mxu0
    %v1333 = vpop.f32.mrb[0].mxu0
    %1334 = vdwg.mxu0
    %v1335 = vadd.f32 %v1288, %v466
    %v1336 = vadd.f32 %v1290, %v470
    %v1337 = vadd.f32 %v1329, %v474
    %v1338 = vadd.f32 %v1331, %v478
    %v1339 = vmul.f32 %v1335, 0.5
    %v1340 = vtanh.pop %v1339
    %v1341 = vmul.f32 %v1340, 0.5
    %v1342 = vadd.f32 %v1341, 0.5
    %v1343 = vmul.f32 %v1336, 0.5
    %v1344 = vtanh.pop %v1343
    %v1345 = vmul.f32 %v1344, 0.5
    %v1346 = vadd.f32 %v1345, 0.5
    %v1347 = vtanh.pop %v1337
    %v1348 = vmul.f32 %v1338, 0.5
    %v1349 = vtanh.pop %v1348
    %v1350 = vmul.f32 %v1349, 0.5
    %v1351 = vadd.f32 %v1350, 0.5
    %v1352 = vmul.f32 %v1346, 0.0
    %v1353 = vmul.f32 %v1342, %v1347
    %v1354 = vadd.f32 %v1352, %v1353
    %v1355 = vtanh.pop %v1354
    %v1356 = vmul.f32 %v1351, %v1355
    %s1357 = smul.u32 1, 4
    %s1358 = smul.addr %s1357, 8
    %s1359 = scalar_lea.vmem [#allocation2], %s1358
    %v1360 = vld [vmem:[%s1359] sm:$0xff]
    %v1361 = vld [vmem:[%s1359 + $0x8] sm:$0xff]
    %v1362 = vld [vmem:[%s1359 + $0x10] sm:$0xff]
    %v1363 = vld [vmem:[%s1359 + $0x18] sm:$0xff]
    %1364 = vmatprep.subr.bf16.mxu0 %v619
    %1365 = vmatpush1.bf16.msra.mxu0 %v618
    %1366 = vmatprep.subr.bf16.mxu0 %v623
    %1367 = vmatpush1.bf16.msra.mxu0 %v622
    %1368 = vmatprep.subr.bf16.mxu0 %v627
    %1369 = vmatpush1.bf16.msra.mxu0 %v626
    %1370 = vmatprep.subr.bf16.mxu0 %v631
    %1371 = vmatpush1.bf16.msra.mxu0 %v630
    %1372 = vmatprep.subr.bf16.mxu0 %v635
    %1373 = vmatpush1.bf16.msra.mxu0 %v634
    %1374 = vmatprep.subr.bf16.mxu0 %v639
    %1375 = vmatpush1.bf16.msra.mxu0 %v638
    %1376 = vmatprep.subr.bf16.mxu0 %v643
    %1377 = vmatpush1.bf16.msra.mxu0 %v642
    %1378 = vmatprep.subr.bf16.mxu0 %v647
    %1379 = vmatpush1.bf16.msra.mxu0 %v646
    %1380 = vmatprep.subr.bf16.mxu0 0
    %1381 = vmatpush1.bf16.msra.mxu0 0
    %1382 = vmatprep.subr.bf16.mxu0 0
    %1383 = vmatpush1.bf16.msra.mxu0 0
    %1384 = vmatprep.subr.bf16.mxu0 0
    %1385 = vmatpush1.bf16.msra.mxu0 0
    %1386 = vmatprep.subr.bf16.mxu0 0
    %1387 = vmatpush1.bf16.msra.mxu0 0
    %1388 = vmatprep.subr.bf16.mxu0 0
    %1389 = vmatpush1.bf16.msra.mxu0 0
    %1390 = vmatprep.subr.bf16.mxu0 0
    %1391 = vmatpush1.bf16.msra.mxu0 0
    %1392 = vmatprep.subr.bf16.mxu0 0
    %1393 = vmatpush1.bf16.msra.mxu0 0
    %1394 = vmatprep.subr.bf16.mxu0 0
    %1395 = vmatpush1.bf16.msra.mxu0 0
    %1396 = vmatprep.mubr.bf16.mxu0 0
    %1397 = vmatmul.mubr.bf16.gmra.mrb[0].mxu0 %v786
    %v1398 = vpop.f32.mrb[0].mxu0
    %v1399 = vadd.f32 0.0, %v1398
    %v1400 = vpop.f32.mrb[0].mxu0
    %v1401 = vadd.f32 0.0, %v1400
    %v1402 = vpop.f32.mrb[0].mxu0
    %v1403 = vpop.f32.mrb[0].mxu0
    %1404 = vdwg.mxu0
    %1405 = vmatprep.subr.bf16.mxu0 %v621
    %1406 = vmatpush1.bf16.msra.mxu0 %v620
    %1407 = vmatprep.subr.bf16.mxu0 %v625
    %1408 = vmatpush1.bf16.msra.mxu0 %v624
    %1409 = vmatprep.subr.bf16.mxu0 %v629
    %1410 = vmatpush1.bf16.msra.mxu0 %v628
    %1411 = vmatprep.subr.bf16.mxu0 %v633
    %1412 = vmatpush1.bf16.msra.mxu0 %v632
    %1413 = vmatprep.subr.bf16.mxu0 %v637
    %1414 = vmatpush1.bf16.msra.mxu0 %v636
    %1415 = vmatprep.subr.bf16.mxu0 %v641
    %1416 = vmatpush1.bf16.msra.mxu0 %v640
    %1417 = vmatprep.subr.bf16.mxu0 %v645
    %1418 = vmatpush1.bf16.msra.mxu0 %v644
    %1419 = vmatprep.subr.bf16.mxu0 %v649
    %1420 = vmatpush1.bf16.msra.mxu0 %v648
    %1421 = vmatprep.subr.bf16.mxu0 0
    %1422 = vmatpush1.bf16.msra.mxu0 0
    %1423 = vmatprep.subr.bf16.mxu0 0
    %1424 = vmatpush1.bf16.msra.mxu0 0
    %1425 = vmatprep.subr.bf16.mxu0 0
    %1426 = vmatpush1.bf16.msra.mxu0 0
    %1427 = vmatprep.subr.bf16.mxu0 0
    %1428 = vmatpush1.bf16.msra.mxu0 0
    %1429 = vmatprep.subr.bf16.mxu0 0
    %1430 = vmatpush1.bf16.msra.mxu0 0
    %1431 = vmatprep.subr.bf16.mxu0 0
    %1432 = vmatpush1.bf16.msra.mxu0 0
    %1433 = vmatprep.subr.bf16.mxu0 0
    %1434 = vmatpush1.bf16.msra.mxu0 0
    %1435 = vmatprep.subr.bf16.mxu0 0
    %1436 = vmatpush1.bf16.msra.mxu0 0
    %1437 = vmatprep.mubr.bf16.mxu0 0
    %1438 = vmatmul.mubr.bf16.gmra.mrb[0].mxu0 %v786
    %v1439 = vpop.f32.mrb[0].mxu0
    %v1440 = vadd.f32 0.0, %v1439
    %v1441 = vpop.f32.mrb[0].mxu0
    %v1442 = vadd.f32 0.0, %v1441
    %v1443 = vpop.f32.mrb[0].mxu0
    %v1444 = vpop.f32.mrb[0].mxu0
    %1445 = vdwg.mxu0
    %v1446 = vadd.f32 %v1360, %v1399
    %v1447 = vadd.f32 %v1361, %v1401
    %v1448 = vadd.f32 %v1362, %v1440
    %v1449 = vadd.f32 %v1363, %v1442
    %v1450 = vmul.f32 %v1446, 0.5
    %v1451 = vtanh.pop %v1450
    %v1452 = vmul.f32 %v1451, 0.5
    %v1453 = vadd.f32 %v1452, 0.5
    %v1454 = vmul.f32 %v1447, 0.5
    %v1455 = vtanh.pop %v1454
    %v1456 = vmul.f32 %v1455, 0.5
    %v1457 = vadd.f32 %v1456, 0.5
    %v1458 = vtanh.pop %v1448
    %v1459 = vmul.f32 %v1449, 0.5
    %v1460 = vtanh.pop %v1459
    %v1461 = vmul.f32 %v1460, 0.5
    %v1462 = vadd.f32 %v1461, 0.5
    %v1463 = vmul.f32 %v1457, %v783
    %v1464 = vmul.f32 %v1453, %v1458
    %v1465 = vadd.f32 %v1463, %v1464
    %v1466 = vtanh.pop %v1465
    %v1467 = vmul.f32 %v1462, %v1466
    %v1468 = vpack.c.bf16 %v1467, %v1467
    %v1469 = vpack.c.bf16 %v1356, %v1356
    %1470 = vmatprep.subr.bf16.mxu0 %v948
    %1471 = vmatpush1.bf16.msra.mxu0 %v947
    %1472 = vmatprep.subr.bf16.mxu0 %v952
    %1473 = vmatpush1.bf16.msra.mxu0 %v951
    %1474 = vmatprep.subr.bf16.mxu0 %v956
    %1475 = vmatpush1.bf16.msra.mxu0 %v955
    %1476 = vmatprep.subr.bf16.mxu0 %v960
    %1477 = vmatpush1.bf16.msra.mxu0 %v959
    %1478 = vmatprep.subr.bf16.mxu0 %v964
    %1479 = vmatpush1.bf16.msra.mxu0 %v963
    %1480 = vmatprep.subr.bf16.mxu0 %v968
    %1481 = vmatpush1.bf16.msra.mxu0 %v967
    %1482 = vmatprep.subr.bf16.mxu0 %v972
    %1483 = vmatpush1.bf16.msra.mxu0 %v971
    %1484 = vmatprep.subr.bf16.mxu0 %v976
    %1485 = vmatpush1.bf16.msra.mxu0 %v975
    %1486 = vmatprep.subr.bf16.mxu0 0
    %1487 = vmatpush1.bf16.msra.mxu0 0
    %1488 = vmatprep.subr.bf16.mxu0 0
    %1489 = vmatpush1.bf16.msra.mxu0 0
    %1490 = vmatprep.subr.bf16.mxu0 0
    %1491 = vmatpush1.bf16.msra.mxu0 0
    %1492 = vmatprep.subr.bf16.mxu0 0
    %1493 = vmatpush1.bf16.msra.mxu0 0
    %1494 = vmatprep.subr.bf16.mxu0 0
    %1495 = vmatpush1.bf16.msra.mxu0 0
    %1496 = vmatprep.subr.bf16.mxu0 0
    %1497 = vmatpush1.bf16.msra.mxu0 0
    %1498 = vmatprep.subr.bf16.mxu0 0
    %1499 = vmatpush1.bf16.msra.mxu0 0
    %1500 = vmatprep.subr.bf16.mxu0 0
    %1501 = vmatpush1.bf16.msra.mxu0 0
    %1502 = vmatprep.mubr.bf16.mxu0 0
    %1503 = vmatmul.mubr.bf16.gmra.mrb[0].mxu0 %v1469
    %v1504 = vpop.f32.mrb[0].mxu0
    %v1505 = vadd.f32 0.0, %v1504
    %v1506 = vpop.f32.mrb[0].mxu0
    %v1507 = vadd.f32 0.0, %v1506
    %v1508 = vpop.f32.mrb[0].mxu0
    %v1509 = vpop.f32.mrb[0].mxu0
    %1510 = vdwg.mxu0
    %1511 = vmatprep.subr.bf16.mxu0 %v950
    %1512 = vmatpush1.bf16.msra.mxu0 %v949
    %1513 = vmatprep.subr.bf16.mxu0 %v954
    %1514 = vmatpush1.bf16.msra.mxu0 %v953
    %1515 = vmatprep.subr.bf16.mxu0 %v958
    %1516 = vmatpush1.bf16.msra.mxu0 %v957
    %1517 = vmatprep.subr.bf16.mxu0 %v962
    %1518 = vmatpush1.bf16.msra.mxu0 %v961
    %1519 = vmatprep.subr.bf16.mxu0 %v966
    %1520 = vmatpush1.bf16.msra.mxu0 %v965
    %1521 = vmatprep.subr.bf16.mxu0 %v970
    %1522 = vmatpush1.bf16.msra.mxu0 %v969
    %1523 = vmatprep.subr.bf16.mxu0 %v974
    %1524 = vmatpush1.bf16.msra.mxu0 %v973
    %1525 = vmatprep.subr.bf16.mxu0 %v978
    %1526 = vmatpush1.bf16.msra.mxu0 %v977
    %1527 = vmatprep.subr.bf16.mxu0 0
    %1528 = vmatpush1.bf16.msra.mxu0 0
    %1529 = vmatprep.subr.bf16.mxu0 0
    %1530 = vmatpush1.bf16.msra.mxu0 0
    %1531 = vmatprep.subr.bf16.mxu0 0
    %1532 = vmatpush1.bf16.msra.mxu0 0
    %1533 = vmatprep.subr.bf16.mxu0 0
    %1534 = vmatpush1.bf16.msra.mxu0 0
    %1535 = vmatprep.subr.bf16.mxu0 0
    %1536 = vmatpush1.bf16.msra.mxu0 0
    %1537 = vmatprep.subr.bf16.mxu0 0
    %1538 = vmatpush1.bf16.msra.mxu0 0
    %1539 = vmatprep.subr.bf16.mxu0 0
    %1540 = vmatpush1.bf16.msra.mxu0 0
    %1541 = vmatprep.subr.bf16.mxu0 0
    %1542 = vmatpush1.bf16.msra.mxu0 0
    %1543 = vmatprep.mubr.bf16.mxu0 0
    %1544 = vmatmul.mubr.bf16.gmra.mrb[0].mxu0 %v1469
    %v1545 = vpop.f32.mrb[0].mxu0
    %v1546 = vadd.f32 0.0, %v1545
    %v1547 = vpop.f32.mrb[0].mxu0
    %v1548 = vadd.f32 0.0, %v1547
    %v1549 = vpop.f32.mrb[0].mxu0
    %v1550 = vpop.f32.mrb[0].mxu0
    %1551 = vdwg.mxu0
    %1552 = vmatprep.subr.bf16.mxu0 %v1190
    %1553 = vmatpush1.bf16.msra.mxu0 %v1189
    %1554 = vmatprep.subr.bf16.mxu0 %v1194
    %1555 = vmatpush1.bf16.msra.mxu0 %v1193
    %1556 = vmatprep.subr.bf16.mxu0 %v1198
    %1557 = vmatpush1.bf16.msra.mxu0 %v1197
    %1558 = vmatprep.subr.bf16.mxu0 %v1202
    %1559 = vmatpush1.bf16.msra.mxu0 %v1201
    %1560 = vmatprep.subr.bf16.mxu0 %v1206
    %1561 = vmatpush1.bf16.msra.mxu0 %v1205
    %1562 = vmatprep.subr.bf16.mxu0 %v1210
    %1563 = vmatpush1.bf16.msra.mxu0 %v1209
    %1564 = vmatprep.subr.bf16.mxu0 %v1214
    %1565 = vmatpush1.bf16.msra.mxu0 %v1213
    %1566 = vmatprep.subr.bf16.mxu0 %v1218
    %1567 = vmatpush1.bf16.msra.mxu0 %v1217
    %1568 = vmatprep.subr.bf16.mxu0 0
    %1569 = vmatpush1.bf16.msra.mxu0 0
    %1570 = vmatprep.subr.bf16.mxu0 0
    %1571 = vmatpush1.bf16.msra.mxu0 0
    %1572 = vmatprep.subr.bf16.mxu0 0
    %1573 = vmatpush1.bf16.msra.mxu0 0
    %1574 = vmatprep.subr.bf16.mxu0 0
    %1575 = vmatpush1.bf16.msra.mxu0 0
    %1576 = vmatprep.subr.bf16.mxu0 0
    %1577 = vmatpush1.bf16.msra.mxu0 0
    %1578 = vmatprep.subr.bf16.mxu0 0
    %1579 = vmatpush1.bf16.msra.mxu0 0
    %1580 = vmatprep.subr.bf16.mxu0 0
    %1581 = vmatpush1.bf16.msra.mxu0 0
    %1582 = vmatprep.subr.bf16.mxu0 0
    %1583 = vmatpush1.bf16.msra.mxu0 0
    %1584 = vmatprep.mubr.bf16.mxu0 0
    %1585 = vmatmul.mubr.bf16.gmra.mrb[0].mxu0 %v1468
    %v1586 = vpop.f32.mrb[0].mxu0
    %v1587 = vadd.f32 %v1505, %v1586
    %v1588 = vpop.f32.mrb[0].mxu0
    %v1589 = vadd.f32 %v1507, %v1588
    %v1590 = vpop.f32.mrb[0].mxu0
    %v1591 = vpop.f32.mrb[0].mxu0
    %1592 = vdwg.mxu0
    %1593 = vmatprep.subr.bf16.mxu0 %v1192
    %1594 = vmatpush1.bf16.msra.mxu0 %v1191
    %1595 = vmatprep.subr.bf16.mxu0 %v1196
    %1596 = vmatpush1.bf16.msra.mxu0 %v1195
    %1597 = vmatprep.subr.bf16.mxu0 %v1200
    %1598 = vmatpush1.bf16.msra.mxu0 %v1199
    %1599 = vmatprep.subr.bf16.mxu0 %v1204
    %1600 = vmatpush1.bf16.msra.mxu0 %v1203
    %1601 = vmatprep.subr.bf16.mxu0 %v1208
    %1602 = vmatpush1.bf16.msra.mxu0 %v1207
    %1603 = vmatprep.subr.bf16.mxu0 %v1212
    %1604 = vmatpush1.bf16.msra.mxu0 %v1211
    %1605 = vmatprep.subr.bf16.mxu0 %v1216
    %1606 = vmatpush1.bf16.msra.mxu0 %v1215
    %1607 = vmatprep.subr.bf16.mxu0 %v1220
    %1608 = vmatpush1.bf16.msra.mxu0 %v1219
    %1609 = vmatprep.subr.bf16.mxu0 0
    %1610 = vmatpush1.bf16.msra.mxu0 0
    %1611 = vmatprep.subr.bf16.mxu0 0
    %1612 = vmatpush1.bf16.msra.mxu0 0
    %1613 = vmatprep.subr.bf16.mxu0 0
    %1614 = vmatpush1.bf16.msra.mxu0 0
    %1615 = vmatprep.subr.bf16.mxu0 0
    %1616 = vmatpush1.bf16.msra.mxu0 0
    %1617 = vmatprep.subr.bf16.mxu0 0
    %1618 = vmatpush1.bf16.msra.mxu0 0
    %1619 = vmatprep.subr.bf16.mxu0 0
    %1620 = vmatpush1.bf16.msra.mxu0 0
    %1621 = vmatprep.subr.bf16.mxu0 0
    %1622 = vmatpush1.bf16.msra.mxu0 0
    %1623 = vmatprep.subr.bf16.mxu0 0
    %1624 = vmatpush1.bf16.msra.mxu0 0
    %1625 = vmatprep.mubr.bf16.mxu0 0
    %1626 = vmatmul.mubr.bf16.gmra.mrb[0].mxu0 %v1468
    %v1627 = vpop.f32.mrb[0].mxu0
    %v1628 = vadd.f32 %v1546, %v1627
    %v1629 = vpop.f32.mrb[0].mxu0
    %v1630 = vadd.f32 %v1548, %v1629
    %v1631 = vpop.f32.mrb[0].mxu0
    %v1632 = vpop.f32.mrb[0].mxu0
    %1633 = vdwg.mxu0
    %v1634 = vadd.f32 %v1587, %v466
    %v1635 = vadd.f32 %v1589, %v470
    %v1636 = vadd.f32 %v1628, %v474
    %v1637 = vadd.f32 %v1630, %v478
    %v1638 = vmul.f32 %v1634, 0.5
    %v1639 = vtanh.pop %v1638
    %v1640 = vmul.f32 %v1639, 0.5
    %v1641 = vadd.f32 %v1640, 0.5
    %v1642 = vmul.f32 %v1635, 0.5
    %v1643 = vtanh.pop %v1642
    %v1644 = vmul.f32 %v1643, 0.5
    %v1645 = vadd.f32 %v1644, 0.5
    %v1646 = vtanh.pop %v1636
    %v1647 = vmul.f32 %v1637, 0.5
    %v1648 = vtanh.pop %v1647
    %v1649 = vmul.f32 %v1648, 0.5
    %v1650 = vadd.f32 %v1649, 0.5
    %v1651 = vmul.f32 %v1645, %v1354
    %v1652 = vmul.f32 %v1641, %v1646
    %v1653 = vadd.f32 %v1651, %v1652
    %v1654 = vtanh.pop %v1653
    %v1655 = vmul.f32 %v1650, %v1654
    %s1656 = smul.u32 2, 4
    %s1657 = smul.addr %s1656, 8
    %s1658 = scalar_lea.vmem [#allocation2], %s1657
    %v1659 = vld [vmem:[%s1658] sm:$0xff]
    %v1660 = vld [vmem:[%s1658 + $0x8] sm:$0xff]
    %v1661 = vld [vmem:[%s1658 + $0x10] sm:$0xff]
    %v1662 = vld [vmem:[%s1658 + $0x18] sm:$0xff]
    %1663 = vmatprep.subr.bf16.mxu0 %v619
    %1664 = vmatpush1.bf16.msra.mxu0 %v618
    %1665 = vmatprep.subr.bf16.mxu0 %v623
    %1666 = vmatpush1.bf16.msra.mxu0 %v622
    %1667 = vmatprep.subr.bf16.mxu0 %v627
    %1668 = vmatpush1.bf16.msra.mxu0 %v626
    %1669 = vmatprep.subr.bf16.mxu0 %v631
    %1670 = vmatpush1.bf16.msra.mxu0 %v630
    %1671 = vmatprep.subr.bf16.mxu0 %v635
    %1672 = vmatpush1.bf16.msra.mxu0 %v634
    %1673 = vmatprep.subr.bf16.mxu0 %v639
    %1674 = vmatpush1.bf16.msra.mxu0 %v638
    %1675 = vmatprep.subr.bf16.mxu0 %v643
    %1676 = vmatpush1.bf16.msra.mxu0 %v642
    %1677 = vmatprep.subr.bf16.mxu0 %v647
    %1678 = vmatpush1.bf16.msra.mxu0 %v646
    %1679 = vmatprep.subr.bf16.mxu0 0
    %1680 = vmatpush1.bf16.msra.mxu0 0
    %1681 = vmatprep.subr.bf16.mxu0 0
    %1682 = vmatpush1.bf16.msra.mxu0 0
    %1683 = vmatprep.subr.bf16.mxu0 0
    %1684 = vmatpush1.bf16.msra.mxu0 0
    %1685 = vmatprep.subr.bf16.mxu0 0
    %1686 = vmatpush1.bf16.msra.mxu0 0
    %1687 = vmatprep.subr.bf16.mxu0 0
    %1688 = vmatpush1.bf16.msra.mxu0 0
    %1689 = vmatprep.subr.bf16.mxu0 0
    %1690 = vmatpush1.bf16.msra.mxu0 0
    %1691 = vmatprep.subr.bf16.mxu0 0
    %1692 = vmatpush1.bf16.msra.mxu0 0
    %1693 = vmatprep.subr.bf16.mxu0 0
    %1694 = vmatpush1.bf16.msra.mxu0 0
    %1695 = vmatprep.mubr.bf16.mxu0 0
    %1696 = vmatmul.mubr.bf16.gmra.mrb[0].mxu0 %v1468
    %v1697 = vpop.f32.mrb[0].mxu0
    %v1698 = vadd.f32 0.0, %v1697
    %v1699 = vpop.f32.mrb[0].mxu0
    %v1700 = vadd.f32 0.0, %v1699
    %v1701 = vpop.f32.mrb[0].mxu0
    %v1702 = vpop.f32.mrb[0].mxu0
    %1703 = vdwg.mxu0
    %1704 = vmatprep.subr.bf16.mxu0 %v621
    %1705 = vmatpush1.bf16.msra.mxu0 %v620
    %1706 = vmatprep.subr.bf16.mxu0 %v625
    %1707 = vmatpush1.bf16.msra.mxu0 %v624
    %1708 = vmatprep.subr.bf16.mxu0 %v629
    %1709 = vmatpush1.bf16.msra.mxu0 %v628
    %1710 = vmatprep.subr.bf16.mxu0 %v633
    %1711 = vmatpush1.bf16.msra.mxu0 %v632
    %1712 = vmatprep.subr.bf16.mxu0 %v637
    %1713 = vmatpush1.bf16.msra.mxu0 %v636
    %1714 = vmatprep.subr.bf16.mxu0 %v641
    %1715 = vmatpush1.bf16.msra.mxu0 %v640
    %1716 = vmatprep.subr.bf16.mxu0 %v645
    %1717 = vmatpush1.bf16.msra.mxu0 %v644
    %1718 = vmatprep.subr.bf16.mxu0 %v649
    %1719 = vmatpush1.bf16.msra.mxu0 %v648
    %1720 = vmatprep.subr.bf16.mxu0 0
    %1721 = vmatpush1.bf16.msra.mxu0 0
    %1722 = vmatprep.subr.bf16.mxu0 0
    %1723 = vmatpush1.bf16.msra.mxu0 0
    %1724 = vmatprep.subr.bf16.mxu0 0
    %1725 = vmatpush1.bf16.msra.mxu0 0
    %1726 = vmatprep.subr.bf16.mxu0 0
    %1727 = vmatpush1.bf16.msra.mxu0 0
    %1728 = vmatprep.subr.bf16.mxu0 0
    %1729 = vmatpush1.bf16.msra.mxu0 0
    %1730 = vmatprep.subr.bf16.mxu0 0
    %1731 = vmatpush1.bf16.msra.mxu0 0
    %1732 = vmatprep.subr.bf16.mxu0 0
    %1733 = vmatpush1.bf16.msra.mxu0 0
    %1734 = vmatprep.subr.bf16.mxu0 0
    %1735 = vmatpush1.bf16.msra.mxu0 0
    %1736 = vmatprep.mubr.bf16.mxu0 0
    %1737 = vmatmul.mubr.bf16.gmra.mrb[0].mxu0 %v1468
    %v1738 = vpop.f32.mrb[0].mxu0
    %v1739 = vadd.f32 0.0, %v1738
    %v1740 = vpop.f32.mrb[0].mxu0
    %v1741 = vadd.f32 0.0, %v1740
    %v1742 = vpop.f32.mrb[0].mxu0
    %v1743 = vpop.f32.mrb[0].mxu0
    %1744 = vdwg.mxu0
    %v1745 = vadd.f32 %v1659, %v1698
    %v1746 = vadd.f32 %v1660, %v1700
    %v1747 = vadd.f32 %v1661, %v1739
    %v1748 = vadd.f32 %v1662, %v1741
    %v1749 = vmul.f32 %v1745, 0.5
    %v1750 = vtanh.pop %v1749
    %v1751 = vmul.f32 %v1750, 0.5
    %v1752 = vadd.f32 %v1751, 0.5
    %v1753 = vmul.f32 %v1746, 0.5
    %v1754 = vtanh.pop %v1753
    %v1755 = vmul.f32 %v1754, 0.5
    %v1756 = vadd.f32 %v1755, 0.5
    %v1757 = vtanh.pop %v1747
    %v1758 = vmul.f32 %v1748, 0.5
    %v1759 = vtanh.pop %v1758
    %v1760 = vmul.f32 %v1759, 0.5
    %v1761 = vadd.f32 %v1760, 0.5
    %v1762 = vmul.f32 %v1756, %v1465
    %v1763 = vmul.f32 %v1752, %v1757
    %v1764 = vadd.f32 %v1762, %v1763
    %v1765 = vtanh.pop %v1764
    %v1766 = vmul.f32 %v1761, %v1765
    %v1767 = vpack.c.bf16 %v1766, %v1766
    %v1768 = vpack.c.bf16 %v1655, %v1655
    %1769 = vmatprep.subr.bf16.mxu0 %v948
    %1770 = vmatpush1.bf16.msra.mxu0 %v947
    %1771 = vmatprep.subr.bf16.mxu0 %v952
    %1772 = vmatpush1.bf16.msra.mxu0 %v951
    %1773 = vmatprep.subr.bf16.mxu0 %v956
    %1774 = vmatpush1.bf16.msra.mxu0 %v955
    %1775 = vmatprep.subr.bf16.mxu0 %v960
    %1776 = vmatpush1.bf16.msra.mxu0 %v959
    %1777 = vmatprep.subr.bf16.mxu0 %v964
    %1778 = vmatpush1.bf16.msra.mxu0 %v963
    %1779 = vmatprep.subr.bf16.mxu0 %v968
    %1780 = vmatpush1.bf16.msra.mxu0 %v967
    %1781 = vmatprep.subr.bf16.mxu0 %v972
    %1782 = vmatpush1.bf16.msra.mxu0 %v971
    %1783 = vmatprep.subr.bf16.mxu0 %v976
    %1784 = vmatpush1.bf16.msra.mxu0 %v975
    %1785 = vmatprep.subr.bf16.mxu0 0
    %1786 = vmatpush1.bf16.msra.mxu0 0
    %1787 = vmatprep.subr.bf16.mxu0 0
    %1788 = vmatpush1.bf16.msra.mxu0 0
    %1789 = vmatprep.subr.bf16.mxu0 0
    %1790 = vmatpush1.bf16.msra.mxu0 0
    %1791 = vmatprep.subr.bf16.mxu0 0
    %1792 = vmatpush1.bf16.msra.mxu0 0
    %1793 = vmatprep.subr.bf16.mxu0 0
    %1794 = vmatpush1.bf16.msra.mxu0 0
    %1795 = vmatprep.subr.bf16.mxu0 0
    %1796 = vmatpush1.bf16.msra.mxu0 0
    %1797 = vmatprep.subr.bf16.mxu0 0
    %1798 = vmatpush1.bf16.msra.mxu0 0
    %1799 = vmatprep.subr.bf16.mxu0 0
    %1800 = vmatpush1.bf16.msra.mxu0 0
    %1801 = vmatprep.mubr.bf16.mxu0 0
    %1802 = vmatmul.mubr.bf16.gmra.mrb[0].mxu0 %v1768
    %v1803 = vpop.f32.mrb[0].mxu0
    %v1804 = vadd.f32 0.0, %v1803
    %v1805 = vpop.f32.mrb[0].mxu0
    %v1806 = vadd.f32 0.0, %v1805
    %v1807 = vpop.f32.mrb[0].mxu0
    %v1808 = vpop.f32.mrb[0].mxu0
    %1809 = vdwg.mxu0
    %1810 = vmatprep.subr.bf16.mxu0 %v950
    %1811 = vmatpush1.bf16.msra.mxu0 %v949
    %1812 = vmatprep.subr.bf16.mxu0 %v954
    %1813 = vmatpush1.bf16.msra.mxu0 %v953
    %1814 = vmatprep.subr.bf16.mxu0 %v958
    %1815 = vmatpush1.bf16.msra.mxu0 %v957
    %1816 = vmatprep.subr.bf16.mxu0 %v962
    %1817 = vmatpush1.bf16.msra.mxu0 %v961
    %1818 = vmatprep.subr.bf16.mxu0 %v966
    %1819 = vmatpush1.bf16.msra.mxu0 %v965
    %1820 = vmatprep.subr.bf16.mxu0 %v970
    %1821 = vmatpush1.bf16.msra.mxu0 %v969
    %1822 = vmatprep.subr.bf16.mxu0 %v974
    %1823 = vmatpush1.bf16.msra.mxu0 %v973
    %1824 = vmatprep.subr.bf16.mxu0 %v978
    %1825 = vmatpush1.bf16.msra.mxu0 %v977
    %1826 = vmatprep.subr.bf16.mxu0 0
    %1827 = vmatpush1.bf16.msra.mxu0 0
    %1828 = vmatprep.subr.bf16.mxu0 0
    %1829 = vmatpush1.bf16.msra.mxu0 0
    %1830 = vmatprep.subr.bf16.mxu0 0
    %1831 = vmatpush1.bf16.msra.mxu0 0
    %1832 = vmatprep.subr.bf16.mxu0 0
    %1833 = vmatpush1.bf16.msra.mxu0 0
    %1834 = vmatprep.subr.bf16.mxu0 0
    %1835 = vmatpush1.bf16.msra.mxu0 0
    %1836 = vmatprep.subr.bf16.mxu0 0
    %1837 = vmatpush1.bf16.msra.mxu0 0
    %1838 = vmatprep.subr.bf16.mxu0 0
    %1839 = vmatpush1.bf16.msra.mxu0 0
    %1840 = vmatprep.subr.bf16.mxu0 0
    %1841 = vmatpush1.bf16.msra.mxu0 0
    %1842 = vmatprep.mubr.bf16.mxu0 0
    %1843 = vmatmul.mubr.bf16.gmra.mrb[0].mxu0 %v1768
    %v1844 = vpop.f32.mrb[0].mxu0
    %v1845 = vadd.f32 0.0, %v1844
    %v1846 = vpop.f32.mrb[0].mxu0
    %v1847 = vadd.f32 0.0, %v1846
    %v1848 = vpop.f32.mrb[0].mxu0
    %v1849 = vpop.f32.mrb[0].mxu0
    %1850 = vdwg.mxu0
    %1851 = vmatprep.subr.bf16.mxu0 %v1190
    %1852 = vmatpush1.bf16.msra.mxu0 %v1189
    %1853 = vmatprep.subr.bf16.mxu0 %v1194
    %1854 = vmatpush1.bf16.msra.mxu0 %v1193
    %1855 = vmatprep.subr.bf16.mxu0 %v1198
    %1856 = vmatpush1.bf16.msra.mxu0 %v1197
    %1857 = vmatprep.subr.bf16.mxu0 %v1202
    %1858 = vmatpush1.bf16.msra.mxu0 %v1201
    %1859 = vmatprep.subr.bf16.mxu0 %v1206
    %1860 = vmatpush1.bf16.msra.mxu0 %v1205
    %1861 = vmatprep.subr.bf16.mxu0 %v1210
    %1862 = vmatpush1.bf16.msra.mxu0 %v1209
    %1863 = vmatprep.subr.bf16.mxu0 %v1214
    %1864 = vmatpush1.bf16.msra.mxu0 %v1213
    %1865 = vmatprep.subr.bf16.mxu0 %v1218
    %1866 = vmatpush1.bf16.msra.mxu0 %v1217
    %1867 = vmatprep.subr.bf16.mxu0 0
    %1868 = vmatpush1.bf16.msra.mxu0 0
    %1869 = vmatprep.subr.bf16.mxu0 0
    %1870 = vmatpush1.bf16.msra.mxu0 0
    %1871 = vmatprep.subr.bf16.mxu0 0
    %1872 = vmatpush1.bf16.msra.mxu0 0
    %1873 = vmatprep.subr.bf16.mxu0 0
    %1874 = vmatpush1.bf16.msra.mxu0 0
    %1875 = vmatprep.subr.bf16.mxu0 0
    %1876 = vmatpush1.bf16.msra.mxu0 0
    %1877 = vmatprep.subr.bf16.mxu0 0
    %1878 = vmatpush1.bf16.msra.mxu0 0
    %1879 = vmatprep.subr.bf16.mxu0 0
    %1880 = vmatpush1.bf16.msra.mxu0 0
    %1881 = vmatprep.subr.bf16.mxu0 0
    %1882 = vmatpush1.bf16.msra.mxu0 0
    %1883 = vmatprep.mubr.bf16.mxu0 0
    %1884 = vmatmul.mubr.bf16.gmra.mrb[0].mxu0 %v1767
    %v1885 = vpop.f32.mrb[0].mxu0
    %v1886 = vadd.f32 %v1804, %v1885
    %v1887 = vpop.f32.mrb[0].mxu0
    %v1888 = vadd.f32 %v1806, %v1887
    %v1889 = vpop.f32.mrb[0].mxu0
    %v1890 = vpop.f32.mrb[0].mxu0
    %1891 = vdwg.mxu0
    %1892 = vmatprep.subr.bf16.mxu0 %v1192
    %1893 = vmatpush1.bf16.msra.mxu0 %v1191
    %1894 = vmatprep.subr.bf16.mxu0 %v1196
    %1895 = vmatpush1.bf16.msra.mxu0 %v1195
    %1896 = vmatprep.subr.bf16.mxu0 %v1200
    %1897 = vmatpush1.bf16.msra.mxu0 %v1199
    %1898 = vmatprep.subr.bf16.mxu0 %v1204
    %1899 = vmatpush1.bf16.msra.mxu0 %v1203
    %1900 = vmatprep.subr.bf16.mxu0 %v1208
    %1901 = vmatpush1.bf16.msra.mxu0 %v1207
    %1902 = vmatprep.subr.bf16.mxu0 %v1212
    %1903 = vmatpush1.bf16.msra.mxu0 %v1211
    %1904 = vmatprep.subr.bf16.mxu0 %v1216
    %1905 = vmatpush1.bf16.msra.mxu0 %v1215
    %1906 = vmatprep.subr.bf16.mxu0 %v1220
    %1907 = vmatpush1.bf16.msra.mxu0 %v1219
    %1908 = vmatprep.subr.bf16.mxu0 0
    %1909 = vmatpush1.bf16.msra.mxu0 0
    %1910 = vmatprep.subr.bf16.mxu0 0
    %1911 = vmatpush1.bf16.msra.mxu0 0
    %1912 = vmatprep.subr.bf16.mxu0 0
    %1913 = vmatpush1.bf16.msra.mxu0 0
    %1914 = vmatprep.subr.bf16.mxu0 0
    %1915 = vmatpush1.bf16.msra.mxu0 0
    %1916 = vmatprep.subr.bf16.mxu0 0
    %1917 = vmatpush1.bf16.msra.mxu0 0
    %1918 = vmatprep.subr.bf16.mxu0 0
    %1919 = vmatpush1.bf16.msra.mxu0 0
    %1920 = vmatprep.subr.bf16.mxu0 0
    %1921 = vmatpush1.bf16.msra.mxu0 0
    %1922 = vmatprep.subr.bf16.mxu0 0
    %1923 = vmatpush1.bf16.msra.mxu0 0
    %1924 = vmatprep.mubr.bf16.mxu0 0
    %1925 = vmatmul.mubr.bf16.gmra.mrb[0].mxu0 %v1767
    %v1926 = vpop.f32.mrb[0].mxu0
    %v1927 = vadd.f32 %v1845, %v1926
    %v1928 = vpop.f32.mrb[0].mxu0
    %v1929 = vadd.f32 %v1847, %v1928
    %v1930 = vpop.f32.mrb[0].mxu0
    %v1931 = vpop.f32.mrb[0].mxu0
    %1932 = vdwg.mxu0
    %v1933 = vadd.f32 %v1886, %v466
    %v1934 = vadd.f32 %v1888, %v470
    %v1935 = vadd.f32 %v1927, %v474
    %v1936 = vadd.f32 %v1929, %v478
    %v1937 = vmul.f32 %v1933, 0.5
    %v1938 = vtanh.pop %v1937
    %v1939 = vmul.f32 %v1938, 0.5
    %v1940 = vadd.f32 %v1939, 0.5
    %v1941 = vmul.f32 %v1934, 0.5
    %v1942 = vtanh.pop %v1941
    %v1943 = vmul.f32 %v1942, 0.5
    %v1944 = vadd.f32 %v1943, 0.5
    %v1945 = vtanh.pop %v1935
    %v1946 = vmul.f32 %v1936, 0.5
    %v1947 = vtanh.pop %v1946
    %v1948 = vmul.f32 %v1947, 0.5
    %v1949 = vadd.f32 %v1948, 0.5
    %v1950 = vmul.f32 %v1944, %v1653
    %v1951 = vmul.f32 %v1940, %v1945
    %v1952 = vadd.f32 %v1950, %v1951
    %v1953 = vtanh.pop %v1952
    %v1954 = vmul.f32 %v1949, %v1953
    %s1955 = smul.u32 3, 4
    %s1956 = smul.addr %s1955, 8
    %s1957 = scalar_lea.vmem [#allocation2], %s1956
    %v1958 = vld [vmem:[%s1957] sm:$0xff]
    %v1959 = vld [vmem:[%s1957 + $0x8] sm:$0xff]
    %v1960 = vld [vmem:[%s1957 + $0x10] sm:$0xff]
    %v1961 = vld [vmem:[%s1957 + $0x18] sm:$0xff]
    %1962 = vmatprep.subr.bf16.mxu0 %v619
    %1963 = vmatpush1.bf16.msra.mxu0 %v618
    %1964 = vmatprep.subr.bf16.mxu0 %v623
    %1965 = vmatpush1.bf16.msra.mxu0 %v622
    %1966 = vmatprep.subr.bf16.mxu0 %v627
    %1967 = vmatpush1.bf16.msra.mxu0 %v626
    %1968 = vmatprep.subr.bf16.mxu0 %v631
    %1969 = vmatpush1.bf16.msra.mxu0 %v630
    %1970 = vmatprep.subr.bf16.mxu0 %v635
    %1971 = vmatpush1.bf16.msra.mxu0 %v634
    %1972 = vmatprep.subr.bf16.mxu0 %v639
    %1973 = vmatpush1.bf16.msra.mxu0 %v638
    %1974 = vmatprep.subr.bf16.mxu0 %v643
    %1975 = vmatpush1.bf16.msra.mxu0 %v642
    %1976 = vmatprep.subr.bf16.mxu0 %v647
    %1977 = vmatpush1.bf16.msra.mxu0 %v646
    %1978 = vmatprep.subr.bf16.mxu0 0
    %1979 = vmatpush1.bf16.msra.mxu0 0
    %1980 = vmatprep.subr.bf16.mxu0 0
    %1981 = vmatpush1.bf16.msra.mxu0 0
    %1982 = vmatprep.subr.bf16.mxu0 0
    %1983 = vmatpush1.bf16.msra.mxu0 0
    %1984 = vmatprep.subr.bf16.mxu0 0
    %1985 = vmatpush1.bf16.msra.mxu0 0
    %1986 = vmatprep.subr.bf16.mxu0 0
    %1987 = vmatpush1.bf16.msra.mxu0 0
    %1988 = vmatprep.subr.bf16.mxu0 0
    %1989 = vmatpush1.bf16.msra.mxu0 0
    %1990 = vmatprep.subr.bf16.mxu0 0
    %1991 = vmatpush1.bf16.msra.mxu0 0
    %1992 = vmatprep.subr.bf16.mxu0 0
    %1993 = vmatpush1.bf16.msra.mxu0 0
    %1994 = vmatprep.mubr.bf16.mxu0 0
    %1995 = vmatmul.mubr.bf16.gmra.mrb[0].mxu0 %v1767
    %v1996 = vpop.f32.mrb[0].mxu0
    %v1997 = vadd.f32 0.0, %v1996
    %v1998 = vpop.f32.mrb[0].mxu0
    %v1999 = vadd.f32 0.0, %v1998
    %v2000 = vpop.f32.mrb[0].mxu0
    %v2001 = vpop.f32.mrb[0].mxu0
    %2002 = vdwg.mxu0
    %2003 = vmatprep.subr.bf16.mxu0 %v621
    %2004 = vmatpush1.bf16.msra.mxu0 %v620
    %2005 = vmatprep.subr.bf16.mxu0 %v625
    %2006 = vmatpush1.bf16.msra.mxu0 %v624
    %2007 = vmatprep.subr.bf16.mxu0 %v629
    %2008 = vmatpush1.bf16.msra.mxu0 %v628
    %2009 = vmatprep.subr.bf16.mxu0 %v633
    %2010 = vmatpush1.bf16.msra.mxu0 %v632
    %2011 = vmatprep.subr.bf16.mxu0 %v637
    %2012 = vmatpush1.bf16.msra.mxu0 %v636
    %2013 = vmatprep.subr.bf16.mxu0 %v641
    %2014 = vmatpush1.bf16.msra.mxu0 %v640
    %2015 = vmatprep.subr.bf16.mxu0 %v645
    %2016 = vmatpush1.bf16.msra.mxu0 %v644
    %2017 = vmatprep.subr.bf16.mxu0 %v649
    %2018 = vmatpush1.bf16.msra.mxu0 %v648
    %2019 = vmatprep.subr.bf16.mxu0 0
    %2020 = vmatpush1.bf16.msra.mxu0 0
    %2021 = vmatprep.subr.bf16.mxu0 0
    %2022 = vmatpush1.bf16.msra.mxu0 0
    %2023 = vmatprep.subr.bf16.mxu0 0
    %2024 = vmatpush1.bf16.msra.mxu0 0
    %2025 = vmatprep.subr.bf16.mxu0 0
    %2026 = vmatpush1.bf16.msra.mxu0 0
    %2027 = vmatprep.subr.bf16.mxu0 0
    %2028 = vmatpush1.bf16.msra.mxu0 0
    %2029 = vmatprep.subr.bf16.mxu0 0
    %2030 = vmatpush1.bf16.msra.mxu0 0
    %2031 = vmatprep.subr.bf16.mxu0 0
    %2032 = vmatpush1.bf16.msra.mxu0 0
    %2033 = vmatprep.subr.bf16.mxu0 0
    %2034 = vmatpush1.bf16.msra.mxu0 0
    %2035 = vmatprep.mubr.bf16.mxu0 0
    %2036 = vmatmul.mubr.bf16.gmra.mrb[0].mxu0 %v1767
    %v2037 = vpop.f32.mrb[0].mxu0
    %v2038 = vadd.f32 0.0, %v2037
    %v2039 = vpop.f32.mrb[0].mxu0
    %v2040 = vadd.f32 0.0, %v2039
    %v2041 = vpop.f32.mrb[0].mxu0
    %v2042 = vpop.f32.mrb[0].mxu0
    %2043 = vdwg.mxu0
    %v2044 = vadd.f32 %v1958, %v1997
    %v2045 = vadd.f32 %v1959, %v1999
    %v2046 = vadd.f32 %v1960, %v2038
    %v2047 = vadd.f32 %v1961, %v2040
    %v2048 = vmul.f32 %v2044, 0.5
    %v2049 = vtanh.pop %v2048
    %v2050 = vmul.f32 %v2049, 0.5
    %v2051 = vadd.f32 %v2050, 0.5
    %v2052 = vmul.f32 %v2045, 0.5
    %v2053 = vtanh.pop %v2052
    %v2054 = vmul.f32 %v2053, 0.5
    %v2055 = vadd.f32 %v2054, 0.5
    %v2056 = vtanh.pop %v2046
    %v2057 = vmul.f32 %v2047, 0.5
    %v2058 = vtanh.pop %v2057
    %v2059 = vmul.f32 %v2058, 0.5
    %v2060 = vadd.f32 %v2059, 0.5
    %v2061 = vmul.f32 %v2055, %v1764
    %v2062 = vmul.f32 %v2051, %v2056
    %v2063 = vadd.f32 %v2061, %v2062
    %v2064 = vtanh.pop %v2063
    %v2065 = vmul.f32 %v2060, %v2064
    %v2066 = vpack.c.bf16 %v2065, %v2065
    %v2067 = vpack.c.bf16 %v1954, %v1954
    %2068 = vmatprep.subr.bf16.mxu0 %v948
    %2069 = vmatpush1.bf16.msra.mxu0 %v947
    %2070 = vmatprep.subr.bf16.mxu0 %v952
    %2071 = vmatpush1.bf16.msra.mxu0 %v951
    %2072 = vmatprep.subr.bf16.mxu0 %v956
    %2073 = vmatpush1.bf16.msra.mxu0 %v955
    %2074 = vmatprep.subr.bf16.mxu0 %v960
    %2075 = vmatpush1.bf16.msra.mxu0 %v959
    %2076 = vmatprep.subr.bf16.mxu0 %v964
    %2077 = vmatpush1.bf16.msra.mxu0 %v963
    %2078 = vmatprep.subr.bf16.mxu0 %v968
    %2079 = vmatpush1.bf16.msra.mxu0 %v967
    %2080 = vmatprep.subr.bf16.mxu0 %v972
    %2081 = vmatpush1.bf16.msra.mxu0 %v971
    %2082 = vmatprep.subr.bf16.mxu0 %v976
    %2083 = vmatpush1.bf16.msra.mxu0 %v975
    %2084 = vmatprep.subr.bf16.mxu0 0
    %2085 = vmatpush1.bf16.msra.mxu0 0
    %2086 = vmatprep.subr.bf16.mxu0 0
    %2087 = vmatpush1.bf16.msra.mxu0 0
    %2088 = vmatprep.subr.bf16.mxu0 0
    %2089 = vmatpush1.bf16.msra.mxu0 0
    %2090 = vmatprep.subr.bf16.mxu0 0
    %2091 = vmatpush1.bf16.msra.mxu0 0
    %2092 = vmatprep.subr.bf16.mxu0 0
    %2093 = vmatpush1.bf16.msra.mxu0 0
    %2094 = vmatprep.subr.bf16.mxu0 0
    %2095 = vmatpush1.bf16.msra.mxu0 0
    %2096 = vmatprep.subr.bf16.mxu0 0
    %2097 = vmatpush1.bf16.msra.mxu0 0
    %2098 = vmatprep.subr.bf16.mxu0 0
    %2099 = vmatpush1.bf16.msra.mxu0 0
    %2100 = vmatprep.mubr.bf16.mxu0 0
    %2101 = vmatmul.mubr.bf16.gmra.mrb[0].mxu0 %v2067
    %v2102 = vpop.f32.mrb[0].mxu0
    %v2103 = vadd.f32 0.0, %v2102
    %v2104 = vpop.f32.mrb[0].mxu0
    %v2105 = vadd.f32 0.0, %v2104
    %v2106 = vpop.f32.mrb[0].mxu0
    %v2107 = vpop.f32.mrb[0].mxu0
    %2108 = vdwg.mxu0
    %2109 = vmatprep.subr.bf16.mxu0 %v950
    %2110 = vmatpush1.bf16.msra.mxu0 %v949
    %2111 = vmatprep.subr.bf16.mxu0 %v954
    %2112 = vmatpush1.bf16.msra.mxu0 %v953
    %2113 = vmatprep.subr.bf16.mxu0 %v958
    %2114 = vmatpush1.bf16.msra.mxu0 %v957
    %2115 = vmatprep.subr.bf16.mxu0 %v962
    %2116 = vmatpush1.bf16.msra.mxu0 %v961
    %2117 = vmatprep.subr.bf16.mxu0 %v966
    %2118 = vmatpush1.bf16.msra.mxu0 %v965
    %2119 = vmatprep.subr.bf16.mxu0 %v970
    %2120 = vmatpush1.bf16.msra.mxu0 %v969
    %2121 = vmatprep.subr.bf16.mxu0 %v974
    %2122 = vmatpush1.bf16.msra.mxu0 %v973
    %2123 = vmatprep.subr.bf16.mxu0 %v978
    %2124 = vmatpush1.bf16.msra.mxu0 %v977
    %2125 = vmatprep.subr.bf16.mxu0 0
    %2126 = vmatpush1.bf16.msra.mxu0 0
    %2127 = vmatprep.subr.bf16.mxu0 0
    %2128 = vmatpush1.bf16.msra.mxu0 0
    %2129 = vmatprep.subr.bf16.mxu0 0
    %2130 = vmatpush1.bf16.msra.mxu0 0
    %2131 = vmatprep.subr.bf16.mxu0 0
    %2132 = vmatpush1.bf16.msra.mxu0 0
    %2133 = vmatprep.subr.bf16.mxu0 0
    %2134 = vmatpush1.bf16.msra.mxu0 0
    %2135 = vmatprep.subr.bf16.mxu0 0
    %2136 = vmatpush1.bf16.msra.mxu0 0
    %2137 = vmatprep.subr.bf16.mxu0 0
    %2138 = vmatpush1.bf16.msra.mxu0 0
    %2139 = vmatprep.subr.bf16.mxu0 0
    %2140 = vmatpush1.bf16.msra.mxu0 0
    %2141 = vmatprep.mubr.bf16.mxu0 0
    %2142 = vmatmul.mubr.bf16.gmra.mrb[0].mxu0 %v2067
    %v2143 = vpop.f32.mrb[0].mxu0
    %v2144 = vadd.f32 0.0, %v2143
    %v2145 = vpop.f32.mrb[0].mxu0
    %v2146 = vadd.f32 0.0, %v2145
    %v2147 = vpop.f32.mrb[0].mxu0
    %v2148 = vpop.f32.mrb[0].mxu0
    %2149 = vdwg.mxu0
    %2150 = vmatprep.subr.bf16.mxu0 %v1190
    %2151 = vmatpush1.bf16.msra.mxu0 %v1189
    %2152 = vmatprep.subr.bf16.mxu0 %v1194
    %2153 = vmatpush1.bf16.msra.mxu0 %v1193
    %2154 = vmatprep.subr.bf16.mxu0 %v1198
    %2155 = vmatpush1.bf16.msra.mxu0 %v1197
    %2156 = vmatprep.subr.bf16.mxu0 %v1202
    %2157 = vmatpush1.bf16.msra.mxu0 %v1201
    %2158 = vmatprep.subr.bf16.mxu0 %v1206
    %2159 = vmatpush1.bf16.msra.mxu0 %v1205
    %2160 = vmatprep.subr.bf16.mxu0 %v1210
    %2161 = vmatpush1.bf16.msra.mxu0 %v1209
    %2162 = vmatprep.subr.bf16.mxu0 %v1214
    %2163 = vmatpush1.bf16.msra.mxu0 %v1213
    %2164 = vmatprep.subr.bf16.mxu0 %v1218
    %2165 = vmatpush1.bf16.msra.mxu0 %v1217
    %2166 = vmatprep.subr.bf16.mxu0 0
    %2167 = vmatpush1.bf16.msra.mxu0 0
    %2168 = vmatprep.subr.bf16.mxu0 0
    %2169 = vmatpush1.bf16.msra.mxu0 0
    %2170 = vmatprep.subr.bf16.mxu0 0
    %2171 = vmatpush1.bf16.msra.mxu0 0
    %2172 = vmatprep.subr.bf16.mxu0 0
    %2173 = vmatpush1.bf16.msra.mxu0 0
    %2174 = vmatprep.subr.bf16.mxu0 0
    %2175 = vmatpush1.bf16.msra.mxu0 0
    %2176 = vmatprep.subr.bf16.mxu0 0
    %2177 = vmatpush1.bf16.msra.mxu0 0
    %2178 = vmatprep.subr.bf16.mxu0 0
    %2179 = vmatpush1.bf16.msra.mxu0 0
    %2180 = vmatprep.subr.bf16.mxu0 0
    %2181 = vmatpush1.bf16.msra.mxu0 0
    %2182 = vmatprep.mubr.bf16.mxu0 0
    %2183 = vmatmul.mubr.bf16.gmra.mrb[0].mxu0 %v2066
    %v2184 = vpop.f32.mrb[0].mxu0
    %v2185 = vadd.f32 %v2103, %v2184
    %v2186 = vpop.f32.mrb[0].mxu0
    %v2187 = vadd.f32 %v2105, %v2186
    %v2188 = vpop.f32.mrb[0].mxu0
    %v2189 = vpop.f32.mrb[0].mxu0
    %2190 = vdwg.mxu0
    %2191 = vmatprep.subr.bf16.mxu0 %v1192
    %2192 = vmatpush1.bf16.msra.mxu0 %v1191
    %2193 = vmatprep.subr.bf16.mxu0 %v1196
    %2194 = vmatpush1.bf16.msra.mxu0 %v1195
    %2195 = vmatprep.subr.bf16.mxu0 %v1200
    %2196 = vmatpush1.bf16.msra.mxu0 %v1199
    %2197 = vmatprep.subr.bf16.mxu0 %v1204
    %2198 = vmatpush1.bf16.msra.mxu0 %v1203
    %2199 = vmatprep.subr.bf16.mxu0 %v1208
    %2200 = vmatpush1.bf16.msra.mxu0 %v1207
    %2201 = vmatprep.subr.bf16.mxu0 %v1212
    %2202 = vmatpush1.bf16.msra.mxu0 %v1211
    %2203 = vmatprep.subr.bf16.mxu0 %v1216
    %2204 = vmatpush1.bf16.msra.mxu0 %v1215
    %2205 = vmatprep.subr.bf16.mxu0 %v1220
    %2206 = vmatpush1.bf16.msra.mxu0 %v1219
    %2207 = vmatprep.subr.bf16.mxu0 0
    %2208 = vmatpush1.bf16.msra.mxu0 0
    %2209 = vmatprep.subr.bf16.mxu0 0
    %2210 = vmatpush1.bf16.msra.mxu0 0
    %2211 = vmatprep.subr.bf16.mxu0 0
    %2212 = vmatpush1.bf16.msra.mxu0 0
    %2213 = vmatprep.subr.bf16.mxu0 0
    %2214 = vmatpush1.bf16.msra.mxu0 0
    %2215 = vmatprep.subr.bf16.mxu0 0
    %2216 = vmatpush1.bf16.msra.mxu0 0
    %2217 = vmatprep.subr.bf16.mxu0 0
    %2218 = vmatpush1.bf16.msra.mxu0 0
    %2219 = vmatprep.subr.bf16.mxu0 0
    %2220 = vmatpush1.bf16.msra.mxu0 0
    %2221 = vmatprep.subr.bf16.mxu0 0
    %2222 = vmatpush1.bf16.msra.mxu0 0
    %2223 = vmatprep.mubr.bf16.mxu0 0
    %2224 = vmatmul.mubr.bf16.gmra.mrb[0].mxu0 %v2066
    %v2225 = vpop.f32.mrb[0].mxu0
    %v2226 = vadd.f32 %v2144, %v2225
    %v2227 = vpop.f32.mrb[0].mxu0
    %v2228 = vadd.f32 %v2146, %v2227
    %v2229 = vpop.f32.mrb[0].mxu0
    %v2230 = vpop.f32.mrb[0].mxu0
    %2231 = vdwg.mxu0
    %v2232 = vadd.f32 %v2185, %v466
    %v2233 = vadd.f32 %v2187, %v470
    %v2234 = vadd.f32 %v2226, %v474
    %v2235 = vadd.f32 %v2228, %v478
    %v2236 = vmul.f32 %v2232, 0.5
    %v2237 = vtanh.pop %v2236
    %v2238 = vmul.f32 %v2237, 0.5
    %v2239 = vadd.f32 %v2238, 0.5
    %v2240 = vmul.f32 %v2233, 0.5
    %v2241 = vtanh.pop %v2240
    %v2242 = vmul.f32 %v2241, 0.5
    %v2243 = vadd.f32 %v2242, 0.5
    %v2244 = vtanh.pop %v2234
    %v2245 = vmul.f32 %v2235, 0.5
    %v2246 = vtanh.pop %v2245
    %v2247 = vmul.f32 %v2246, 0.5
    %v2248 = vadd.f32 %v2247, 0.5
    %v2249 = vmul.f32 %v2243, %v1952
    %v2250 = vmul.f32 %v2239, %v2244
    %v2251 = vadd.f32 %v2249, %v2250
    %v2252 = vtanh.pop %v2251
    %v2253 = vmul.f32 %v2248, %v2252
    %s2254 = smul.u32 4, 4
    %s2255 = smul.addr %s2254, 8
    %s2256 = scalar_lea.vmem [#allocation2], %s2255
    %v2257 = vld [vmem:[%s2256] sm:$0xff]
    %v2258 = vld [vmem:[%s2256 + $0x8] sm:$0xff]
    %v2259 = vld [vmem:[%s2256 + $0x10] sm:$0xff]
    %v2260 = vld [vmem:[%s2256 + $0x18] sm:$0xff]
    %2261 = vmatprep.subr.bf16.mxu0 %v619
    %2262 = vmatpush1.bf16.msra.mxu0 %v618
    %2263 = vmatprep.subr.bf16.mxu0 %v623
    %2264 = vmatpush1.bf16.msra.mxu0 %v622
    %2265 = vmatprep.subr.bf16.mxu0 %v627
    %2266 = vmatpush1.bf16.msra.mxu0 %v626
    %2267 = vmatprep.subr.bf16.mxu0 %v631
    %2268 = vmatpush1.bf16.msra.mxu0 %v630
    %2269 = vmatprep.subr.bf16.mxu0 %v635
    %2270 = vmatpush1.bf16.msra.mxu0 %v634
    %2271 = vmatprep.subr.bf16.mxu0 %v639
    %2272 = vmatpush1.bf16.msra.mxu0 %v638
    %2273 = vmatprep.subr.bf16.mxu0 %v643
    %2274 = vmatpush1.bf16.msra.mxu0 %v642
    %2275 = vmatprep.subr.bf16.mxu0 %v647
    %2276 = vmatpush1.bf16.msra.mxu0 %v646
    %2277 = vmatprep.subr.bf16.mxu0 0
    %2278 = vmatpush1.bf16.msra.mxu0 0
    %2279 = vmatprep.subr.bf16.mxu0 0
    %2280 = vmatpush1.bf16.msra.mxu0 0
    %2281 = vmatprep.subr.bf16.mxu0 0
    %2282 = vmatpush1.bf16.msra.mxu0 0
    %2283 = vmatprep.subr.bf16.mxu0 0
    %2284 = vmatpush1.bf16.msra.mxu0 0
    %2285 = vmatprep.subr.bf16.mxu0 0
    %2286 = vmatpush1.bf16.msra.mxu0 0
    %2287 = vmatprep.subr.bf16.mxu0 0
    %2288 = vmatpush1.bf16.msra.mxu0 0
    %2289 = vmatprep.subr.bf16.mxu0 0
    %2290 = vmatpush1.bf16.msra.mxu0 0
    %2291 = vmatprep.subr.bf16.mxu0 0
    %2292 = vmatpush1.bf16.msra.mxu0 0
    %2293 = vmatprep.mubr.bf16.mxu0 0
    %2294 = vmatmul.mubr.bf16.gmra.mrb[0].mxu0 %v2066
    %v2295 = vpop.f32.mrb[0].mxu0
    %v2296 = vadd.f32 0.0, %v2295
    %v2297 = vpop.f32.mrb[0].mxu0
    %v2298 = vadd.f32 0.0, %v2297
    %v2299 = vpop.f32.mrb[0].mxu0
    %v2300 = vpop.f32.mrb[0].mxu0
    %2301 = vdwg.mxu0
    %2302 = vmatprep.subr.bf16.mxu0 %v621
    %2303 = vmatpush1.bf16.msra.mxu0 %v620
    %2304 = vmatprep.subr.bf16.mxu0 %v625
    %2305 = vmatpush1.bf16.msra.mxu0 %v624
    %2306 = vmatprep.subr.bf16.mxu0 %v629
    %2307 = vmatpush1.bf16.msra.mxu0 %v628
    %2308 = vmatprep.subr.bf16.mxu0 %v633
    %2309 = vmatpush1.bf16.msra.mxu0 %v632
    %2310 = vmatprep.subr.bf16.mxu0 %v637
    %2311 = vmatpush1.bf16.msra.mxu0 %v636
    %2312 = vmatprep.subr.bf16.mxu0 %v641
    %2313 = vmatpush1.bf16.msra.mxu0 %v640
    %2314 = vmatprep.subr.bf16.mxu0 %v645
    %2315 = vmatpush1.bf16.msra.mxu0 %v644
    %2316 = vmatprep.subr.bf16.mxu0 %v649
    %2317 = vmatpush1.bf16.msra.mxu0 %v648
    %2318 = vmatprep.subr.bf16.mxu0 0
    %2319 = vmatpush1.bf16.msra.mxu0 0
    %2320 = vmatprep.subr.bf16.mxu0 0
    %2321 = vmatpush1.bf16.msra.mxu0 0
    %2322 = vmatprep.subr.bf16.mxu0 0
    %2323 = vmatpush1.bf16.msra.mxu0 0
    %2324 = vmatprep.subr.bf16.mxu0 0
    %2325 = vmatpush1.bf16.msra.mxu0 0
    %2326 = vmatprep.subr.bf16.mxu0 0
    %2327 = vmatpush1.bf16.msra.mxu0 0
    %2328 = vmatprep.subr.bf16.mxu0 0
    %2329 = vmatpush1.bf16.msra.mxu0 0
    %2330 = vmatprep.subr.bf16.mxu0 0
    %2331 = vmatpush1.bf16.msra.mxu0 0
    %2332 = vmatprep.subr.bf16.mxu0 0
    %2333 = vmatpush1.bf16.msra.mxu0 0
    %2334 = vmatprep.mubr.bf16.mxu0 0
    %2335 = vmatmul.mubr.bf16.gmra.mrb[0].mxu0 %v2066
    %v2336 = vpop.f32.mrb[0].mxu0
    %v2337 = vadd.f32 0.0, %v2336
    %v2338 = vpop.f32.mrb[0].mxu0
    %v2339 = vadd.f32 0.0, %v2338
    %v2340 = vpop.f32.mrb[0].mxu0
    %v2341 = vpop.f32.mrb[0].mxu0
    %2342 = vdwg.mxu0
    %v2343 = vadd.f32 %v2257, %v2296
    %v2344 = vadd.f32 %v2258, %v2298
    %v2345 = vadd.f32 %v2259, %v2337
    %v2346 = vadd.f32 %v2260, %v2339
    %v2347 = vmul.f32 %v2343, 0.5
    %v2348 = vtanh.pop %v2347
    %v2349 = vmul.f32 %v2348, 0.5
    %v2350 = vadd.f32 %v2349, 0.5
    %v2351 = vmul.f32 %v2344, 0.5
    %v2352 = vtanh.pop %v2351
    %v2353 = vmul.f32 %v2352, 0.5
    %v2354 = vadd.f32 %v2353, 0.5
    %v2355 = vtanh.pop %v2345
    %v2356 = vmul.f32 %v2346, 0.5
    %v2357 = vtanh.pop %v2356
    %v2358 = vmul.f32 %v2357, 0.5
    %v2359 = vadd.f32 %v2358, 0.5
    %v2360 = vmul.f32 %v2354, %v2063
    %v2361 = vmul.f32 %v2350, %v2355
    %v2362 = vadd.f32 %v2360, %v2361
    %v2363 = vtanh.pop %v2362
    %v2364 = vmul.f32 %v2359, %v2363
    %v2365 = vpack.c.bf16 %v2364, %v2364
    %v2366 = vpack.c.bf16 %v2253, %v2253
    %2367 = vmatprep.subr.bf16.mxu0 %v948
    %2368 = vmatpush1.bf16.msra.mxu0 %v947
    %2369 = vmatprep.subr.bf16.mxu0 %v952
    %2370 = vmatpush1.bf16.msra.mxu0 %v951
    %2371 = vmatprep.subr.bf16.mxu0 %v956
    %2372 = vmatpush1.bf16.msra.mxu0 %v955
    %2373 = vmatprep.subr.bf16.mxu0 %v960
    %2374 = vmatpush1.bf16.msra.mxu0 %v959
    %2375 = vmatprep.subr.bf16.mxu0 %v964
    %2376 = vmatpush1.bf16.msra.mxu0 %v963
    %2377 = vmatprep.subr.bf16.mxu0 %v968
    %2378 = vmatpush1.bf16.msra.mxu0 %v967
    %2379 = vmatprep.subr.bf16.mxu0 %v972
    %2380 = vmatpush1.bf16.msra.mxu0 %v971
    %2381 = vmatprep.subr.bf16.mxu0 %v976
    %2382 = vmatpush1.bf16.msra.mxu0 %v975
    %2383 = vmatprep.subr.bf16.mxu0 0
    %2384 = vmatpush1.bf16.msra.mxu0 0
    %2385 = vmatprep.subr.bf16.mxu0 0
    %2386 = vmatpush1.bf16.msra.mxu0 0
    %2387 = vmatprep.subr.bf16.mxu0 0
    %2388 = vmatpush1.bf16.msra.mxu0 0
    %2389 = vmatprep.subr.bf16.mxu0 0
    %2390 = vmatpush1.bf16.msra.mxu0 0
    %2391 = vmatprep.subr.bf16.mxu0 0
    %2392 = vmatpush1.bf16.msra.mxu0 0
    %2393 = vmatprep.subr.bf16.mxu0 0
    %2394 = vmatpush1.bf16.msra.mxu0 0
    %2395 = vmatprep.subr.bf16.mxu0 0
    %2396 = vmatpush1.bf16.msra.mxu0 0
    %2397 = vmatprep.subr.bf16.mxu0 0
    %2398 = vmatpush1.bf16.msra.mxu0 0
    %2399 = vmatprep.mubr.bf16.mxu0 0
    %2400 = vmatmul.mubr.bf16.gmra.mrb[0].mxu0 %v2366
    %v2401 = vpop.f32.mrb[0].mxu0
    %v2402 = vadd.f32 0.0, %v2401
    %v2403 = vpop.f32.mrb[0].mxu0
    %v2404 = vadd.f32 0.0, %v2403
    %v2405 = vpop.f32.mrb[0].mxu0
    %v2406 = vpop.f32.mrb[0].mxu0
    %2407 = vdwg.mxu0
    %2408 = vmatprep.subr.bf16.mxu0 %v950
    %2409 = vmatpush1.bf16.msra.mxu0 %v949
    %2410 = vmatprep.subr.bf16.mxu0 %v954
    %2411 = vmatpush1.bf16.msra.mxu0 %v953
    %2412 = vmatprep.subr.bf16.mxu0 %v958
    %2413 = vmatpush1.bf16.msra.mxu0 %v957
    %2414 = vmatprep.subr.bf16.mxu0 %v962
    %2415 = vmatpush1.bf16.msra.mxu0 %v961
    %2416 = vmatprep.subr.bf16.mxu0 %v966
    %2417 = vmatpush1.bf16.msra.mxu0 %v965
    %2418 = vmatprep.subr.bf16.mxu0 %v970
    %2419 = vmatpush1.bf16.msra.mxu0 %v969
    %2420 = vmatprep.subr.bf16.mxu0 %v974
    %2421 = vmatpush1.bf16.msra.mxu0 %v973
    %2422 = vmatprep.subr.bf16.mxu0 %v978
    %2423 = vmatpush1.bf16.msra.mxu0 %v977
    %2424 = vmatprep.subr.bf16.mxu0 0
    %2425 = vmatpush1.bf16.msra.mxu0 0
    %2426 = vmatprep.subr.bf16.mxu0 0
    %2427 = vmatpush1.bf16.msra.mxu0 0
    %2428 = vmatprep.subr.bf16.mxu0 0
    %2429 = vmatpush1.bf16.msra.mxu0 0
    %2430 = vmatprep.subr.bf16.mxu0 0
    %2431 = vmatpush1.bf16.msra.mxu0 0
    %2432 = vmatprep.subr.bf16.mxu0 0
    %2433 = vmatpush1.bf16.msra.mxu0 0
    %2434 = vmatprep.subr.bf16.mxu0 0
    %2435 = vmatpush1.bf16.msra.mxu0 0
    %2436 = vmatprep.subr.bf16.mxu0 0
    %2437 = vmatpush1.bf16.msra.mxu0 0
    %2438 = vmatprep.subr.bf16.mxu0 0
    %2439 = vmatpush1.bf16.msra.mxu0 0
    %2440 = vmatprep.mubr.bf16.mxu0 0
    %2441 = vmatmul.mubr.bf16.gmra.mrb[0].mxu0 %v2366
    %v2442 = vpop.f32.mrb[0].mxu0
    %v2443 = vadd.f32 0.0, %v2442
    %v2444 = vpop.f32.mrb[0].mxu0
    %v2445 = vadd.f32 0.0, %v2444
    %v2446 = vpop.f32.mrb[0].mxu0
    %v2447 = vpop.f32.mrb[0].mxu0
    %2448 = vdwg.mxu0
    %2449 = vmatprep.subr.bf16.mxu0 %v1190
    %2450 = vmatpush1.bf16.msra.mxu0 %v1189
    %2451 = vmatprep.subr.bf16.mxu0 %v1194
    %2452 = vmatpush1.bf16.msra.mxu0 %v1193
    %2453 = vmatprep.subr.bf16.mxu0 %v1198
    %2454 = vmatpush1.bf16.msra.mxu0 %v1197
    %2455 = vmatprep.subr.bf16.mxu0 %v1202
    %2456 = vmatpush1.bf16.msra.mxu0 %v1201
    %2457 = vmatprep.subr.bf16.mxu0 %v1206
    %2458 = vmatpush1.bf16.msra.mxu0 %v1205
    %2459 = vmatprep.subr.bf16.mxu0 %v1210
    %2460 = vmatpush1.bf16.msra.mxu0 %v1209
    %2461 = vmatprep.subr.bf16.mxu0 %v1214
    %2462 = vmatpush1.bf16.msra.mxu0 %v1213
    %2463 = vmatprep.subr.bf16.mxu0 %v1218
    %2464 = vmatpush1.bf16.msra.mxu0 %v1217
    %2465 = vmatprep.subr.bf16.mxu0 0
    %2466 = vmatpush1.bf16.msra.mxu0 0
    %2467 = vmatprep.subr.bf16.mxu0 0
    %2468 = vmatpush1.bf16.msra.mxu0 0
    %2469 = vmatprep.subr.bf16.mxu0 0
    %2470 = vmatpush1.bf16.msra.mxu0 0
    %2471 = vmatprep.subr.bf16.mxu0 0
    %2472 = vmatpush1.bf16.msra.mxu0 0
    %2473 = vmatprep.subr.bf16.mxu0 0
    %2474 = vmatpush1.bf16.msra.mxu0 0
    %2475 = vmatprep.subr.bf16.mxu0 0
    %2476 = vmatpush1.bf16.msra.mxu0 0
    %2477 = vmatprep.subr.bf16.mxu0 0
    %2478 = vmatpush1.bf16.msra.mxu0 0
    %2479 = vmatprep.subr.bf16.mxu0 0
    %2480 = vmatpush1.bf16.msra.mxu0 0
    %2481 = vmatprep.mubr.bf16.mxu0 0
    %2482 = vmatmul.mubr.bf16.gmra.mrb[0].mxu0 %v2365
    %v2483 = vpop.f32.mrb[0].mxu0
    %v2484 = vadd.f32 %v2402, %v2483
    %v2485 = vpop.f32.mrb[0].mxu0
    %v2486 = vadd.f32 %v2404, %v2485
    %v2487 = vpop.f32.mrb[0].mxu0
    %v2488 = vpop.f32.mrb[0].mxu0
    %2489 = vdwg.mxu0
    %2490 = vmatprep.subr.bf16.mxu0 %v1192
    %2491 = vmatpush1.bf16.msra.mxu0 %v1191
    %2492 = vmatprep.subr.bf16.mxu0 %v1196
    %2493 = vmatpush1.bf16.msra.mxu0 %v1195
    %2494 = vmatprep.subr.bf16.mxu0 %v1200
    %2495 = vmatpush1.bf16.msra.mxu0 %v1199
    %2496 = vmatprep.subr.bf16.mxu0 %v1204
    %2497 = vmatpush1.bf16.msra.mxu0 %v1203
    %2498 = vmatprep.subr.bf16.mxu0 %v1208
    %2499 = vmatpush1.bf16.msra.mxu0 %v1207
    %2500 = vmatprep.subr.bf16.mxu0 %v1212
    %2501 = vmatpush1.bf16.msra.mxu0 %v1211
    %2502 = vmatprep.subr.bf16.mxu0 %v1216
    %2503 = vmatpush1.bf16.msra.mxu0 %v1215
    %2504 = vmatprep.subr.bf16.mxu0 %v1220
    %2505 = vmatpush1.bf16.msra.mxu0 %v1219
    %2506 = vmatprep.subr.bf16.mxu0 0
    %2507 = vmatpush1.bf16.msra.mxu0 0
    %2508 = vmatprep.subr.bf16.mxu0 0
    %2509 = vmatpush1.bf16.msra.mxu0 0
    %2510 = vmatprep.subr.bf16.mxu0 0
    %2511 = vmatpush1.bf16.msra.mxu0 0
    %2512 = vmatprep.subr.bf16.mxu0 0
    %2513 = vmatpush1.bf16.msra.mxu0 0
    %2514 = vmatprep.subr.bf16.mxu0 0
    %2515 = vmatpush1.bf16.msra.mxu0 0
    %2516 = vmatprep.subr.bf16.mxu0 0
    %2517 = vmatpush1.bf16.msra.mxu0 0
    %2518 = vmatprep.subr.bf16.mxu0 0
    %2519 = vmatpush1.bf16.msra.mxu0 0
    %2520 = vmatprep.subr.bf16.mxu0 0
    %2521 = vmatpush1.bf16.msra.mxu0 0
    %2522 = vmatprep.mubr.bf16.mxu0 0
    %2523 = vmatmul.mubr.bf16.gmra.mrb[0].mxu0 %v2365
    %v2524 = vpop.f32.mrb[0].mxu0
    %v2525 = vadd.f32 %v2443, %v2524
    %v2526 = vpop.f32.mrb[0].mxu0
    %v2527 = vadd.f32 %v2445, %v2526
    %v2528 = vpop.f32.mrb[0].mxu0
    %v2529 = vpop.f32.mrb[0].mxu0
    %2530 = vdwg.mxu0
    %v2531 = vadd.f32 %v2484, %v466
    %v2532 = vadd.f32 %v2486, %v470
    %v2533 = vadd.f32 %v2525, %v474
    %v2534 = vadd.f32 %v2527, %v478
    %v2535 = vmul.f32 %v2531, 0.5
    %v2536 = vtanh.pop %v2535
    %v2537 = vmul.f32 %v2536, 0.5
    %v2538 = vadd.f32 %v2537, 0.5
    %v2539 = vmul.f32 %v2532, 0.5
    %v2540 = vtanh.pop %v2539
    %v2541 = vmul.f32 %v2540, 0.5
    %v2542 = vadd.f32 %v2541, 0.5
    %v2543 = vtanh.pop %v2533
    %v2544 = vmul.f32 %v2534, 0.5
    %v2545 = vtanh.pop %v2544
    %v2546 = vmul.f32 %v2545, 0.5
    %v2547 = vadd.f32 %v2546, 0.5
    %v2548 = vmul.f32 %v2542, %v2251
    %v2549 = vmul.f32 %v2538, %v2543
    %v2550 = vadd.f32 %v2548, %v2549
    %v2551 = vtanh.pop %v2550
    %v2552 = vmul.f32 %v2547, %v2551
    %s2553 = smul.u32 5, 4
    %s2554 = smul.addr %s2553, 8
    %s2555 = scalar_lea.vmem [#allocation2], %s2554
    %v2556 = vld [vmem:[%s2555] sm:$0xff]
    %v2557 = vld [vmem:[%s2555 + $0x8] sm:$0xff]
    %v2558 = vld [vmem:[%s2555 + $0x10] sm:$0xff]
    %v2559 = vld [vmem:[%s2555 + $0x18] sm:$0xff]
    %2560 = vmatprep.subr.bf16.mxu0 %v619
    %2561 = vmatpush1.bf16.msra.mxu0 %v618
    %2562 = vmatprep.subr.bf16.mxu0 %v623
    %2563 = vmatpush1.bf16.msra.mxu0 %v622
    %2564 = vmatprep.subr.bf16.mxu0 %v627
    %2565 = vmatpush1.bf16.msra.mxu0 %v626
    %2566 = vmatprep.subr.bf16.mxu0 %v631
    %2567 = vmatpush1.bf16.msra.mxu0 %v630
    %2568 = vmatprep.subr.bf16.mxu0 %v635
    %2569 = vmatpush1.bf16.msra.mxu0 %v634
    %2570 = vmatprep.subr.bf16.mxu0 %v639
    %2571 = vmatpush1.bf16.msra.mxu0 %v638
    %2572 = vmatprep.subr.bf16.mxu0 %v643
    %2573 = vmatpush1.bf16.msra.mxu0 %v642
    %2574 = vmatprep.subr.bf16.mxu0 %v647
    %2575 = vmatpush1.bf16.msra.mxu0 %v646
    %2576 = vmatprep.subr.bf16.mxu0 0
    %2577 = vmatpush1.bf16.msra.mxu0 0
    %2578 = vmatprep.subr.bf16.mxu0 0
    %2579 = vmatpush1.bf16.msra.mxu0 0
    %2580 = vmatprep.subr.bf16.mxu0 0
    %2581 = vmatpush1.bf16.msra.mxu0 0
    %2582 = vmatprep.subr.bf16.mxu0 0
    %2583 = vmatpush1.bf16.msra.mxu0 0
    %2584 = vmatprep.subr.bf16.mxu0 0
    %2585 = vmatpush1.bf16.msra.mxu0 0
    %2586 = vmatprep.subr.bf16.mxu0 0
    %2587 = vmatpush1.bf16.msra.mxu0 0
    %2588 = vmatprep.subr.bf16.mxu0 0
    %2589 = vmatpush1.bf16.msra.mxu0 0
    %2590 = vmatprep.subr.bf16.mxu0 0
    %2591 = vmatpush1.bf16.msra.mxu0 0
    %2592 = vmatprep.mubr.bf16.mxu0 0
    %2593 = vmatmul.mubr.bf16.gmra.mrb[0].mxu0 %v2365
    %v2594 = vpop.f32.mrb[0].mxu0
    %v2595 = vadd.f32 0.0, %v2594
    %v2596 = vpop.f32.mrb[0].mxu0
    %v2597 = vadd.f32 0.0, %v2596
    %v2598 = vpop.f32.mrb[0].mxu0
    %v2599 = vpop.f32.mrb[0].mxu0
    %2600 = vdwg.mxu0
    %2601 = vmatprep.subr.bf16.mxu0 %v621
    %2602 = vmatpush1.bf16.msra.mxu0 %v620
    %2603 = vmatprep.subr.bf16.mxu0 %v625
    %2604 = vmatpush1.bf16.msra.mxu0 %v624
    %2605 = vmatprep.subr.bf16.mxu0 %v629
    %2606 = vmatpush1.bf16.msra.mxu0 %v628
    %2607 = vmatprep.subr.bf16.mxu0 %v633
    %2608 = vmatpush1.bf16.msra.mxu0 %v632
    %2609 = vmatprep.subr.bf16.mxu0 %v637
    %2610 = vmatpush1.bf16.msra.mxu0 %v636
    %2611 = vmatprep.subr.bf16.mxu0 %v641
    %2612 = vmatpush1.bf16.msra.mxu0 %v640
    %2613 = vmatprep.subr.bf16.mxu0 %v645
    %2614 = vmatpush1.bf16.msra.mxu0 %v644
    %2615 = vmatprep.subr.bf16.mxu0 %v649
    %2616 = vmatpush1.bf16.msra.mxu0 %v648
    %2617 = vmatprep.subr.bf16.mxu0 0
    %2618 = vmatpush1.bf16.msra.mxu0 0
    %2619 = vmatprep.subr.bf16.mxu0 0
    %2620 = vmatpush1.bf16.msra.mxu0 0
    %2621 = vmatprep.subr.bf16.mxu0 0
    %2622 = vmatpush1.bf16.msra.mxu0 0
    %2623 = vmatprep.subr.bf16.mxu0 0
    %2624 = vmatpush1.bf16.msra.mxu0 0
    %2625 = vmatprep.subr.bf16.mxu0 0
    %2626 = vmatpush1.bf16.msra.mxu0 0
    %2627 = vmatprep.subr.bf16.mxu0 0
    %2628 = vmatpush1.bf16.msra.mxu0 0
    %2629 = vmatprep.subr.bf16.mxu0 0
    %2630 = vmatpush1.bf16.msra.mxu0 0
    %2631 = vmatprep.subr.bf16.mxu0 0
    %2632 = vmatpush1.bf16.msra.mxu0 0
    %2633 = vmatprep.mubr.bf16.mxu0 0
    %2634 = vmatmul.mubr.bf16.gmra.mrb[0].mxu0 %v2365
    %v2635 = vpop.f32.mrb[0].mxu0
    %v2636 = vadd.f32 0.0, %v2635
    %v2637 = vpop.f32.mrb[0].mxu0
    %v2638 = vadd.f32 0.0, %v2637
    %v2639 = vpop.f32.mrb[0].mxu0
    %v2640 = vpop.f32.mrb[0].mxu0
    %2641 = vdwg.mxu0
    %v2642 = vadd.f32 %v2556, %v2595
    %v2643 = vadd.f32 %v2557, %v2597
    %v2644 = vadd.f32 %v2558, %v2636
    %v2645 = vadd.f32 %v2559, %v2638
    %v2646 = vmul.f32 %v2642, 0.5
    %v2647 = vtanh.pop %v2646
    %v2648 = vmul.f32 %v2647, 0.5
    %v2649 = vadd.f32 %v2648, 0.5
    %v2650 = vmul.f32 %v2643, 0.5
    %v2651 = vtanh.pop %v2650
    %v2652 = vmul.f32 %v2651, 0.5
    %v2653 = vadd.f32 %v2652, 0.5
    %v2654 = vtanh.pop %v2644
    %v2655 = vmul.f32 %v2645, 0.5
    %v2656 = vtanh.pop %v2655
    %v2657 = vmul.f32 %v2656, 0.5
    %v2658 = vadd.f32 %v2657, 0.5
    %v2659 = vmul.f32 %v2653, %v2362
    %v2660 = vmul.f32 %v2649, %v2654
    %v2661 = vadd.f32 %v2659, %v2660
    %v2662 = vtanh.pop %v2661
    %v2663 = vmul.f32 %v2658, %v2662
    %v2664 = vpack.c.bf16 %v2663, %v2663
    %v2665 = vpack.c.bf16 %v2552, %v2552
    %2666 = vmatprep.subr.bf16.mxu0 %v948
    %2667 = vmatpush1.bf16.msra.mxu0 %v947
    %2668 = vmatprep.subr.bf16.mxu0 %v952
    %2669 = vmatpush1.bf16.msra.mxu0 %v951
    %2670 = vmatprep.subr.bf16.mxu0 %v956
    %2671 = vmatpush1.bf16.msra.mxu0 %v955
    %2672 = vmatprep.subr.bf16.mxu0 %v960
    %2673 = vmatpush1.bf16.msra.mxu0 %v959
    %2674 = vmatprep.subr.bf16.mxu0 %v964
    %2675 = vmatpush1.bf16.msra.mxu0 %v963
    %2676 = vmatprep.subr.bf16.mxu0 %v968
    %2677 = vmatpush1.bf16.msra.mxu0 %v967
    %2678 = vmatprep.subr.bf16.mxu0 %v972
    %2679 = vmatpush1.bf16.msra.mxu0 %v971
    %2680 = vmatprep.subr.bf16.mxu0 %v976
    %2681 = vmatpush1.bf16.msra.mxu0 %v975
    %2682 = vmatprep.subr.bf16.mxu0 0
    %2683 = vmatpush1.bf16.msra.mxu0 0
    %2684 = vmatprep.subr.bf16.mxu0 0
    %2685 = vmatpush1.bf16.msra.mxu0 0
    %2686 = vmatprep.subr.bf16.mxu0 0
    %2687 = vmatpush1.bf16.msra.mxu0 0
    %2688 = vmatprep.subr.bf16.mxu0 0
    %2689 = vmatpush1.bf16.msra.mxu0 0
    %2690 = vmatprep.subr.bf16.mxu0 0
    %2691 = vmatpush1.bf16.msra.mxu0 0
    %2692 = vmatprep.subr.bf16.mxu0 0
    %2693 = vmatpush1.bf16.msra.mxu0 0
    %2694 = vmatprep.subr.bf16.mxu0 0
    %2695 = vmatpush1.bf16.msra.mxu0 0
    %2696 = vmatprep.subr.bf16.mxu0 0
    %2697 = vmatpush1.bf16.msra.mxu0 0
    %2698 = vmatprep.mubr.bf16.mxu0 0
    %2699 = vmatmul.mubr.bf16.gmra.mrb[0].mxu0 %v2665
    %v2700 = vpop.f32.mrb[0].mxu0
    %v2701 = vadd.f32 0.0, %v2700
    %v2702 = vpop.f32.mrb[0].mxu0
    %v2703 = vadd.f32 0.0, %v2702
    %v2704 = vpop.f32.mrb[0].mxu0
    %v2705 = vpop.f32.mrb[0].mxu0
    %2706 = vdwg.mxu0
    %2707 = vmatprep.subr.bf16.mxu0 %v950
    %2708 = vmatpush1.bf16.msra.mxu0 %v949
    %2709 = vmatprep.subr.bf16.mxu0 %v954
    %2710 = vmatpush1.bf16.msra.mxu0 %v953
    %2711 = vmatprep.subr.bf16.mxu0 %v958
    %2712 = vmatpush1.bf16.msra.mxu0 %v957
    %2713 = vmatprep.subr.bf16.mxu0 %v962
    %2714 = vmatpush1.bf16.msra.mxu0 %v961
    %2715 = vmatprep.subr.bf16.mxu0 %v966
    %2716 = vmatpush1.bf16.msra.mxu0 %v965
    %2717 = vmatprep.subr.bf16.mxu0 %v970
    %2718 = vmatpush1.bf16.msra.mxu0 %v969
    %2719 = vmatprep.subr.bf16.mxu0 %v974
    %2720 = vmatpush1.bf16.msra.mxu0 %v973
    %2721 = vmatprep.subr.bf16.mxu0 %v978
    %2722 = vmatpush1.bf16.msra.mxu0 %v977
    %2723 = vmatprep.subr.bf16.mxu0 0
    %2724 = vmatpush1.bf16.msra.mxu0 0
    %2725 = vmatprep.subr.bf16.mxu0 0
    %2726 = vmatpush1.bf16.msra.mxu0 0
    %2727 = vmatprep.subr.bf16.mxu0 0
    %2728 = vmatpush1.bf16.msra.mxu0 0
    %2729 = vmatprep.subr.bf16.mxu0 0
    %2730 = vmatpush1.bf16.msra.mxu0 0
    %2731 = vmatprep.subr.bf16.mxu0 0
    %2732 = vmatpush1.bf16.msra.mxu0 0
    %2733 = vmatprep.subr.bf16.mxu0 0
    %2734 = vmatpush1.bf16.msra.mxu0 0
    %2735 = vmatprep.subr.bf16.mxu0 0
    %2736 = vmatpush1.bf16.msra.mxu0 0
    %2737 = vmatprep.subr.bf16.mxu0 0
    %2738 = vmatpush1.bf16.msra.mxu0 0
    %2739 = vmatprep.mubr.bf16.mxu0 0
    %2740 = vmatmul.mubr.bf16.gmra.mrb[0].mxu0 %v2665
    %v2741 = vpop.f32.mrb[0].mxu0
    %v2742 = vadd.f32 0.0, %v2741
    %v2743 = vpop.f32.mrb[0].mxu0
    %v2744 = vadd.f32 0.0, %v2743
    %v2745 = vpop.f32.mrb[0].mxu0
    %v2746 = vpop.f32.mrb[0].mxu0
    %2747 = vdwg.mxu0
    %2748 = vmatprep.subr.bf16.mxu0 %v1190
    %2749 = vmatpush1.bf16.msra.mxu0 %v1189
    %2750 = vmatprep.subr.bf16.mxu0 %v1194
    %2751 = vmatpush1.bf16.msra.mxu0 %v1193
    %2752 = vmatprep.subr.bf16.mxu0 %v1198
    %2753 = vmatpush1.bf16.msra.mxu0 %v1197
    %2754 = vmatprep.subr.bf16.mxu0 %v1202
    %2755 = vmatpush1.bf16.msra.mxu0 %v1201
    %2756 = vmatprep.subr.bf16.mxu0 %v1206
    %2757 = vmatpush1.bf16.msra.mxu0 %v1205
    %2758 = vmatprep.subr.bf16.mxu0 %v1210
    %2759 = vmatpush1.bf16.msra.mxu0 %v1209
    %2760 = vmatprep.subr.bf16.mxu0 %v1214
    %2761 = vmatpush1.bf16.msra.mxu0 %v1213
    %2762 = vmatprep.subr.bf16.mxu0 %v1218
    %2763 = vmatpush1.bf16.msra.mxu0 %v1217
    %2764 = vmatprep.subr.bf16.mxu0 0
    %2765 = vmatpush1.bf16.msra.mxu0 0
    %2766 = vmatprep.subr.bf16.mxu0 0
    %2767 = vmatpush1.bf16.msra.mxu0 0
    %2768 = vmatprep.subr.bf16.mxu0 0
    %2769 = vmatpush1.bf16.msra.mxu0 0
    %2770 = vmatprep.subr.bf16.mxu0 0
    %2771 = vmatpush1.bf16.msra.mxu0 0
    %2772 = vmatprep.subr.bf16.mxu0 0
    %2773 = vmatpush1.bf16.msra.mxu0 0
    %2774 = vmatprep.subr.bf16.mxu0 0
    %2775 = vmatpush1.bf16.msra.mxu0 0
    %2776 = vmatprep.subr.bf16.mxu0 0
    %2777 = vmatpush1.bf16.msra.mxu0 0
    %2778 = vmatprep.subr.bf16.mxu0 0
    %2779 = vmatpush1.bf16.msra.mxu0 0
    %2780 = vmatprep.mubr.bf16.mxu0 0
    %2781 = vmatmul.mubr.bf16.gmra.mrb[0].mxu0 %v2664
    %v2782 = vpop.f32.mrb[0].mxu0
    %v2783 = vadd.f32 %v2701, %v2782
    %v2784 = vpop.f32.mrb[0].mxu0
    %v2785 = vadd.f32 %v2703, %v2784
    %v2786 = vpop.f32.mrb[0].mxu0
    %v2787 = vpop.f32.mrb[0].mxu0
    %2788 = vdwg.mxu0
    %2789 = vmatprep.subr.bf16.mxu0 %v1192
    %2790 = vmatpush1.bf16.msra.mxu0 %v1191
    %2791 = vmatprep.subr.bf16.mxu0 %v1196
    %2792 = vmatpush1.bf16.msra.mxu0 %v1195
    %2793 = vmatprep.subr.bf16.mxu0 %v1200
    %2794 = vmatpush1.bf16.msra.mxu0 %v1199
    %2795 = vmatprep.subr.bf16.mxu0 %v1204
    %2796 = vmatpush1.bf16.msra.mxu0 %v1203
    %2797 = vmatprep.subr.bf16.mxu0 %v1208
    %2798 = vmatpush1.bf16.msra.mxu0 %v1207
    %2799 = vmatprep.subr.bf16.mxu0 %v1212
    %2800 = vmatpush1.bf16.msra.mxu0 %v1211
    %2801 = vmatprep.subr.bf16.mxu0 %v1216
    %2802 = vmatpush1.bf16.msra.mxu0 %v1215
    %2803 = vmatprep.subr.bf16.mxu0 %v1220
    %2804 = vmatpush1.bf16.msra.mxu0 %v1219
    %2805 = vmatprep.subr.bf16.mxu0 0
    %2806 = vmatpush1.bf16.msra.mxu0 0
    %2807 = vmatprep.subr.bf16.mxu0 0
    %2808 = vmatpush1.bf16.msra.mxu0 0
    %2809 = vmatprep.subr.bf16.mxu0 0
    %2810 = vmatpush1.bf16.msra.mxu0 0
    %2811 = vmatprep.subr.bf16.mxu0 0
    %2812 = vmatpush1.bf16.msra.mxu0 0
    %2813 = vmatprep.subr.bf16.mxu0 0
    %2814 = vmatpush1.bf16.msra.mxu0 0
    %2815 = vmatprep.subr.bf16.mxu0 0
    %2816 = vmatpush1.bf16.msra.mxu0 0
    %2817 = vmatprep.subr.bf16.mxu0 0
    %2818 = vmatpush1.bf16.msra.mxu0 0
    %2819 = vmatprep.subr.bf16.mxu0 0
    %2820 = vmatpush1.bf16.msra.mxu0 0
    %2821 = vmatprep.mubr.bf16.mxu0 0
    %2822 = vmatmul.mubr.bf16.gmra.mrb[0].mxu0 %v2664
    %v2823 = vpop.f32.mrb[0].mxu0
    %v2824 = vadd.f32 %v2742, %v2823
    %v2825 = vpop.f32.mrb[0].mxu0
    %v2826 = vadd.f32 %v2744, %v2825
    %v2827 = vpop.f32.mrb[0].mxu0
    %v2828 = vpop.f32.mrb[0].mxu0
    %2829 = vdwg.mxu0
    %v2830 = vadd.f32 %v2783, %v466
    %v2831 = vadd.f32 %v2785, %v470
    %v2832 = vadd.f32 %v2824, %v474
    %v2833 = vadd.f32 %v2826, %v478
    %v2834 = vmul.f32 %v2830, 0.5
    %v2835 = vtanh.pop %v2834
    %v2836 = vmul.f32 %v2835, 0.5
    %v2837 = vadd.f32 %v2836, 0.5
    %v2838 = vmul.f32 %v2831, 0.5
    %v2839 = vtanh.pop %v2838
    %v2840 = vmul.f32 %v2839, 0.5
    %v2841 = vadd.f32 %v2840, 0.5
    %v2842 = vtanh.pop %v2832
    %v2843 = vmul.f32 %v2833, 0.5
    %v2844 = vtanh.pop %v2843
    %v2845 = vmul.f32 %v2844, 0.5
    %v2846 = vadd.f32 %v2845, 0.5
    %v2847 = vmul.f32 %v2841, %v2550
    %v2848 = vmul.f32 %v2837, %v2842
    %v2849 = vadd.f32 %v2847, %v2848
    %v2850 = vtanh.pop %v2849
    %v2851 = vmul.f32 %v2846, %v2850
    %s2852 = smul.u32 6, 4
    %s2853 = smul.addr %s2852, 8
    %s2854 = scalar_lea.vmem [#allocation2], %s2853
    %v2855 = vld [vmem:[%s2854] sm:$0xff]
    %v2856 = vld [vmem:[%s2854 + $0x8] sm:$0xff]
    %v2857 = vld [vmem:[%s2854 + $0x10] sm:$0xff]
    %v2858 = vld [vmem:[%s2854 + $0x18] sm:$0xff]
    %2859 = vmatprep.subr.bf16.mxu0 %v619
    %2860 = vmatpush1.bf16.msra.mxu0 %v618
    %2861 = vmatprep.subr.bf16.mxu0 %v623
    %2862 = vmatpush1.bf16.msra.mxu0 %v622
    %2863 = vmatprep.subr.bf16.mxu0 %v627
    %2864 = vmatpush1.bf16.msra.mxu0 %v626
    %2865 = vmatprep.subr.bf16.mxu0 %v631
    %2866 = vmatpush1.bf16.msra.mxu0 %v630
    %2867 = vmatprep.subr.bf16.mxu0 %v635
    %2868 = vmatpush1.bf16.msra.mxu0 %v634
    %2869 = vmatprep.subr.bf16.mxu0 %v639
    %2870 = vmatpush1.bf16.msra.mxu0 %v638
    %2871 = vmatprep.subr.bf16.mxu0 %v643
    %2872 = vmatpush1.bf16.msra.mxu0 %v642
    %2873 = vmatprep.subr.bf16.mxu0 %v647
    %2874 = vmatpush1.bf16.msra.mxu0 %v646
    %2875 = vmatprep.subr.bf16.mxu0 0
    %2876 = vmatpush1.bf16.msra.mxu0 0
    %2877 = vmatprep.subr.bf16.mxu0 0
    %2878 = vmatpush1.bf16.msra.mxu0 0
    %2879 = vmatprep.subr.bf16.mxu0 0
    %2880 = vmatpush1.bf16.msra.mxu0 0
    %2881 = vmatprep.subr.bf16.mxu0 0
    %2882 = vmatpush1.bf16.msra.mxu0 0
    %2883 = vmatprep.subr.bf16.mxu0 0
    %2884 = vmatpush1.bf16.msra.mxu0 0
    %2885 = vmatprep.subr.bf16.mxu0 0
    %2886 = vmatpush1.bf16.msra.mxu0 0
    %2887 = vmatprep.subr.bf16.mxu0 0
    %2888 = vmatpush1.bf16.msra.mxu0 0
    %2889 = vmatprep.subr.bf16.mxu0 0
    %2890 = vmatpush1.bf16.msra.mxu0 0
    %2891 = vmatprep.mubr.bf16.mxu0 0
    %2892 = vmatmul.mubr.bf16.gmra.mrb[0].mxu0 %v2664
    %v2893 = vpop.f32.mrb[0].mxu0
    %v2894 = vadd.f32 0.0, %v2893
    %v2895 = vpop.f32.mrb[0].mxu0
    %v2896 = vadd.f32 0.0, %v2895
    %v2897 = vpop.f32.mrb[0].mxu0
    %v2898 = vpop.f32.mrb[0].mxu0
    %2899 = vdwg.mxu0
    %2900 = vmatprep.subr.bf16.mxu0 %v621
    %2901 = vmatpush1.bf16.msra.mxu0 %v620
    %2902 = vmatprep.subr.bf16.mxu0 %v625
    %2903 = vmatpush1.bf16.msra.mxu0 %v624
    %2904 = vmatprep.subr.bf16.mxu0 %v629
    %2905 = vmatpush1.bf16.msra.mxu0 %v628
    %2906 = vmatprep.subr.bf16.mxu0 %v633
    %2907 = vmatpush1.bf16.msra.mxu0 %v632
    %2908 = vmatprep.subr.bf16.mxu0 %v637
    %2909 = vmatpush1.bf16.msra.mxu0 %v636
    %2910 = vmatprep.subr.bf16.mxu0 %v641
    %2911 = vmatpush1.bf16.msra.mxu0 %v640
    %2912 = vmatprep.subr.bf16.mxu0 %v645
    %2913 = vmatpush1.bf16.msra.mxu0 %v644
    %2914 = vmatprep.subr.bf16.mxu0 %v649
    %2915 = vmatpush1.bf16.msra.mxu0 %v648
    %2916 = vmatprep.subr.bf16.mxu0 0
    %2917 = vmatpush1.bf16.msra.mxu0 0
    %2918 = vmatprep.subr.bf16.mxu0 0
    %2919 = vmatpush1.bf16.msra.mxu0 0
    %2920 = vmatprep.subr.bf16.mxu0 0
    %2921 = vmatpush1.bf16.msra.mxu0 0
    %2922 = vmatprep.subr.bf16.mxu0 0
    %2923 = vmatpush1.bf16.msra.mxu0 0
    %2924 = vmatprep.subr.bf16.mxu0 0
    %2925 = vmatpush1.bf16.msra.mxu0 0
    %2926 = vmatprep.subr.bf16.mxu0 0
    %2927 = vmatpush1.bf16.msra.mxu0 0
    %2928 = vmatprep.subr.bf16.mxu0 0
    %2929 = vmatpush1.bf16.msra.mxu0 0
    %2930 = vmatprep.subr.bf16.mxu0 0
    %2931 = vmatpush1.bf16.msra.mxu0 0
    %2932 = vmatprep.mubr.bf16.mxu0 0
    %2933 = vmatmul.mubr.bf16.gmra.mrb[0].mxu0 %v2664
    %v2934 = vpop.f32.mrb[0].mxu0
    %v2935 = vadd.f32 0.0, %v2934
    %v2936 = vpop.f32.mrb[0].mxu0
    %v2937 = vadd.f32 0.0, %v2936
    %v2938 = vpop.f32.mrb[0].mxu0
    %v2939 = vpop.f32.mrb[0].mxu0
    %2940 = vdwg.mxu0
    %v2941 = vadd.f32 %v2855, %v2894
    %v2942 = vadd.f32 %v2856, %v2896
    %v2943 = vadd.f32 %v2857, %v2935
    %v2944 = vadd.f32 %v2858, %v2937
    %v2945 = vmul.f32 %v2941, 0.5
    %v2946 = vtanh.pop %v2945
    %v2947 = vmul.f32 %v2946, 0.5
    %v2948 = vadd.f32 %v2947, 0.5
    %v2949 = vmul.f32 %v2942, 0.5
    %v2950 = vtanh.pop %v2949
    %v2951 = vmul.f32 %v2950, 0.5
    %v2952 = vadd.f32 %v2951, 0.5
    %v2953 = vtanh.pop %v2943
    %v2954 = vmul.f32 %v2944, 0.5
    %v2955 = vtanh.pop %v2954
    %v2956 = vmul.f32 %v2955, 0.5
    %v2957 = vadd.f32 %v2956, 0.5
    %v2958 = vmul.f32 %v2952, %v2661
    %v2959 = vmul.f32 %v2948, %v2953
    %v2960 = vadd.f32 %v2958, %v2959
    %v2961 = vtanh.pop %v2960
    %v2962 = vmul.f32 %v2957, %v2961
    %v2963 = vpack.c.bf16 %v2962, %v2962
    %v2964 = vpack.c.bf16 %v2851, %v2851
    %2965 = vmatprep.subr.bf16.mxu0 %v948
    %2966 = vmatpush1.bf16.msra.mxu0 %v947
    %2967 = vmatprep.subr.bf16.mxu0 %v952
    %2968 = vmatpush1.bf16.msra.mxu0 %v951
    %2969 = vmatprep.subr.bf16.mxu0 %v956
    %2970 = vmatpush1.bf16.msra.mxu0 %v955
    %2971 = vmatprep.subr.bf16.mxu0 %v960
    %2972 = vmatpush1.bf16.msra.mxu0 %v959
    %2973 = vmatprep.subr.bf16.mxu0 %v964
    %2974 = vmatpush1.bf16.msra.mxu0 %v963
    %2975 = vmatprep.subr.bf16.mxu0 %v968
    %2976 = vmatpush1.bf16.msra.mxu0 %v967
    %2977 = vmatprep.subr.bf16.mxu0 %v972
    %2978 = vmatpush1.bf16.msra.mxu0 %v971
    %2979 = vmatprep.subr.bf16.mxu0 %v976
    %2980 = vmatpush1.bf16.msra.mxu0 %v975
    %2981 = vmatprep.subr.bf16.mxu0 0
    %2982 = vmatpush1.bf16.msra.mxu0 0
    %2983 = vmatprep.subr.bf16.mxu0 0
    %2984 = vmatpush1.bf16.msra.mxu0 0
    %2985 = vmatprep.subr.bf16.mxu0 0
    %2986 = vmatpush1.bf16.msra.mxu0 0
    %2987 = vmatprep.subr.bf16.mxu0 0
    %2988 = vmatpush1.bf16.msra.mxu0 0
    %2989 = vmatprep.subr.bf16.mxu0 0
    %2990 = vmatpush1.bf16.msra.mxu0 0
    %2991 = vmatprep.subr.bf16.mxu0 0
    %2992 = vmatpush1.bf16.msra.mxu0 0
    %2993 = vmatprep.subr.bf16.mxu0 0
    %2994 = vmatpush1.bf16.msra.mxu0 0
    %2995 = vmatprep.subr.bf16.mxu0 0
    %2996 = vmatpush1.bf16.msra.mxu0 0
    %2997 = vmatprep.mubr.bf16.mxu0 0
    %2998 = vmatmul.mubr.bf16.gmra.mrb[0].mxu0 %v2964
    %v2999 = vpop.f32.mrb[0].mxu0
    %v3000 = vadd.f32 0.0, %v2999
    %v3001 = vpop.f32.mrb[0].mxu0
    %v3002 = vadd.f32 0.0, %v3001
    %v3003 = vpop.f32.mrb[0].mxu0
    %v3004 = vpop.f32.mrb[0].mxu0
    %3005 = vdwg.mxu0
    %3006 = vmatprep.subr.bf16.mxu0 %v950
    %3007 = vmatpush1.bf16.msra.mxu0 %v949
    %3008 = vmatprep.subr.bf16.mxu0 %v954
    %3009 = vmatpush1.bf16.msra.mxu0 %v953
    %3010 = vmatprep.subr.bf16.mxu0 %v958
    %3011 = vmatpush1.bf16.msra.mxu0 %v957
    %3012 = vmatprep.subr.bf16.mxu0 %v962
    %3013 = vmatpush1.bf16.msra.mxu0 %v961
    %3014 = vmatprep.subr.bf16.mxu0 %v966
    %3015 = vmatpush1.bf16.msra.mxu0 %v965
    %3016 = vmatprep.subr.bf16.mxu0 %v970
    %3017 = vmatpush1.bf16.msra.mxu0 %v969
    %3018 = vmatprep.subr.bf16.mxu0 %v974
    %3019 = vmatpush1.bf16.msra.mxu0 %v973
    %3020 = vmatprep.subr.bf16.mxu0 %v978
    %3021 = vmatpush1.bf16.msra.mxu0 %v977
    %3022 = vmatprep.subr.bf16.mxu0 0
    %3023 = vmatpush1.bf16.msra.mxu0 0
    %3024 = vmatprep.subr.bf16.mxu0 0
    %3025 = vmatpush1.bf16.msra.mxu0 0
    %3026 = vmatprep.subr.bf16.mxu0 0
    %3027 = vmatpush1.bf16.msra.mxu0 0
    %3028 = vmatprep.subr.bf16.mxu0 0
    %3029 = vmatpush1.bf16.msra.mxu0 0
    %3030 = vmatprep.subr.bf16.mxu0 0
    %3031 = vmatpush1.bf16.msra.mxu0 0
    %3032 = vmatprep.subr.bf16.mxu0 0
    %3033 = vmatpush1.bf16.msra.mxu0 0
    %3034 = vmatprep.subr.bf16.mxu0 0
    %3035 = vmatpush1.bf16.msra.mxu0 0
    %3036 = vmatprep.subr.bf16.mxu0 0
    %3037 = vmatpush1.bf16.msra.mxu0 0
    %3038 = vmatprep.mubr.bf16.mxu0 0
    %3039 = vmatmul.mubr.bf16.gmra.mrb[0].mxu0 %v2964
    %v3040 = vpop.f32.mrb[0].mxu0
    %v3041 = vadd.f32 0.0, %v3040
    %v3042 = vpop.f32.mrb[0].mxu0
    %v3043 = vadd.f32 0.0, %v3042
    %v3044 = vpop.f32.mrb[0].mxu0
    %v3045 = vpop.f32.mrb[0].mxu0
    %3046 = vdwg.mxu0
    %3047 = vmatprep.subr.bf16.mxu0 %v1190
    %3048 = vmatpush1.bf16.msra.mxu0 %v1189
    %3049 = vmatprep.subr.bf16.mxu0 %v1194
    %3050 = vmatpush1.bf16.msra.mxu0 %v1193
    %3051 = vmatprep.subr.bf16.mxu0 %v1198
    %3052 = vmatpush1.bf16.msra.mxu0 %v1197
    %3053 = vmatprep.subr.bf16.mxu0 %v1202
    %3054 = vmatpush1.bf16.msra.mxu0 %v1201
    %3055 = vmatprep.subr.bf16.mxu0 %v1206
    %3056 = vmatpush1.bf16.msra.mxu0 %v1205
    %3057 = vmatprep.subr.bf16.mxu0 %v1210
    %3058 = vmatpush1.bf16.msra.mxu0 %v1209
    %3059 = vmatprep.subr.bf16.mxu0 %v1214
    %3060 = vmatpush1.bf16.msra.mxu0 %v1213
    %3061 = vmatprep.subr.bf16.mxu0 %v1218
    %3062 = vmatpush1.bf16.msra.mxu0 %v1217
    %3063 = vmatprep.subr.bf16.mxu0 0
    %3064 = vmatpush1.bf16.msra.mxu0 0
    %3065 = vmatprep.subr.bf16.mxu0 0
    %3066 = vmatpush1.bf16.msra.mxu0 0
    %3067 = vmatprep.subr.bf16.mxu0 0
    %3068 = vmatpush1.bf16.msra.mxu0 0
    %3069 = vmatprep.subr.bf16.mxu0 0
    %3070 = vmatpush1.bf16.msra.mxu0 0
    %3071 = vmatprep.subr.bf16.mxu0 0
    %3072 = vmatpush1.bf16.msra.mxu0 0
    %3073 = vmatprep.subr.bf16.mxu0 0
    %3074 = vmatpush1.bf16.msra.mxu0 0
    %3075 = vmatprep.subr.bf16.mxu0 0
    %3076 = vmatpush1.bf16.msra.mxu0 0
    %3077 = vmatprep.subr.bf16.mxu0 0
    %3078 = vmatpush1.bf16.msra.mxu0 0
    %3079 = vmatprep.mubr.bf16.mxu0 0
    %3080 = vmatmul.mubr.bf16.gmra.mrb[0].mxu0 %v2963
    %v3081 = vpop.f32.mrb[0].mxu0
    %v3082 = vadd.f32 %v3000, %v3081
    %v3083 = vpop.f32.mrb[0].mxu0
    %v3084 = vadd.f32 %v3002, %v3083
    %v3085 = vpop.f32.mrb[0].mxu0
    %v3086 = vpop.f32.mrb[0].mxu0
    %3087 = vdwg.mxu0
    %3088 = vmatprep.subr.bf16.mxu0 %v1192
    %3089 = vmatpush1.bf16.msra.mxu0 %v1191
    %3090 = vmatprep.subr.bf16.mxu0 %v1196
    %3091 = vmatpush1.bf16.msra.mxu0 %v1195
    %3092 = vmatprep.subr.bf16.mxu0 %v1200
    %3093 = vmatpush1.bf16.msra.mxu0 %v1199
    %3094 = vmatprep.subr.bf16.mxu0 %v1204
    %3095 = vmatpush1.bf16.msra.mxu0 %v1203
    %3096 = vmatprep.subr.bf16.mxu0 %v1208
    %3097 = vmatpush1.bf16.msra.mxu0 %v1207
    %3098 = vmatprep.subr.bf16.mxu0 %v1212
    %3099 = vmatpush1.bf16.msra.mxu0 %v1211
    %3100 = vmatprep.subr.bf16.mxu0 %v1216
    %3101 = vmatpush1.bf16.msra.mxu0 %v1215
    %3102 = vmatprep.subr.bf16.mxu0 %v1220
    %3103 = vmatpush1.bf16.msra.mxu0 %v1219
    %3104 = vmatprep.subr.bf16.mxu0 0
    %3105 = vmatpush1.bf16.msra.mxu0 0
    %3106 = vmatprep.subr.bf16.mxu0 0
    %3107 = vmatpush1.bf16.msra.mxu0 0
    %3108 = vmatprep.subr.bf16.mxu0 0
    %3109 = vmatpush1.bf16.msra.mxu0 0
    %3110 = vmatprep.subr.bf16.mxu0 0
    %3111 = vmatpush1.bf16.msra.mxu0 0
    %3112 = vmatprep.subr.bf16.mxu0 0
    %3113 = vmatpush1.bf16.msra.mxu0 0
    %3114 = vmatprep.subr.bf16.mxu0 0
    %3115 = vmatpush1.bf16.msra.mxu0 0
    %3116 = vmatprep.subr.bf16.mxu0 0
    %3117 = vmatpush1.bf16.msra.mxu0 0
    %3118 = vmatprep.subr.bf16.mxu0 0
    %3119 = vmatpush1.bf16.msra.mxu0 0
    %3120 = vmatprep.mubr.bf16.mxu0 0
    %3121 = vmatmul.mubr.bf16.gmra.mrb[0].mxu0 %v2963
    %v3122 = vpop.f32.mrb[0].mxu0
    %v3123 = vadd.f32 %v3041, %v3122
    %v3124 = vpop.f32.mrb[0].mxu0
    %v3125 = vadd.f32 %v3043, %v3124
    %v3126 = vpop.f32.mrb[0].mxu0
    %v3127 = vpop.f32.mrb[0].mxu0
    %3128 = vdwg.mxu0
    %v3129 = vadd.f32 %v3082, %v466
    %v3130 = vadd.f32 %v3084, %v470
    %v3131 = vadd.f32 %v3123, %v474
    %v3132 = vadd.f32 %v3125, %v478
    %v3133 = vmul.f32 %v3129, 0.5
    %v3134 = vtanh.pop %v3133
    %v3135 = vmul.f32 %v3134, 0.5
    %v3136 = vadd.f32 %v3135, 0.5
    %v3137 = vmul.f32 %v3130, 0.5
    %v3138 = vtanh.pop %v3137
    %v3139 = vmul.f32 %v3138, 0.5
    %v3140 = vadd.f32 %v3139, 0.5
    %v3141 = vtanh.pop %v3131
    %v3142 = vmul.f32 %v3132, 0.5
    %v3143 = vtanh.pop %v3142
    %v3144 = vmul.f32 %v3143, 0.5
    %v3145 = vadd.f32 %v3144, 0.5
    %v3146 = vmul.f32 %v3140, %v2849
    %v3147 = vmul.f32 %v3136, %v3141
    %v3148 = vadd.f32 %v3146, %v3147
    %v3149 = vtanh.pop %v3148
    %v3150 = vmul.f32 %v3145, %v3149
    %s3151 = smul.u32 7, 4
    %s3152 = smul.addr %s3151, 8
    %s3153 = scalar_lea.vmem [#allocation2], %s3152
    %v3154 = vld [vmem:[%s3153] sm:$0xff]
    %v3155 = vld [vmem:[%s3153 + $0x8] sm:$0xff]
    %v3156 = vld [vmem:[%s3153 + $0x10] sm:$0xff]
    %v3157 = vld [vmem:[%s3153 + $0x18] sm:$0xff]
    %3158 = vmatprep.subr.bf16.mxu0 %v619
    %3159 = vmatpush1.bf16.msra.mxu0 %v618
    %3160 = vmatprep.subr.bf16.mxu0 %v623
    %3161 = vmatpush1.bf16.msra.mxu0 %v622
    %3162 = vmatprep.subr.bf16.mxu0 %v627
    %3163 = vmatpush1.bf16.msra.mxu0 %v626
    %3164 = vmatprep.subr.bf16.mxu0 %v631
    %3165 = vmatpush1.bf16.msra.mxu0 %v630
    %3166 = vmatprep.subr.bf16.mxu0 %v635
    %3167 = vmatpush1.bf16.msra.mxu0 %v634
    %3168 = vmatprep.subr.bf16.mxu0 %v639
    %3169 = vmatpush1.bf16.msra.mxu0 %v638
    %3170 = vmatprep.subr.bf16.mxu0 %v643
    %3171 = vmatpush1.bf16.msra.mxu0 %v642
    %3172 = vmatprep.subr.bf16.mxu0 %v647
    %3173 = vmatpush1.bf16.msra.mxu0 %v646
    %3174 = vmatprep.subr.bf16.mxu0 0
    %3175 = vmatpush1.bf16.msra.mxu0 0
    %3176 = vmatprep.subr.bf16.mxu0 0
    %3177 = vmatpush1.bf16.msra.mxu0 0
    %3178 = vmatprep.subr.bf16.mxu0 0
    %3179 = vmatpush1.bf16.msra.mxu0 0
    %3180 = vmatprep.subr.bf16.mxu0 0
    %3181 = vmatpush1.bf16.msra.mxu0 0
    %3182 = vmatprep.subr.bf16.mxu0 0
    %3183 = vmatpush1.bf16.msra.mxu0 0
    %3184 = vmatprep.subr.bf16.mxu0 0
    %3185 = vmatpush1.bf16.msra.mxu0 0
    %3186 = vmatprep.subr.bf16.mxu0 0
    %3187 = vmatpush1.bf16.msra.mxu0 0
    %3188 = vmatprep.subr.bf16.mxu0 0
    %3189 = vmatpush1.bf16.msra.mxu0 0
    %3190 = vmatprep.mubr.bf16.mxu0 0
    %3191 = vmatmul.mubr.bf16.gmra.mrb[0].mxu0 %v2963
    %v3192 = vpop.f32.mrb[0].mxu0
    %v3193 = vadd.f32 0.0, %v3192
    %v3194 = vpop.f32.mrb[0].mxu0
    %v3195 = vadd.f32 0.0, %v3194
    %v3196 = vpop.f32.mrb[0].mxu0
    %v3197 = vpop.f32.mrb[0].mxu0
    %3198 = vdwg.mxu0
    %3199 = vmatprep.subr.bf16.mxu0 %v621
    %3200 = vmatpush1.bf16.msra.mxu0 %v620
    %3201 = vmatprep.subr.bf16.mxu0 %v625
    %3202 = vmatpush1.bf16.msra.mxu0 %v624
    %3203 = vmatprep.subr.bf16.mxu0 %v629
    %3204 = vmatpush1.bf16.msra.mxu0 %v628
    %3205 = vmatprep.subr.bf16.mxu0 %v633
    %3206 = vmatpush1.bf16.msra.mxu0 %v632
    %3207 = vmatprep.subr.bf16.mxu0 %v637
    %3208 = vmatpush1.bf16.msra.mxu0 %v636
    %3209 = vmatprep.subr.bf16.mxu0 %v641
    %3210 = vmatpush1.bf16.msra.mxu0 %v640
    %3211 = vmatprep.subr.bf16.mxu0 %v645
    %3212 = vmatpush1.bf16.msra.mxu0 %v644
    %3213 = vmatprep.subr.bf16.mxu0 %v649
    %3214 = vmatpush1.bf16.msra.mxu0 %v648
    %3215 = vmatprep.subr.bf16.mxu0 0
    %3216 = vmatpush1.bf16.msra.mxu0 0
    %3217 = vmatprep.subr.bf16.mxu0 0
    %3218 = vmatpush1.bf16.msra.mxu0 0
    %3219 = vmatprep.subr.bf16.mxu0 0
    %3220 = vmatpush1.bf16.msra.mxu0 0
    %3221 = vmatprep.subr.bf16.mxu0 0
    %3222 = vmatpush1.bf16.msra.mxu0 0
    %3223 = vmatprep.subr.bf16.mxu0 0
    %3224 = vmatpush1.bf16.msra.mxu0 0
    %3225 = vmatprep.subr.bf16.mxu0 0
    %3226 = vmatpush1.bf16.msra.mxu0 0
    %3227 = vmatprep.subr.bf16.mxu0 0
    %3228 = vmatpush1.bf16.msra.mxu0 0
    %3229 = vmatprep.subr.bf16.mxu0 0
    %3230 = vmatpush1.bf16.msra.mxu0 0
    %3231 = vmatprep.mubr.bf16.mxu0 0
    %3232 = vmatmul.mubr.bf16.gmra.mrb[0].mxu0 %v2963
    %v3233 = vpop.f32.mrb[0].mxu0
    %v3234 = vadd.f32 0.0, %v3233
    %v3235 = vpop.f32.mrb[0].mxu0
    %v3236 = vadd.f32 0.0, %v3235
    %v3237 = vpop.f32.mrb[0].mxu0
    %v3238 = vpop.f32.mrb[0].mxu0
    %3239 = vdwg.mxu0
    %v3240 = vadd.f32 %v3154, %v3193
    %v3241 = vadd.f32 %v3155, %v3195
    %v3242 = vadd.f32 %v3156, %v3234
    %v3243 = vadd.f32 %v3157, %v3236
    %v3244 = vmul.f32 %v3240, 0.5
    %v3245 = vtanh.pop %v3244
    %v3246 = vmul.f32 %v3245, 0.5
    %v3247 = vadd.f32 %v3246, 0.5
    %v3248 = vmul.f32 %v3241, 0.5
    %v3249 = vtanh.pop %v3248
    %v3250 = vmul.f32 %v3249, 0.5
    %v3251 = vadd.f32 %v3250, 0.5
    %v3252 = vtanh.pop %v3242
    %v3253 = vmul.f32 %v3243, 0.5
    %v3254 = vtanh.pop %v3253
    %v3255 = vmul.f32 %v3254, 0.5
    %v3256 = vadd.f32 %v3255, 0.5
    %v3257 = vmul.f32 %v3251, %v2960
    %v3258 = vmul.f32 %v3247, %v3252
    %v3259 = vadd.f32 %v3257, %v3258
    %v3260 = vtanh.pop %v3259
    %v3261 = vmul.f32 %v3256, %v3260
    %v3262 = vpack.c.bf16 %v3261, %v3261
    %v3263 = vpack.c.bf16 %v3150, %v3150
    %3264 = vmatprep.subr.bf16.mxu0 %v948
    %3265 = vmatpush1.bf16.msra.mxu0 %v947
    %3266 = vmatprep.subr.bf16.mxu0 %v952
    %3267 = vmatpush1.bf16.msra.mxu0 %v951
    %3268 = vmatprep.subr.bf16.mxu0 %v956
    %3269 = vmatpush1.bf16.msra.mxu0 %v955
    %3270 = vmatprep.subr.bf16.mxu0 %v960
    %3271 = vmatpush1.bf16.msra.mxu0 %v959
    %3272 = vmatprep.subr.bf16.mxu0 %v964
    %3273 = vmatpush1.bf16.msra.mxu0 %v963
    %3274 = vmatprep.subr.bf16.mxu0 %v968
    %3275 = vmatpush1.bf16.msra.mxu0 %v967
    %3276 = vmatprep.subr.bf16.mxu0 %v972
    %3277 = vmatpush1.bf16.msra.mxu0 %v971
    %3278 = vmatprep.subr.bf16.mxu0 %v976
    %3279 = vmatpush1.bf16.msra.mxu0 %v975
    %3280 = vmatprep.subr.bf16.mxu0 0
    %3281 = vmatpush1.bf16.msra.mxu0 0
    %3282 = vmatprep.subr.bf16.mxu0 0
    %3283 = vmatpush1.bf16.msra.mxu0 0
    %3284 = vmatprep.subr.bf16.mxu0 0
    %3285 = vmatpush1.bf16.msra.mxu0 0
    %3286 = vmatprep.subr.bf16.mxu0 0
    %3287 = vmatpush1.bf16.msra.mxu0 0
    %3288 = vmatprep.subr.bf16.mxu0 0
    %3289 = vmatpush1.bf16.msra.mxu0 0
    %3290 = vmatprep.subr.bf16.mxu0 0
    %3291 = vmatpush1.bf16.msra.mxu0 0
    %3292 = vmatprep.subr.bf16.mxu0 0
    %3293 = vmatpush1.bf16.msra.mxu0 0
    %3294 = vmatprep.subr.bf16.mxu0 0
    %3295 = vmatpush1.bf16.msra.mxu0 0
    %3296 = vmatprep.mubr.bf16.mxu0 0
    %3297 = vmatmul.mubr.bf16.gmra.mrb[0].mxu0 %v3263
    %v3298 = vpop.f32.mrb[0].mxu0
    %v3299 = vadd.f32 0.0, %v3298
    %v3300 = vpop.f32.mrb[0].mxu0
    %v3301 = vadd.f32 0.0, %v3300
    %v3302 = vpop.f32.mrb[0].mxu0
    %v3303 = vpop.f32.mrb[0].mxu0
    %3304 = vdwg.mxu0
    %3305 = vmatprep.subr.bf16.mxu0 %v950
    %3306 = vmatpush1.bf16.msra.mxu0 %v949
    %3307 = vmatprep.subr.bf16.mxu0 %v954
    %3308 = vmatpush1.bf16.msra.mxu0 %v953
    %3309 = vmatprep.subr.bf16.mxu0 %v958
    %3310 = vmatpush1.bf16.msra.mxu0 %v957
    %3311 = vmatprep.subr.bf16.mxu0 %v962
    %3312 = vmatpush1.bf16.msra.mxu0 %v961
    %3313 = vmatprep.subr.bf16.mxu0 %v966
    %3314 = vmatpush1.bf16.msra.mxu0 %v965
    %3315 = vmatprep.subr.bf16.mxu0 %v970
    %3316 = vmatpush1.bf16.msra.mxu0 %v969
    %3317 = vmatprep.subr.bf16.mxu0 %v974
    %3318 = vmatpush1.bf16.msra.mxu0 %v973
    %3319 = vmatprep.subr.bf16.mxu0 %v978
    %3320 = vmatpush1.bf16.msra.mxu0 %v977
    %3321 = vmatprep.subr.bf16.mxu0 0
    %3322 = vmatpush1.bf16.msra.mxu0 0
    %3323 = vmatprep.subr.bf16.mxu0 0
    %3324 = vmatpush1.bf16.msra.mxu0 0
    %3325 = vmatprep.subr.bf16.mxu0 0
    %3326 = vmatpush1.bf16.msra.mxu0 0
    %3327 = vmatprep.subr.bf16.mxu0 0
    %3328 = vmatpush1.bf16.msra.mxu0 0
    %3329 = vmatprep.subr.bf16.mxu0 0
    %3330 = vmatpush1.bf16.msra.mxu0 0
    %3331 = vmatprep.subr.bf16.mxu0 0
    %3332 = vmatpush1.bf16.msra.mxu0 0
    %3333 = vmatprep.subr.bf16.mxu0 0
    %3334 = vmatpush1.bf16.msra.mxu0 0
    %3335 = vmatprep.subr.bf16.mxu0 0
    %3336 = vmatpush1.bf16.msra.mxu0 0
    %3337 = vmatprep.mubr.bf16.mxu0 0
    %3338 = vmatmul.mubr.bf16.gmra.mrb[0].mxu0 %v3263
    %v3339 = vpop.f32.mrb[0].mxu0
    %v3340 = vadd.f32 0.0, %v3339
    %v3341 = vpop.f32.mrb[0].mxu0
    %v3342 = vadd.f32 0.0, %v3341
    %v3343 = vpop.f32.mrb[0].mxu0
    %v3344 = vpop.f32.mrb[0].mxu0
    %3345 = vdwg.mxu0
    %3346 = vmatprep.subr.bf16.mxu0 %v1190
    %3347 = vmatpush1.bf16.msra.mxu0 %v1189
    %3348 = vmatprep.subr.bf16.mxu0 %v1194
    %3349 = vmatpush1.bf16.msra.mxu0 %v1193
    %3350 = vmatprep.subr.bf16.mxu0 %v1198
    %3351 = vmatpush1.bf16.msra.mxu0 %v1197
    %3352 = vmatprep.subr.bf16.mxu0 %v1202
    %3353 = vmatpush1.bf16.msra.mxu0 %v1201
    %3354 = vmatprep.subr.bf16.mxu0 %v1206
    %3355 = vmatpush1.bf16.msra.mxu0 %v1205
    %3356 = vmatprep.subr.bf16.mxu0 %v1210
    %3357 = vmatpush1.bf16.msra.mxu0 %v1209
    %3358 = vmatprep.subr.bf16.mxu0 %v1214
    %3359 = vmatpush1.bf16.msra.mxu0 %v1213
    %3360 = vmatprep.subr.bf16.mxu0 %v1218
    %3361 = vmatpush1.bf16.msra.mxu0 %v1217
    %3362 = vmatprep.subr.bf16.mxu0 0
    %3363 = vmatpush1.bf16.msra.mxu0 0
    %3364 = vmatprep.subr.bf16.mxu0 0
    %3365 = vmatpush1.bf16.msra.mxu0 0
    %3366 = vmatprep.subr.bf16.mxu0 0
    %3367 = vmatpush1.bf16.msra.mxu0 0
    %3368 = vmatprep.subr.bf16.mxu0 0
    %3369 = vmatpush1.bf16.msra.mxu0 0
    %3370 = vmatprep.subr.bf16.mxu0 0
    %3371 = vmatpush1.bf16.msra.mxu0 0
    %3372 = vmatprep.subr.bf16.mxu0 0
    %3373 = vmatpush1.bf16.msra.mxu0 0
    %3374 = vmatprep.subr.bf16.mxu0 0
    %3375 = vmatpush1.bf16.msra.mxu0 0
    %3376 = vmatprep.subr.bf16.mxu0 0
    %3377 = vmatpush1.bf16.msra.mxu0 0
    %3378 = vmatprep.mubr.bf16.mxu0 0
    %3379 = vmatmul.mubr.bf16.gmra.mrb[0].mxu0 %v3262
    %v3380 = vpop.f32.mrb[0].mxu0
    %v3381 = vadd.f32 %v3299, %v3380
    %v3382 = vpop.f32.mrb[0].mxu0
    %v3383 = vadd.f32 %v3301, %v3382
    %v3384 = vpop.f32.mrb[0].mxu0
    %v3385 = vpop.f32.mrb[0].mxu0
    %3386 = vdwg.mxu0
    %3387 = vmatprep.subr.bf16.mxu0 %v1192
    %3388 = vmatpush1.bf16.msra.mxu0 %v1191
    %3389 = vmatprep.subr.bf16.mxu0 %v1196
    %3390 = vmatpush1.bf16.msra.mxu0 %v1195
    %3391 = vmatprep.subr.bf16.mxu0 %v1200
    %3392 = vmatpush1.bf16.msra.mxu0 %v1199
    %3393 = vmatprep.subr.bf16.mxu0 %v1204
    %3394 = vmatpush1.bf16.msra.mxu0 %v1203
    %3395 = vmatprep.subr.bf16.mxu0 %v1208
    %3396 = vmatpush1.bf16.msra.mxu0 %v1207
    %3397 = vmatprep.subr.bf16.mxu0 %v1212
    %3398 = vmatpush1.bf16.msra.mxu0 %v1211
    %3399 = vmatprep.subr.bf16.mxu0 %v1216
    %3400 = vmatpush1.bf16.msra.mxu0 %v1215
    %3401 = vmatprep.subr.bf16.mxu0 %v1220
    %3402 = vmatpush1.bf16.msra.mxu0 %v1219
    %3403 = vmatprep.subr.bf16.mxu0 0
    %3404 = vmatpush1.bf16.msra.mxu0 0
    %3405 = vmatprep.subr.bf16.mxu0 0
    %3406 = vmatpush1.bf16.msra.mxu0 0
    %3407 = vmatprep.subr.bf16.mxu0 0
    %3408 = vmatpush1.bf16.msra.mxu0 0
    %3409 = vmatprep.subr.bf16.mxu0 0
    %3410 = vmatpush1.bf16.msra.mxu0 0
    %3411 = vmatprep.subr.bf16.mxu0 0
    %3412 = vmatpush1.bf16.msra.mxu0 0
    %3413 = vmatprep.subr.bf16.mxu0 0
    %3414 = vmatpush1.bf16.msra.mxu0 0
    %3415 = vmatprep.subr.bf16.mxu0 0
    %3416 = vmatpush1.bf16.msra.mxu0 0
    %3417 = vmatprep.subr.bf16.mxu0 0
    %3418 = vmatpush1.bf16.msra.mxu0 0
    %3419 = vmatprep.mubr.bf16.mxu0 0
    %3420 = vmatmul.mubr.bf16.gmra.mrb[0].mxu0 %v3262
    %v3421 = vpop.f32.mrb[0].mxu0
    %v3422 = vadd.f32 %v3340, %v3421
    %v3423 = vpop.f32.mrb[0].mxu0
    %v3424 = vadd.f32 %v3342, %v3423
    %v3425 = vpop.f32.mrb[0].mxu0
    %v3426 = vpop.f32.mrb[0].mxu0
    %3427 = vdwg.mxu0
    %v3428 = vadd.f32 %v3381, %v466
    %v3429 = vadd.f32 %v3383, %v470
    %v3430 = vadd.f32 %v3422, %v474
    %v3431 = vadd.f32 %v3424, %v478
    %v3432 = vmul.f32 %v3428, 0.5
    %v3433 = vtanh.pop %v3432
    %v3434 = vmul.f32 %v3433, 0.5
    %v3435 = vadd.f32 %v3434, 0.5
    %v3436 = vmul.f32 %v3429, 0.5
    %v3437 = vtanh.pop %v3436
    %v3438 = vmul.f32 %v3437, 0.5
    %v3439 = vadd.f32 %v3438, 0.5
    %v3440 = vtanh.pop %v3430
    %v3441 = vmul.f32 %v3431, 0.5
    %v3442 = vtanh.pop %v3441
    %v3443 = vmul.f32 %v3442, 0.5
    %v3444 = vadd.f32 %v3443, 0.5
    %v3445 = vmul.f32 %v3439, %v3148
    %v3446 = vmul.f32 %v3435, %v3440
    %v3447 = vadd.f32 %v3445, %v3446
    %v3448 = vtanh.pop %v3447
    %v3449 = vmul.f32 %v3444, %v3448
    %v3450 = vpack.c.bf16 %v3449, %v3449
    %v3451 = vld [vmem:[#allocation11] sm:$0xff]
    %v3452 = vld [vmem:[#allocation11 + $0x8] sm:$0xf]
    %v3453 = vld [vmem:[#allocation11 + $0xc] sm:$0xff]
    %v3454 = vld [vmem:[#allocation11 + $0x14] sm:$0xf]
    %v3455 = vld [vmem:[#allocation11 + $0x18] sm:$0xff]
    %v3456 = vld [vmem:[#allocation11 + $0x20] sm:$0xf]
    %v3457 = vld [vmem:[#allocation11 + $0x24] sm:$0xff]
    %v3458 = vld [vmem:[#allocation11 + $0x2c] sm:$0xf]
    %v3459 = vld [vmem:[#allocation11 + $0x30] sm:$0xff]
    %v3460 = vld [vmem:[#allocation11 + $0x38] sm:$0xf]
    %v3461 = vld [vmem:[#allocation11 + $0x3c] sm:$0xff]
    %v3462 = vld [vmem:[#allocation11 + $0x44] sm:$0xf]
    %v3463 = vld [vmem:[#allocation11 + $0x48] sm:$0xff]
    %v3464 = vld [vmem:[#allocation11 + $0x50] sm:$0xf]
    %v3465 = vld [vmem:[#allocation11 + $0x54] sm:$0xff]
    %v3466 = vld [vmem:[#allocation11 + $0x5c] sm:$0xf]
    %v3467 = vld [vmem:[#allocation11 + $0x60] sm:$0xff]
    %v3468 = vld [vmem:[#allocation11 + $0x68] sm:$0xf]
    %v3469 = vld [vmem:[#allocation11 + $0x6c] sm:$0xff]
    %v3470 = vld [vmem:[#allocation11 + $0x74] sm:$0xf]
    %v3471 = vld [vmem:[#allocation11 + $0x78] sm:$0xff]
    %v3472 = vld [vmem:[#allocation11 + $0x80] sm:$0xf]
    %v3473 = vld [vmem:[#allocation11 + $0x84] sm:$0xff]
    %v3474 = vld [vmem:[#allocation11 + $0x8c] sm:$0xf]
    %v3475 = vld [vmem:[#allocation11 + $0x90] sm:$0xff]
    %v3476 = vld [vmem:[#allocation11 + $0x98] sm:$0xf]
    %v3477 = vld [vmem:[#allocation11 + $0x9c] sm:$0xff]
    %v3478 = vld [vmem:[#allocation11 + $0xa4] sm:$0xf]
    %v3479 = vld [vmem:[#allocation11 + $0xa8] sm:$0xff]
    %v3480 = vld [vmem:[#allocation11 + $0xb0] sm:$0xf]
    %v3481 = vld [vmem:[#allocation11 + $0xb4] sm:$0xff]
    %v3482 = vld [vmem:[#allocation11 + $0xbc] sm:$0xf]
    %v3483 = vld [vmem:[#allocation13] sm:$0x7]
    %v3485 = vlaneseq
    %v3486 = vshrl.u32 %v3485, 7
    %v3487 = vsub.s32 0, %v3486
    %v3488 = vrot.slane %v3483, %v3487
    %v3489 = vlaneseq
    %v3490 = vshrl.u32 %v3489, 7
    %v3491 = vsub.s32 1, %v3490
    %v3492 = vrot.slane %v3483, %v3491
    %v3493 = vlaneseq
    %v3494 = vshrl.u32 %v3493, 7
    %v3495 = vsub.s32 2, %v3494
    %v3496 = vrot.slane %v3483, %v3495
    %v3532 = vunpack.c.l.b16 %v3451
    %v3533 = vunpack.c.h.b16 %v3451
    %v3534 = vunpack.c.l.b16 %v3452
    %v3535 = vunpack.c.l.b16 %v3453
    %v3536 = vunpack.c.h.b16 %v3453
    %v3537 = vunpack.c.l.b16 %v3454
    %v3538 = vunpack.c.l.b16 %v3455
    %v3539 = vunpack.c.h.b16 %v3455
    %v3540 = vunpack.c.l.b16 %v3456
    %v3541 = vunpack.c.l.b16 %v3457
    %v3542 = vunpack.c.h.b16 %v3457
    %v3543 = vunpack.c.l.b16 %v3458
    %v3544 = vunpack.c.l.b16 %v3459
    %v3545 = vunpack.c.h.b16 %v3459
    %v3546 = vunpack.c.l.b16 %v3460
    %v3547 = vunpack.c.l.b16 %v3461
    %v3548 = vunpack.c.h.b16 %v3461
    %v3549 = vunpack.c.l.b16 %v3462
    %v3550 = vunpack.c.l.b16 %v3463
    %v3551 = vunpack.c.h.b16 %v3463
    %v3552 = vunpack.c.l.b16 %v3464
    %v3553 = vunpack.c.l.b16 %v3465
    %v3554 = vunpack.c.h.b16 %v3465
    %v3555 = vunpack.c.l.b16 %v3466
    %v3556 = vunpack.c.l.b16 %v3467
    %v3557 = vunpack.c.h.b16 %v3467
    %v3558 = vunpack.c.l.b16 %v3468
    %v3559 = vunpack.c.l.b16 %v3469
    %v3560 = vunpack.c.h.b16 %v3469
    %v3561 = vunpack.c.l.b16 %v3470
    %v3562 = vunpack.c.l.b16 %v3471
    %v3563 = vunpack.c.h.b16 %v3471
    %v3564 = vunpack.c.l.b16 %v3472
    %v3565 = vunpack.c.l.b16 %v3473
    %v3566 = vunpack.c.h.b16 %v3473
    %v3567 = vunpack.c.l.b16 %v3474
    %v3568 = vunpack.c.l.b16 %v3475
    %v3569 = vunpack.c.h.b16 %v3475
    %v3570 = vunpack.c.l.b16 %v3476
    %v3571 = vunpack.c.l.b16 %v3477
    %v3572 = vunpack.c.h.b16 %v3477
    %v3573 = vunpack.c.l.b16 %v3478
    %v3574 = vunpack.c.l.b16 %v3479
    %v3575 = vunpack.c.h.b16 %v3479
    %v3576 = vunpack.c.l.b16 %v3480
    %v3577 = vunpack.c.l.b16 %v3481
    %v3578 = vunpack.c.h.b16 %v3481
    %v3579 = vunpack.c.l.b16 %v3482
    %v3580 = vpack.c.b16 %v3535, %v3532
    %v3581 = vpack.c.b16 %v3536, %v3533
    %v3582 = vpack.c.b16 %v3537, %v3534
    %v3583 = vpack.c.b16 %v3541, %v3538
    %v3584 = vpack.c.b16 %v3542, %v3539
    %v3585 = vpack.c.b16 %v3543, %v3540
    %v3586 = vpack.c.b16 %v3547, %v3544
    %v3587 = vpack.c.b16 %v3548, %v3545
    %v3588 = vpack.c.b16 %v3549, %v3546
    %v3589 = vpack.c.b16 %v3553, %v3550
    %v3590 = vpack.c.b16 %v3554, %v3551
    %v3591 = vpack.c.b16 %v3555, %v3552
    %v3592 = vpack.c.b16 %v3559, %v3556
    %v3593 = vpack.c.b16 %v3560, %v3557
    %v3594 = vpack.c.b16 %v3561, %v3558
    %v3595 = vpack.c.b16 %v3565, %v3562
    %v3596 = vpack.c.b16 %v3566, %v3563
    %v3597 = vpack.c.b16 %v3567, %v3564
    %v3598 = vpack.c.b16 %v3571, %v3568
    %v3599 = vpack.c.b16 %v3572, %v3569
    %v3600 = vpack.c.b16 %v3573, %v3570
    %v3601 = vpack.c.b16 %v3577, %v3574
    %v3602 = vpack.c.b16 %v3578, %v3575
    %v3603 = vpack.c.b16 %v3579, %v3576
    %3628 = vmatprep.subr.bf16.mxu0 %v3581
    %3629 = vmatpush1.bf16.msra.mxu0 %v3580
    %3630 = vmatprep.subr.bf16.mxu0 %v3584
    %3631 = vmatpush1.bf16.msra.mxu0 %v3583
    %3632 = vmatprep.subr.bf16.mxu0 %v3587
    %3633 = vmatpush1.bf16.msra.mxu0 %v3586
    %3634 = vmatprep.subr.bf16.mxu0 %v3590
    %3635 = vmatpush1.bf16.msra.mxu0 %v3589
    %3636 = vmatprep.subr.bf16.mxu0 %v3593
    %3637 = vmatpush1.bf16.msra.mxu0 %v3592
    %3638 = vmatprep.subr.bf16.mxu0 %v3596
    %3639 = vmatpush1.bf16.msra.mxu0 %v3595
    %3640 = vmatprep.subr.bf16.mxu0 %v3599
    %3641 = vmatpush1.bf16.msra.mxu0 %v3598
    %3642 = vmatprep.subr.bf16.mxu0 %v3602
    %3643 = vmatpush1.bf16.msra.mxu0 %v3601
    %3644 = vmatprep.subr.bf16.mxu0 0
    %3645 = vmatpush1.bf16.msra.mxu0 0
    %3646 = vmatprep.subr.bf16.mxu0 0
    %3647 = vmatpush1.bf16.msra.mxu0 0
    %3648 = vmatprep.subr.bf16.mxu0 0
    %3649 = vmatpush1.bf16.msra.mxu0 0
    %3650 = vmatprep.subr.bf16.mxu0 0
    %3651 = vmatpush1.bf16.msra.mxu0 0
    %3652 = vmatprep.subr.bf16.mxu0 0
    %3653 = vmatpush1.bf16.msra.mxu0 0
    %3654 = vmatprep.subr.bf16.mxu0 0
    %3655 = vmatpush1.bf16.msra.mxu0 0
    %3656 = vmatprep.subr.bf16.mxu0 0
    %3657 = vmatpush1.bf16.msra.mxu0 0
    %3658 = vmatprep.subr.bf16.mxu0 0
    %3659 = vmatpush1.bf16.msra.mxu0 0
    %3660 = vmatprep.mubr.bf16.mxu0 0
    %3661 = vmatmul.mubr.bf16.gmra.mrb[0].mxu0 %v3450
    %v3662 = vpop.f32.mrb[0].mxu0
    %v3663 = vadd.f32 %v3488, %v3662
    %v3664 = vpop.f32.mrb[0].mxu0
    %v3665 = vadd.f32 %v3492, %v3664
    %v3666 = vpop.f32.mrb[0].mxu0
    %v3667 = vpop.f32.mrb[0].mxu0
    %3668 = vdwg.mxu0
    %3669 = vmatprep.subr.bf16.mxu0 0
    %3670 = vmatpush1.bf16.msra.mxu0 %v3582
    %3671 = vmatprep.subr.bf16.mxu0 0
    %3672 = vmatpush1.bf16.msra.mxu0 %v3585
    %3673 = vmatprep.subr.bf16.mxu0 0
    %3674 = vmatpush1.bf16.msra.mxu0 %v3588
    %3675 = vmatprep.subr.bf16.mxu0 0
    %3676 = vmatpush1.bf16.msra.mxu0 %v3591
    %3677 = vmatprep.subr.bf16.mxu0 0
    %3678 = vmatpush1.bf16.msra.mxu0 %v3594
    %3679 = vmatprep.subr.bf16.mxu0 0
    %3680 = vmatpush1.bf16.msra.mxu0 %v3597
    %3681 = vmatprep.subr.bf16.mxu0 0
    %3682 = vmatpush1.bf16.msra.mxu0 %v3600
    %3683 = vmatprep.subr.bf16.mxu0 0
    %3684 = vmatpush1.bf16.msra.mxu0 %v3603
    %3685 = vmatprep.subr.bf16.mxu0 0
    %3686 = vmatpush1.bf16.msra.mxu0 0
    %3687 = vmatprep.subr.bf16.mxu0 0
    %3688 = vmatpush1.bf16.msra.mxu0 0
    %3689 = vmatprep.subr.bf16.mxu0 0
    %3690 = vmatpush1.bf16.msra.mxu0 0
    %3691 = vmatprep.subr.bf16.mxu0 0
    %3692 = vmatpush1.bf16.msra.mxu0 0
    %3693 = vmatprep.subr.bf16.mxu0 0
    %3694 = vmatpush1.bf16.msra.mxu0 0
    %3695 = vmatprep.subr.bf16.mxu0 0
    %3696 = vmatpush1.bf16.msra.mxu0 0
    %3697 = vmatprep.subr.bf16.mxu0 0
    %3698 = vmatpush1.bf16.msra.mxu0 0
    %3699 = vmatprep.subr.bf16.mxu0 0
    %3700 = vmatpush1.bf16.msra.mxu0 0
    %3701 = vmatprep.mubr.bf16.mxu0 0
    %3702 = vmatmul.mubr.bf16.gmra.mrb[0].mxu0 %v3450
    %v3703 = vpop.f32.mrb[0].mxu0
    %v3704 = vadd.f32 %v3496, %v3703
    %v3705 = vpop.f32.mrb[0].mxu0
    %v3706 = vpop.f32.mrb[0].mxu0
    %v3707 = vpop.f32.mrb[0].mxu0
    %3708 = vdwg.mxu0
    %v3709 = vlaneseq
    %v3710 = vand.u32 %v3709, 127
    %vm3711 = vcmp.lt.s32.totalorder %v3710, 4
    %v3712 = vpack.c.bf16 %v3663, %v3663
    %v3713 = vpack.c.bf16 %v3665, %v3665
    %v3714 = vpack.c.bf16 %v3704, %v3704
    %vm3715 = vcmask 261120
    %v3717 = vsel %vm3715, %v3712, 0
    %v3720 = vsel %vm3715, %v3713, 0
    %3722 = vmatprep.subr.bf16.mxu0 0
    %3723 = vmatpush1.bf16.xpose.msra.mxu0 %v3720
    %3724 = vmatprep.subr.bf16.mxu0 0
    %3725 = vmatpush1.bf16.xpose.msra.mxu0 0
    %3726 = vmatprep.subr.bf16.mxu0 0
    %3727 = vmatpush1.bf16.xpose.msra.mxu0 0
    %3728 = vmatprep.subr.bf16.mxu0 0
    %3729 = vmatpush1.bf16.xpose.msra.mxu0 0
    %3730 = vmatprep.subr.bf16.mxu0 0
    %3731 = vmatpush1.bf16.xpose.msra.mxu0 0
    %3732 = vmatprep.subr.bf16.mxu0 0
    %3733 = vmatpush1.bf16.xpose.msra.mxu0 0
    %3734 = vmatprep.subr.bf16.mxu0 0
    %3735 = vmatpush1.bf16.xpose.msra.mxu0 0
    %3736 = vmatprep.subr.bf16.mxu0 0
    %3737 = vmatpush1.bf16.xpose.msra.mxu0 0
    %3738 = vmatprep.subr.bf16.mxu0 0
    %3739 = vmatpush1.bf16.xpose.msra.mxu0 0
    %3740 = vmatprep.subr.bf16.mxu0 0
    %3741 = vmatpush1.bf16.xpose.msra.mxu0 0
    %3742 = vmatprep.subr.bf16.mxu0 0
    %3743 = vmatpush1.bf16.xpose.msra.mxu0 0
    %3744 = vmatprep.subr.bf16.mxu0 0
    %3745 = vmatpush1.bf16.xpose.msra.mxu0 0
    %3746 = vmatprep.subr.bf16.mxu0 0
    %3747 = vmatpush1.bf16.xpose.msra.mxu0 0
    %3748 = vmatprep.subr.bf16.mxu0 0
    %3749 = vmatpush1.bf16.xpose.msra.mxu0 0
    %3750 = vmatprep.subr.bf16.mxu0 0
    %3751 = vmatpush1.bf16.xpose.msra.mxu0 0
    %3752 = vmatprep.subr.bf16.mxu0 0
    %3753 = vmatpush1.bf16.xpose.msra.mxu0 0
    %3754 = vmatprep.mubr.bf16.mxu0 0
    %3755 = vmatmul.mubr.bf16.gmra.mrb[0].mxu0 %v3717
    %v3756 = vpop.f32.mrb[0].mxu0
    %v3757 = vadd.f32 0.0, %v3756
    %v3758 = vpop.f32.mrb[0].mxu0
    %v3759 = vpop.f32.mrb[0].mxu0
    %v3760 = vpop.f32.mrb[0].mxu0
    %3761 = vdwg.mxu0
    %v3762 = vmul.f32 %v3757, 0.17677669
    %v3763 = vsel %vm3711, %v3762, -1e+30
    %v3764 = vsel %vm178, %v3763, -inf
    %3765 = vmax.xlane.f32.xlu0 %v3764
    %v3766 = vpop.xlane.xlu0 %3765
    %v3767 = vsub.f32 %v3763, %v3766
    %v3768 = vmul.f32 %v3767, 1.442695
    %v3769 = vpow.pop %v3768
    %v3770 = vsel %vm178, %v3769, 0.0
    %3771 = vadd.xlane.f32.xlu0 %v3770
    %v3772 = vpop.xlane.xlu0 %3771
    %v3773 = vrcp.pop %v3772
    %v3774 = vmul.f32 %v3769, %v3773
    %v3775 = vpack.c.bf16 %v3774, %v3774
    %v3777 = vsel %vm178, %v3775, 0
    %vm3779 = vcmask 1043456
    %v3781 = vsel %vm3779, %v3714, 0
    %3783 = vmatprep.subr.bf16.mxu0 0
    %3784 = vmatpush1.bf16.msra.mxu0 %v3781
    %3785 = vmatprep.subr.bf16.mxu0 0
    %3786 = vmatpush1.bf16.msra.mxu0 0
    %3787 = vmatprep.subr.bf16.mxu0 0
    %3788 = vmatpush1.bf16.msra.mxu0 0
    %3789 = vmatprep.subr.bf16.mxu0 0
    %3790 = vmatpush1.bf16.msra.mxu0 0
    %3791 = vmatprep.subr.bf16.mxu0 0
    %3792 = vmatpush1.bf16.msra.mxu0 0
    %3793 = vmatprep.subr.bf16.mxu0 0
    %3794 = vmatpush1.bf16.msra.mxu0 0
    %3795 = vmatprep.subr.bf16.mxu0 0
    %3796 = vmatpush1.bf16.msra.mxu0 0
    %3797 = vmatprep.subr.bf16.mxu0 0
    %3798 = vmatpush1.bf16.msra.mxu0 0
    %3799 = vmatprep.subr.bf16.mxu0 0
    %3800 = vmatpush1.bf16.msra.mxu0 0
    %3801 = vmatprep.subr.bf16.mxu0 0
    %3802 = vmatpush1.bf16.msra.mxu0 0
    %3803 = vmatprep.subr.bf16.mxu0 0
    %3804 = vmatpush1.bf16.msra.mxu0 0
    %3805 = vmatprep.subr.bf16.mxu0 0
    %3806 = vmatpush1.bf16.msra.mxu0 0
    %3807 = vmatprep.subr.bf16.mxu0 0
    %3808 = vmatpush1.bf16.msra.mxu0 0
    %3809 = vmatprep.subr.bf16.mxu0 0
    %3810 = vmatpush1.bf16.msra.mxu0 0
    %3811 = vmatprep.subr.bf16.mxu0 0
    %3812 = vmatpush1.bf16.msra.mxu0 0
    %3813 = vmatprep.subr.bf16.mxu0 0
    %3814 = vmatpush1.bf16.msra.mxu0 0
    %3815 = vmatprep.mubr.bf16.mxu0 0
    %3816 = vmatmul.mubr.bf16.gmra.mrb[0].mxu0 %v3777
    %v3817 = vpop.f32.mrb[0].mxu0
    %v3818 = vadd.f32 0.0, %v3817
    %v3819 = vpop.f32.mrb[0].mxu0
    %v3820 = vpop.f32.mrb[0].mxu0
    %v3821 = vpop.f32.mrb[0].mxu0
    %3822 = vdwg.mxu0
    %v3823 = vpack.c.bf16 %v3818, %v3818
    %v3824 = vld [vmem:[%s9] sm:$0xf]
    %v3825 = vld [vmem:[%s9 + $0x4] sm:$0xf]
    %v3826 = vld [vmem:[%s9 + $0x8] sm:$0xf]
    %v3827 = vld [vmem:[%s9 + $0xc] sm:$0xf]
    %3829 = vrot.lane.b32.xlu0 %v3712, 96
    %v3830 = vpop.permute.xlu0 %3829
    %3832 = vrot.lane.b32.xlu0 %v3713, 96
    %v3833 = vpop.permute.xlu0 %3832
    %v3835 = vsel %vm3715, %v3830, 0
    %v3838 = vsel %vm3715, %v3833, 0
    %3840 = vmatprep.subr.bf16.mxu0 0
    %3841 = vmatpush1.bf16.xpose.msra.mxu0 %v3838
    %3842 = vmatprep.subr.bf16.mxu0 0
    %3843 = vmatpush1.bf16.xpose.msra.mxu0 0
    %3844 = vmatprep.subr.bf16.mxu0 0
    %3845 = vmatpush1.bf16.xpose.msra.mxu0 0
    %3846 = vmatprep.subr.bf16.mxu0 0
    %3847 = vmatpush1.bf16.xpose.msra.mxu0 0
    %3848 = vmatprep.subr.bf16.mxu0 0
    %3849 = vmatpush1.bf16.xpose.msra.mxu0 0
    %3850 = vmatprep.subr.bf16.mxu0 0
    %3851 = vmatpush1.bf16.xpose.msra.mxu0 0
    %3852 = vmatprep.subr.bf16.mxu0 0
    %3853 = vmatpush1.bf16.xpose.msra.mxu0 0
    %3854 = vmatprep.subr.bf16.mxu0 0
    %3855 = vmatpush1.bf16.xpose.msra.mxu0 0
    %3856 = vmatprep.subr.bf16.mxu0 0
    %3857 = vmatpush1.bf16.xpose.msra.mxu0 0
    %3858 = vmatprep.subr.bf16.mxu0 0
    %3859 = vmatpush1.bf16.xpose.msra.mxu0 0
    %3860 = vmatprep.subr.bf16.mxu0 0
    %3861 = vmatpush1.bf16.xpose.msra.mxu0 0
    %3862 = vmatprep.subr.bf16.mxu0 0
    %3863 = vmatpush1.bf16.xpose.msra.mxu0 0
    %3864 = vmatprep.subr.bf16.mxu0 0
    %3865 = vmatpush1.bf16.xpose.msra.mxu0 0
    %3866 = vmatprep.subr.bf16.mxu0 0
    %3867 = vmatpush1.bf16.xpose.msra.mxu0 0
    %3868 = vmatprep.subr.bf16.mxu0 0
    %3869 = vmatpush1.bf16.xpose.msra.mxu0 0
    %3870 = vmatprep.subr.bf16.mxu0 0
    %3871 = vmatpush1.bf16.xpose.msra.mxu0 0
    %3872 = vmatprep.mubr.bf16.mxu0 0
    %3873 = vmatmul.mubr.bf16.gmra.mrb[0].mxu0 %v3835
    %v3874 = vpop.f32.mrb[0].mxu0
    %v3875 = vadd.f32 0.0, %v3874
    %v3876 = vpop.f32.mrb[0].mxu0
    %v3877 = vpop.f32.mrb[0].mxu0
    %v3878 = vpop.f32.mrb[0].mxu0
    %3879 = vdwg.mxu0
    %v3880 = vmul.f32 %v3875, 0.17677669
    %v3881 = vsel %vm3711, %v3880, -1e+30
    %v3882 = vsel %vm178, %v3881, -inf
    %3883 = vmax.xlane.f32.xlu0 %v3882
    %v3884 = vpop.xlane.xlu0 %3883
    %v3885 = vsub.f32 %v3881, %v3884
    %v3886 = vmul.f32 %v3885, 1.442695
    %v3887 = vpow.pop %v3886
    %v3888 = vsel %vm178, %v3887, 0.0
    %3889 = vadd.xlane.f32.xlu0 %v3888
    %v3890 = vpop.xlane.xlu0 %3889
    %v3891 = vrcp.pop %v3890
    %v3892 = vmul.f32 %v3887, %v3891
    %v3893 = vpack.c.bf16 %v3892, %v3892
    %3895 = vrot.lane.b32.xlu0 %v3714, 96
    %v3896 = vpop.permute.xlu0 %3895
    %v3898 = vsel %vm178, %v3893, 0
    %v3901 = vsel %vm3779, %v3896, 0
    %3903 = vmatprep.subr.bf16.mxu0 0
    %3904 = vmatpush1.bf16.msra.mxu0 %v3901
    %3905 = vmatprep.subr.bf16.mxu0 0
    %3906 = vmatpush1.bf16.msra.mxu0 0
    %3907 = vmatprep.subr.bf16.mxu0 0
    %3908 = vmatpush1.bf16.msra.mxu0 0
    %3909 = vmatprep.subr.bf16.mxu0 0
    %3910 = vmatpush1.bf16.msra.mxu0 0
    %3911 = vmatprep.subr.bf16.mxu0 0
    %3912 = vmatpush1.bf16.msra.mxu0 0
    %3913 = vmatprep.subr.bf16.mxu0 0
    %3914 = vmatpush1.bf16.msra.mxu0 0
    %3915 = vmatprep.subr.bf16.mxu0 0
    %3916 = vmatpush1.bf16.msra.mxu0 0
    %3917 = vmatprep.subr.bf16.mxu0 0
    %3918 = vmatpush1.bf16.msra.mxu0 0
    %3919 = vmatprep.subr.bf16.mxu0 0
    %3920 = vmatpush1.bf16.msra.mxu0 0
    %3921 = vmatprep.subr.bf16.mxu0 0
    %3922 = vmatpush1.bf16.msra.mxu0 0
    %3923 = vmatprep.subr.bf16.mxu0 0
    %3924 = vmatpush1.bf16.msra.mxu0 0
    %3925 = vmatprep.subr.bf16.mxu0 0
    %3926 = vmatpush1.bf16.msra.mxu0 0
    %3927 = vmatprep.subr.bf16.mxu0 0
    %3928 = vmatpush1.bf16.msra.mxu0 0
    %3929 = vmatprep.subr.bf16.mxu0 0
    %3930 = vmatpush1.bf16.msra.mxu0 0
    %3931 = vmatprep.subr.bf16.mxu0 0
    %3932 = vmatpush1.bf16.msra.mxu0 0
    %3933 = vmatprep.subr.bf16.mxu0 0
    %3934 = vmatpush1.bf16.msra.mxu0 0
    %3935 = vmatprep.mubr.bf16.mxu0 0
    %3936 = vmatmul.mubr.bf16.gmra.mrb[0].mxu0 %v3898
    %v3937 = vpop.f32.mrb[0].mxu0
    %v3938 = vadd.f32 0.0, %v3937
    %v3939 = vpop.f32.mrb[0].mxu0
    %v3940 = vpop.f32.mrb[0].mxu0
    %v3941 = vpop.f32.mrb[0].mxu0
    %3942 = vdwg.mxu0
    %v3943 = vpack.c.bf16 %v3938, %v3938
    %s3944 = scalar_lea.vmem %s9, 16
    %v3945 = vld [vmem:[%s3944] sm:$0xf]
    %v3946 = vld [vmem:[%s3944 + $0x4] sm:$0xf]
    %v3947 = vld [vmem:[%s3944 + $0x8] sm:$0xf]
    %v3948 = vld [vmem:[%s3944 + $0xc] sm:$0xf]
    %v3953 = vunpack.c.l.b16 %v3945
    %v3954 = vunpack.c.l.b16 %v3946
    %v3955 = vunpack.c.l.b16 %v3947
    %v3956 = vunpack.c.l.b16 %v3948
    %v3957 = vpack.c.b16 %v3954, %v3953
    %v3958 = vpack.c.b16 %v3956, %v3955
    %v3962 = vsel %vm3715, %v3943, 0
    %3964 = vmatprep.subr.bf16.mxu0 0
    %3965 = vmatpush1.bf16.msra.mxu0 %v3957
    %3966 = vmatprep.subr.bf16.mxu0 0
    %3967 = vmatpush1.bf16.msra.mxu0 %v3958
    %3968 = vmatprep.subr.bf16.mxu0 0
    %3969 = vmatpush1.bf16.msra.mxu0 0
    %3970 = vmatprep.subr.bf16.mxu0 0
    %3971 = vmatpush1.bf16.msra.mxu0 0
    %3972 = vmatprep.subr.bf16.mxu0 0
    %3973 = vmatpush1.bf16.msra.mxu0 0
    %3974 = vmatprep.subr.bf16.mxu0 0
    %3975 = vmatpush1.bf16.msra.mxu0 0
    %3976 = vmatprep.subr.bf16.mxu0 0
    %3977 = vmatpush1.bf16.msra.mxu0 0
    %3978 = vmatprep.subr.bf16.mxu0 0
    %3979 = vmatpush1.bf16.msra.mxu0 0
    %3980 = vmatprep.subr.bf16.mxu0 0
    %3981 = vmatpush1.bf16.msra.mxu0 0
    %3982 = vmatprep.subr.bf16.mxu0 0
    %3983 = vmatpush1.bf16.msra.mxu0 0
    %3984 = vmatprep.subr.bf16.mxu0 0
    %3985 = vmatpush1.bf16.msra.mxu0 0
    %3986 = vmatprep.subr.bf16.mxu0 0
    %3987 = vmatpush1.bf16.msra.mxu0 0
    %3988 = vmatprep.subr.bf16.mxu0 0
    %3989 = vmatpush1.bf16.msra.mxu0 0
    %3990 = vmatprep.subr.bf16.mxu0 0
    %3991 = vmatpush1.bf16.msra.mxu0 0
    %3992 = vmatprep.subr.bf16.mxu0 0
    %3993 = vmatpush1.bf16.msra.mxu0 0
    %3994 = vmatprep.subr.bf16.mxu0 0
    %3995 = vmatpush1.bf16.msra.mxu0 0
    %3996 = vmatprep.mubr.bf16.mxu0 0
    %3997 = vmatmul.mubr.bf16.gmra.mrb[0].mxu0 %v3962
    %v3998 = vpop.f32.mrb[0].mxu0
    %v3999 = vadd.f32 0.0, %v3998
    %v4000 = vpop.f32.mrb[0].mxu0
    %v4001 = vpop.f32.mrb[0].mxu0
    %v4002 = vpop.f32.mrb[0].mxu0
    %4003 = vdwg.mxu0
    %v4008 = vunpack.c.l.b16 %v3824
    %v4009 = vunpack.c.l.b16 %v3825
    %v4010 = vunpack.c.l.b16 %v3826
    %v4011 = vunpack.c.l.b16 %v3827
    %v4012 = vpack.c.b16 %v4009, %v4008
    %v4013 = vpack.c.b16 %v4011, %v4010
    %v4017 = vsel %vm3715, %v3823, 0
    %4019 = vmatprep.subr.bf16.mxu0 0
    %4020 = vmatpush1.bf16.msra.mxu0 %v4012
    %4021 = vmatprep.subr.bf16.mxu0 0
    %4022 = vmatpush1.bf16.msra.mxu0 %v4013
    %4023 = vmatprep.subr.bf16.mxu0 0
    %4024 = vmatpush1.bf16.msra.mxu0 0
    %4025 = vmatprep.subr.bf16.mxu0 0
    %4026 = vmatpush1.bf16.msra.mxu0 0
    %4027 = vmatprep.subr.bf16.mxu0 0
    %4028 = vmatpush1.bf16.msra.mxu0 0
    %4029 = vmatprep.subr.bf16.mxu0 0
    %4030 = vmatpush1.bf16.msra.mxu0 0
    %4031 = vmatprep.subr.bf16.mxu0 0
    %4032 = vmatpush1.bf16.msra.mxu0 0
    %4033 = vmatprep.subr.bf16.mxu0 0
    %4034 = vmatpush1.bf16.msra.mxu0 0
    %4035 = vmatprep.subr.bf16.mxu0 0
    %4036 = vmatpush1.bf16.msra.mxu0 0
    %4037 = vmatprep.subr.bf16.mxu0 0
    %4038 = vmatpush1.bf16.msra.mxu0 0
    %4039 = vmatprep.subr.bf16.mxu0 0
    %4040 = vmatpush1.bf16.msra.mxu0 0
    %4041 = vmatprep.subr.bf16.mxu0 0
    %4042 = vmatpush1.bf16.msra.mxu0 0
    %4043 = vmatprep.subr.bf16.mxu0 0
    %4044 = vmatpush1.bf16.msra.mxu0 0
    %4045 = vmatprep.subr.bf16.mxu0 0
    %4046 = vmatpush1.bf16.msra.mxu0 0
    %4047 = vmatprep.subr.bf16.mxu0 0
    %4048 = vmatpush1.bf16.msra.mxu0 0
    %4049 = vmatprep.subr.bf16.mxu0 0
    %4050 = vmatpush1.bf16.msra.mxu0 0
    %4051 = vmatprep.mubr.bf16.mxu0 0
    %4052 = vmatmul.mubr.bf16.gmra.mrb[0].mxu0 %v4017
    %v4053 = vpop.f32.mrb[0].mxu0
    %v4054 = vadd.f32 %v3999, %v4053
    %v4055 = vpop.f32.mrb[0].mxu0
    %v4056 = vpop.f32.mrb[0].mxu0
    %v4057 = vpop.f32.mrb[0].mxu0
    %4058 = vdwg.mxu0
    %4059 = vrot.lane.b32.xlu0 %v3712, 64
    %v4060 = vpop.permute.xlu0 %4059
    %4061 = vrot.lane.b32.xlu0 %v3713, 64
    %v4062 = vpop.permute.xlu0 %4061
    %v4064 = vsel %vm3715, %v4060, 0
    %v4067 = vsel %vm3715, %v4062, 0
    %4069 = vmatprep.subr.bf16.mxu0 0
    %4070 = vmatpush1.bf16.xpose.msra.mxu0 %v4067
    %4071 = vmatprep.subr.bf16.mxu0 0
    %4072 = vmatpush1.bf16.xpose.msra.mxu0 0
    %4073 = vmatprep.subr.bf16.mxu0 0
    %4074 = vmatpush1.bf16.xpose.msra.mxu0 0
    %4075 = vmatprep.subr.bf16.mxu0 0
    %4076 = vmatpush1.bf16.xpose.msra.mxu0 0
    %4077 = vmatprep.subr.bf16.mxu0 0
    %4078 = vmatpush1.bf16.xpose.msra.mxu0 0
    %4079 = vmatprep.subr.bf16.mxu0 0
    %4080 = vmatpush1.bf16.xpose.msra.mxu0 0
    %4081 = vmatprep.subr.bf16.mxu0 0
    %4082 = vmatpush1.bf16.xpose.msra.mxu0 0
    %4083 = vmatprep.subr.bf16.mxu0 0
    %4084 = vmatpush1.bf16.xpose.msra.mxu0 0
    %4085 = vmatprep.subr.bf16.mxu0 0
    %4086 = vmatpush1.bf16.xpose.msra.mxu0 0
    %4087 = vmatprep.subr.bf16.mxu0 0
    %4088 = vmatpush1.bf16.xpose.msra.mxu0 0
    %4089 = vmatprep.subr.bf16.mxu0 0
    %4090 = vmatpush1.bf16.xpose.msra.mxu0 0
    %4091 = vmatprep.subr.bf16.mxu0 0
    %4092 = vmatpush1.bf16.xpose.msra.mxu0 0
    %4093 = vmatprep.subr.bf16.mxu0 0
    %4094 = vmatpush1.bf16.xpose.msra.mxu0 0
    %4095 = vmatprep.subr.bf16.mxu0 0
    %4096 = vmatpush1.bf16.xpose.msra.mxu0 0
    %4097 = vmatprep.subr.bf16.mxu0 0
    %4098 = vmatpush1.bf16.xpose.msra.mxu0 0
    %4099 = vmatprep.subr.bf16.mxu0 0
    %4100 = vmatpush1.bf16.xpose.msra.mxu0 0
    %4101 = vmatprep.mubr.bf16.mxu0 0
    %4102 = vmatmul.mubr.bf16.gmra.mrb[0].mxu0 %v4064
    %v4103 = vpop.f32.mrb[0].mxu0
    %v4104 = vadd.f32 0.0, %v4103
    %v4105 = vpop.f32.mrb[0].mxu0
    %v4106 = vpop.f32.mrb[0].mxu0
    %v4107 = vpop.f32.mrb[0].mxu0
    %4108 = vdwg.mxu0
    %v4109 = vmul.f32 %v4104, 0.17677669
    %v4110 = vsel %vm3711, %v4109, -1e+30
    %v4111 = vsel %vm178, %v4110, -inf
    %4112 = vmax.xlane.f32.xlu0 %v4111
    %v4113 = vpop.xlane.xlu0 %4112
    %v4114 = vsub.f32 %v4110, %v4113
    %v4115 = vmul.f32 %v4114, 1.442695
    %v4116 = vpow.pop %v4115
    %v4117 = vsel %vm178, %v4116, 0.0
    %4118 = vadd.xlane.f32.xlu0 %v4117
    %v4119 = vpop.xlane.xlu0 %4118
    %v4120 = vrcp.pop %v4119
    %v4121 = vmul.f32 %v4116, %v4120
    %v4122 = vpack.c.bf16 %v4121, %v4121
    %4123 = vrot.lane.b32.xlu0 %v3714, 64
    %v4124 = vpop.permute.xlu0 %4123
    %v4126 = vsel %vm178, %v4122, 0
    %v4129 = vsel %vm3779, %v4124, 0
    %4131 = vmatprep.subr.bf16.mxu0 0
    %4132 = vmatpush1.bf16.msra.mxu0 %v4129
    %4133 = vmatprep.subr.bf16.mxu0 0
    %4134 = vmatpush1.bf16.msra.mxu0 0
    %4135 = vmatprep.subr.bf16.mxu0 0
    %4136 = vmatpush1.bf16.msra.mxu0 0
    %4137 = vmatprep.subr.bf16.mxu0 0
    %4138 = vmatpush1.bf16.msra.mxu0 0
    %4139 = vmatprep.subr.bf16.mxu0 0
    %4140 = vmatpush1.bf16.msra.mxu0 0
    %4141 = vmatprep.subr.bf16.mxu0 0
    %4142 = vmatpush1.bf16.msra.mxu0 0
    %4143 = vmatprep.subr.bf16.mxu0 0
    %4144 = vmatpush1.bf16.msra.mxu0 0
    %4145 = vmatprep.subr.bf16.mxu0 0
    %4146 = vmatpush1.bf16.msra.mxu0 0
    %4147 = vmatprep.subr.bf16.mxu0 0
    %4148 = vmatpush1.bf16.msra.mxu0 0
    %4149 = vmatprep.subr.bf16.mxu0 0
    %4150 = vmatpush1.bf16.msra.mxu0 0
    %4151 = vmatprep.subr.bf16.mxu0 0
    %4152 = vmatpush1.bf16.msra.mxu0 0
    %4153 = vmatprep.subr.bf16.mxu0 0
    %4154 = vmatpush1.bf16.msra.mxu0 0
    %4155 = vmatprep.subr.bf16.mxu0 0
    %4156 = vmatpush1.bf16.msra.mxu0 0
    %4157 = vmatprep.subr.bf16.mxu0 0
    %4158 = vmatpush1.bf16.msra.mxu0 0
    %4159 = vmatprep.subr.bf16.mxu0 0
    %4160 = vmatpush1.bf16.msra.mxu0 0
    %4161 = vmatprep.subr.bf16.mxu0 0
    %4162 = vmatpush1.bf16.msra.mxu0 0
    %4163 = vmatprep.mubr.bf16.mxu0 0
    %4164 = vmatmul.mubr.bf16.gmra.mrb[0].mxu0 %v4126
    %v4165 = vpop.f32.mrb[0].mxu0
    %v4166 = vadd.f32 0.0, %v4165
    %v4167 = vpop.f32.mrb[0].mxu0
    %v4168 = vpop.f32.mrb[0].mxu0
    %v4169 = vpop.f32.mrb[0].mxu0
    %4170 = vdwg.mxu0
    %v4171 = vpack.c.bf16 %v4166, %v4166
    %s4172 = scalar_lea.vmem %s9, 32
    %v4173 = vld [vmem:[%s4172] sm:$0xf]
    %v4174 = vld [vmem:[%s4172 + $0x4] sm:$0xf]
    %v4175 = vld [vmem:[%s4172 + $0x8] sm:$0xf]
    %v4176 = vld [vmem:[%s4172 + $0xc] sm:$0xf]
    %v4181 = vunpack.c.l.b16 %v4173
    %v4182 = vunpack.c.l.b16 %v4174
    %v4183 = vunpack.c.l.b16 %v4175
    %v4184 = vunpack.c.l.b16 %v4176
    %v4185 = vpack.c.b16 %v4182, %v4181
    %v4186 = vpack.c.b16 %v4184, %v4183
    %v4190 = vsel %vm3715, %v4171, 0
    %4192 = vmatprep.subr.bf16.mxu0 0
    %4193 = vmatpush1.bf16.msra.mxu0 %v4185
    %4194 = vmatprep.subr.bf16.mxu0 0
    %4195 = vmatpush1.bf16.msra.mxu0 %v4186
    %4196 = vmatprep.subr.bf16.mxu0 0
    %4197 = vmatpush1.bf16.msra.mxu0 0
    %4198 = vmatprep.subr.bf16.mxu0 0
    %4199 = vmatpush1.bf16.msra.mxu0 0
    %4200 = vmatprep.subr.bf16.mxu0 0
    %4201 = vmatpush1.bf16.msra.mxu0 0
    %4202 = vmatprep.subr.bf16.mxu0 0
    %4203 = vmatpush1.bf16.msra.mxu0 0
    %4204 = vmatprep.subr.bf16.mxu0 0
    %4205 = vmatpush1.bf16.msra.mxu0 0
    %4206 = vmatprep.subr.bf16.mxu0 0
    %4207 = vmatpush1.bf16.msra.mxu0 0
    %4208 = vmatprep.subr.bf16.mxu0 0
    %4209 = vmatpush1.bf16.msra.mxu0 0
    %4210 = vmatprep.subr.bf16.mxu0 0
    %4211 = vmatpush1.bf16.msra.mxu0 0
    %4212 = vmatprep.subr.bf16.mxu0 0
    %4213 = vmatpush1.bf16.msra.mxu0 0
    %4214 = vmatprep.subr.bf16.mxu0 0
    %4215 = vmatpush1.bf16.msra.mxu0 0
    %4216 = vmatprep.subr.bf16.mxu0 0
    %4217 = vmatpush1.bf16.msra.mxu0 0
    %4218 = vmatprep.subr.bf16.mxu0 0
    %4219 = vmatpush1.bf16.msra.mxu0 0
    %4220 = vmatprep.subr.bf16.mxu0 0
    %4221 = vmatpush1.bf16.msra.mxu0 0
    %4222 = vmatprep.subr.bf16.mxu0 0
    %4223 = vmatpush1.bf16.msra.mxu0 0
    %4224 = vmatprep.mubr.bf16.mxu0 0
    %4225 = vmatmul.mubr.bf16.gmra.mrb[0].mxu0 %v4190
    %v4226 = vpop.f32.mrb[0].mxu0
    %v4227 = vadd.f32 0.0, %v4226
    %v4228 = vpop.f32.mrb[0].mxu0
    %v4229 = vpop.f32.mrb[0].mxu0
    %v4230 = vpop.f32.mrb[0].mxu0
    %4231 = vdwg.mxu0
    %v4232 = vadd.f32 %v4054, %v4227
    %4233 = vrot.lane.b32.xlu0 %v3712, 32
    %v4234 = vpop.permute.xlu0 %4233
    %4235 = vrot.lane.b32.xlu0 %v3713, 32
    %v4236 = vpop.permute.xlu0 %4235
    %v4238 = vsel %vm3715, %v4234, 0
    %v4241 = vsel %vm3715, %v4236, 0
    %4243 = vmatprep.subr.bf16.mxu0 0
    %4244 = vmatpush1.bf16.xpose.msra.mxu0 %v4241
    %4245 = vmatprep.subr.bf16.mxu0 0
    %4246 = vmatpush1.bf16.xpose.msra.mxu0 0
    %4247 = vmatprep.subr.bf16.mxu0 0
    %4248 = vmatpush1.bf16.xpose.msra.mxu0 0
    %4249 = vmatprep.subr.bf16.mxu0 0
    %4250 = vmatpush1.bf16.xpose.msra.mxu0 0
    %4251 = vmatprep.subr.bf16.mxu0 0
    %4252 = vmatpush1.bf16.xpose.msra.mxu0 0
    %4253 = vmatprep.subr.bf16.mxu0 0
    %4254 = vmatpush1.bf16.xpose.msra.mxu0 0
    %4255 = vmatprep.subr.bf16.mxu0 0
    %4256 = vmatpush1.bf16.xpose.msra.mxu0 0
    %4257 = vmatprep.subr.bf16.mxu0 0
    %4258 = vmatpush1.bf16.xpose.msra.mxu0 0
    %4259 = vmatprep.subr.bf16.mxu0 0
    %4260 = vmatpush1.bf16.xpose.msra.mxu0 0
    %4261 = vmatprep.subr.bf16.mxu0 0
    %4262 = vmatpush1.bf16.xpose.msra.mxu0 0
    %4263 = vmatprep.subr.bf16.mxu0 0
    %4264 = vmatpush1.bf16.xpose.msra.mxu0 0
    %4265 = vmatprep.subr.bf16.mxu0 0
    %4266 = vmatpush1.bf16.xpose.msra.mxu0 0
    %4267 = vmatprep.subr.bf16.mxu0 0
    %4268 = vmatpush1.bf16.xpose.msra.mxu0 0
    %4269 = vmatprep.subr.bf16.mxu0 0
    %4270 = vmatpush1.bf16.xpose.msra.mxu0 0
    %4271 = vmatprep.subr.bf16.mxu0 0
    %4272 = vmatpush1.bf16.xpose.msra.mxu0 0
    %4273 = vmatprep.subr.bf16.mxu0 0
    %4274 = vmatpush1.bf16.xpose.msra.mxu0 0
    %4275 = vmatprep.mubr.bf16.mxu0 0
    %4276 = vmatmul.mubr.bf16.gmra.mrb[0].mxu0 %v4238
    %v4277 = vpop.f32.mrb[0].mxu0
    %v4278 = vadd.f32 0.0, %v4277
    %v4279 = vpop.f32.mrb[0].mxu0
    %v4280 = vpop.f32.mrb[0].mxu0
    %v4281 = vpop.f32.mrb[0].mxu0
    %4282 = vdwg.mxu0
    %v4283 = vmul.f32 %v4278, 0.17677669
    %v4284 = vsel %vm3711, %v4283, -1e+30
    %v4285 = vsel %vm178, %v4284, -inf
    %4286 = vmax.xlane.f32.xlu0 %v4285
    %v4287 = vpop.xlane.xlu0 %4286
    %v4288 = vsub.f32 %v4284, %v4287
    %v4289 = vmul.f32 %v4288, 1.442695
    %v4290 = vpow.pop %v4289
    %v4291 = vsel %vm178, %v4290, 0.0
    %4292 = vadd.xlane.f32.xlu0 %v4291
    %v4293 = vpop.xlane.xlu0 %4292
    %v4294 = vrcp.pop %v4293
    %v4295 = vmul.f32 %v4290, %v4294
    %v4296 = vpack.c.bf16 %v4295, %v4295
    %4297 = vrot.lane.b32.xlu0 %v3714, 32
    %v4298 = vpop.permute.xlu0 %4297
    %v4300 = vsel %vm178, %v4296, 0
    %v4303 = vsel %vm3779, %v4298, 0
    %4305 = vmatprep.subr.bf16.mxu0 0
    %4306 = vmatpush1.bf16.msra.mxu0 %v4303
    %4307 = vmatprep.subr.bf16.mxu0 0
    %4308 = vmatpush1.bf16.msra.mxu0 0
    %4309 = vmatprep.subr.bf16.mxu0 0
    %4310 = vmatpush1.bf16.msra.mxu0 0
    %4311 = vmatprep.subr.bf16.mxu0 0
    %4312 = vmatpush1.bf16.msra.mxu0 0
    %4313 = vmatprep.subr.bf16.mxu0 0
    %4314 = vmatpush1.bf16.msra.mxu0 0
    %4315 = vmatprep.subr.bf16.mxu0 0
    %4316 = vmatpush1.bf16.msra.mxu0 0
    %4317 = vmatprep.subr.bf16.mxu0 0
    %4318 = vmatpush1.bf16.msra.mxu0 0
    %4319 = vmatprep.subr.bf16.mxu0 0
    %4320 = vmatpush1.bf16.msra.mxu0 0
    %4321 = vmatprep.subr.bf16.mxu0 0
    %4322 = vmatpush1.bf16.msra.mxu0 0
    %4323 = vmatprep.subr.bf16.mxu0 0
    %4324 = vmatpush1.bf16.msra.mxu0 0
    %4325 = vmatprep.subr.bf16.mxu0 0
    %4326 = vmatpush1.bf16.msra.mxu0 0
    %4327 = vmatprep.subr.bf16.mxu0 0
    %4328 = vmatpush1.bf16.msra.mxu0 0
    %4329 = vmatprep.subr.bf16.mxu0 0
    %4330 = vmatpush1.bf16.msra.mxu0 0
    %4331 = vmatprep.subr.bf16.mxu0 0
    %4332 = vmatpush1.bf16.msra.mxu0 0
    %4333 = vmatprep.subr.bf16.mxu0 0
    %4334 = vmatpush1.bf16.msra.mxu0 0
    %4335 = vmatprep.subr.bf16.mxu0 0
    %4336 = vmatpush1.bf16.msra.mxu0 0
    %4337 = vmatprep.mubr.bf16.mxu0 0
    %4338 = vmatmul.mubr.bf16.gmra.mrb[0].mxu0 %v4300
    %v4339 = vpop.f32.mrb[0].mxu0
    %v4340 = vadd.f32 0.0, %v4339
    %v4341 = vpop.f32.mrb[0].mxu0
    %v4342 = vpop.f32.mrb[0].mxu0
    %v4343 = vpop.f32.mrb[0].mxu0
    %4344 = vdwg.mxu0
    %v4345 = vpack.c.bf16 %v4340, %v4340
    %s4346 = scalar_lea.vmem %s9, 48
    %v4347 = vld [vmem:[%s4346] sm:$0xf]
    %v4348 = vld [vmem:[%s4346 + $0x4] sm:$0xf]
    %v4349 = vld [vmem:[%s4346 + $0x8] sm:$0xf]
    %v4350 = vld [vmem:[%s4346 + $0xc] sm:$0xf]
    %v4355 = vunpack.c.l.b16 %v4347
    %v4356 = vunpack.c.l.b16 %v4348
    %v4357 = vunpack.c.l.b16 %v4349
    %v4358 = vunpack.c.l.b16 %v4350
    %v4359 = vpack.c.b16 %v4356, %v4355
    %v4360 = vpack.c.b16 %v4358, %v4357
    %v4364 = vsel %vm3715, %v4345, 0
    %4366 = vmatprep.subr.bf16.mxu0 0
    %4367 = vmatpush1.bf16.msra.mxu0 %v4359
    %4368 = vmatprep.subr.bf16.mxu0 0
    %4369 = vmatpush1.bf16.msra.mxu0 %v4360
    %4370 = vmatprep.subr.bf16.mxu0 0
    %4371 = vmatpush1.bf16.msra.mxu0 0
    %4372 = vmatprep.subr.bf16.mxu0 0
    %4373 = vmatpush1.bf16.msra.mxu0 0
    %4374 = vmatprep.subr.bf16.mxu0 0
    %4375 = vmatpush1.bf16.msra.mxu0 0
    %4376 = vmatprep.subr.bf16.mxu0 0
    %4377 = vmatpush1.bf16.msra.mxu0 0
    %4378 = vmatprep.subr.bf16.mxu0 0
    %4379 = vmatpush1.bf16.msra.mxu0 0
    %4380 = vmatprep.subr.bf16.mxu0 0
    %4381 = vmatpush1.bf16.msra.mxu0 0
    %4382 = vmatprep.subr.bf16.mxu0 0
    %4383 = vmatpush1.bf16.msra.mxu0 0
    %4384 = vmatprep.subr.bf16.mxu0 0
    %4385 = vmatpush1.bf16.msra.mxu0 0
    %4386 = vmatprep.subr.bf16.mxu0 0
    %4387 = vmatpush1.bf16.msra.mxu0 0
    %4388 = vmatprep.subr.bf16.mxu0 0
    %4389 = vmatpush1.bf16.msra.mxu0 0
    %4390 = vmatprep.subr.bf16.mxu0 0
    %4391 = vmatpush1.bf16.msra.mxu0 0
    %4392 = vmatprep.subr.bf16.mxu0 0
    %4393 = vmatpush1.bf16.msra.mxu0 0
    %4394 = vmatprep.subr.bf16.mxu0 0
    %4395 = vmatpush1.bf16.msra.mxu0 0
    %4396 = vmatprep.subr.bf16.mxu0 0
    %4397 = vmatpush1.bf16.msra.mxu0 0
    %4398 = vmatprep.mubr.bf16.mxu0 0
    %4399 = vmatmul.mubr.bf16.gmra.mrb[0].mxu0 %v4364
    %v4400 = vpop.f32.mrb[0].mxu0
    %v4401 = vadd.f32 0.0, %v4400
    %v4402 = vpop.f32.mrb[0].mxu0
    %v4403 = vpop.f32.mrb[0].mxu0
    %v4404 = vpop.f32.mrb[0].mxu0
    %4405 = vdwg.mxu0
    %v4406 = vadd.f32 %v4232, %v4401
    %v4407 = vld [vmem:[%s10] sm:$0x1]
    %v4409 = vlaneseq
    %v4410 = vshrl.u32 %v4409, 7
    %v4411 = vsub.s32 0, %v4410
    %v4412 = vrot.slane %v4407, %v4411
    %v4414 = vadd.f32 %v4406, %v4412
    %v4415 = vld [vmem:[%s11] sm:$0xff]
    %v4416 = vld [vmem:[%s11 + $0x8] sm:$0xff]
    %v4417 = vld [vmem:[%s11 + $0x10] sm:$0xff]
    %v4418 = vld [vmem:[%s11 + $0x18] sm:$0xff]
    %v4419 = vld [vmem:[%s11 + $0x20] sm:$0xff]
    %v4420 = vld [vmem:[%s11 + $0x28] sm:$0xff]
    %v4421 = vld [vmem:[%s11 + $0x30] sm:$0xff]
    %v4422 = vld [vmem:[%s11 + $0x38] sm:$0xff]
    %v4423 = vld [vmem:[%s11 + $0x40] sm:$0xff]
    %v4424 = vld [vmem:[%s11 + $0x48] sm:$0xff]
    %v4425 = vld [vmem:[%s11 + $0x50] sm:$0xff]
    %v4426 = vld [vmem:[%s11 + $0x58] sm:$0xff]
    %v4427 = vld [vmem:[%s11 + $0x60] sm:$0xff]
    %v4428 = vld [vmem:[%s11 + $0x68] sm:$0xff]
    %v4429 = vld [vmem:[%s11 + $0x70] sm:$0xff]
    %v4430 = vld [vmem:[%s11 + $0x78] sm:$0xff]
    %v4431 = vld [vmem:[#allocation14] sm:$0x1]
    %v4433 = vlaneseq
    %v4434 = vshrl.u32 %v4433, 7
    %v4435 = vsub.s32 0, %v4434
    %v4436 = vrot.slane %v4431, %v4435
    %4438 = vmatprep.subr.mxu0 0.0
    %4439 = vmatpush1.msra.mxu0 %v4415
    %4440 = vmatprep.subr.mxu0 0.0
    %4441 = vmatpush1.msra.mxu0 %v4416
    %4442 = vmatprep.subr.mxu0 0.0
    %4443 = vmatpush1.msra.mxu0 %v4417
    %4444 = vmatprep.subr.mxu0 0.0
    %4445 = vmatpush1.msra.mxu0 %v4418
    %4446 = vmatprep.subr.mxu0 0.0
    %4447 = vmatpush1.msra.mxu0 %v4419
    %4448 = vmatprep.subr.mxu0 0.0
    %4449 = vmatpush1.msra.mxu0 %v4420
    %4450 = vmatprep.subr.mxu0 0.0
    %4451 = vmatpush1.msra.mxu0 %v4421
    %4452 = vmatprep.subr.mxu0 0.0
    %4453 = vmatpush1.msra.mxu0 %v4422
    %4454 = vmatprep.subr.mxu0 0.0
    %4455 = vmatpush1.msra.mxu0 %v4423
    %4456 = vmatprep.subr.mxu0 0.0
    %4457 = vmatpush1.msra.mxu0 %v4424
    %4458 = vmatprep.subr.mxu0 0.0
    %4459 = vmatpush1.msra.mxu0 %v4425
    %4460 = vmatprep.subr.mxu0 0.0
    %4461 = vmatpush1.msra.mxu0 %v4426
    %4462 = vmatprep.subr.mxu0 0.0
    %4463 = vmatpush1.msra.mxu0 %v4427
    %4464 = vmatprep.subr.mxu0 0.0
    %4465 = vmatpush1.msra.mxu0 %v4428
    %4466 = vmatprep.subr.mxu0 0.0
    %4467 = vmatpush1.msra.mxu0 %v4429
    %4468 = vmatprep.subr.mxu0 0.0
    %4469 = vmatpush1.msra.mxu0 %v4430
    %4470 = vmatprep.subr.mxu0 0.0
    %4471 = vmatpush1.msra.mxu0 0.0
    %4472 = vmatprep.subr.mxu0 0.0
    %4473 = vmatpush1.msra.mxu0 0.0
    %4474 = vmatprep.subr.mxu0 0.0
    %4475 = vmatpush1.msra.mxu0 0.0
    %4476 = vmatprep.subr.mxu0 0.0
    %4477 = vmatpush1.msra.mxu0 0.0
    %4478 = vmatprep.subr.mxu0 0.0
    %4479 = vmatpush1.msra.mxu0 0.0
    %4480 = vmatprep.subr.mxu0 0.0
    %4481 = vmatpush1.msra.mxu0 0.0
    %4482 = vmatprep.subr.mxu0 0.0
    %4483 = vmatpush1.msra.mxu0 0.0
    %4484 = vmatprep.subr.mxu0 0.0
    %4485 = vmatpush1.msra.mxu0 0.0
    %4486 = vmatprep.subr.mxu0 0.0
    %4487 = vmatpush1.msra.mxu0 0.0
    %4488 = vmatprep.subr.mxu0 0.0
    %4489 = vmatpush1.msra.mxu0 0.0
    %4490 = vmatprep.subr.mxu0 0.0
    %4491 = vmatpush1.msra.mxu0 0.0
    %4492 = vmatprep.subr.mxu0 0.0
    %4493 = vmatpush1.msra.mxu0 0.0
    %4494 = vmatprep.subr.mxu0 0.0
    %4495 = vmatpush1.msra.mxu0 0.0
    %4496 = vmatprep.subr.mxu0 0.0
    %4497 = vmatpush1.msra.mxu0 0.0
    %4498 = vmatprep.subr.mxu0 0.0
    %4499 = vmatpush1.msra.mxu0 0.0
    %4500 = vmatprep.subr.mxu0 0.0
    %4501 = vmatpush1.msra.mxu0 0.0
    %4502 = vmatprep.mubr.f32.mxu0 0.0
    %4503 = vmatmul.mubr.f32.gmra.mrb[0].mxu0 %v4414
    %v4504 = vpop.f32.mrb[0].mxu0
    %v4505 = vadd.f32 %v4436, %v4504
    %v4506 = vpop.f32.mrb[0].mxu0
    %4507 = vdwg.mxu0
    %v4508 = vmul.f32 %v4505, 0.5
    %v4509 = vtanh.pop %v4508
    %v4510 = vmul.f32 %v4509, 0.5
    %v4511 = vadd.f32 %v4510, 0.5
    %vm4512 = vcmask 23552
    %4513 = vst.msk [vmem:[%s13] sm:$0xff] %vm4512, %v4511
    // Predicated region
    $region86: #{enhanced_lstm_forward.1} parent=1 // pred_check
      _
    $region87: #{enhanced_lstm_forward.1} parent=1 // pred_check_branch
      %4515 = sbr.rel (0) target = $region89
    $region88: #{enhanced_lstm_forward.1} parent=1 // pred_region
      _
    $region89: #{enhanced_lstm_forward.1} parent=1 // pred_fallthru
      _
    // Predicated region
    $region90: #{enhanced_lstm_forward.1} parent=1 // pred_check
      _
    $region91: #{enhanced_lstm_forward.1} parent=1 // pred_check_branch
      %4517 = sbr.rel (0) target = $region93
    $region92: #{enhanced_lstm_forward.1} parent=1 // pred_region
      _
    $region93: #{enhanced_lstm_forward.1} parent=1 // pred_fallthru
      _
    %4518 = vsyncpa [#allocation4], 1
    %4519 = vsyncpa [#allocation6], 1
    %4520 = vsyncpa [#allocation9], 1
    %4521 = vsyncpa [#allocation12], 1
    %4522 = vsyncpa [#allocation15], 1

</llo_original>
